<compile_context>
chip_gen: v5e
topology: v5e:2x2
jax: 0.10.0
libtpu: 0.0.40
codegen_flags: <defaults>
</compile_context>

<pallas_src>
import functools

import numpy as np
import jax
import jax.numpy as jnp
from jax.experimental import pallas as pl
from jax.experimental.pallas import tpu as pltpu


# --------------------------------------------------------------------------
# align_corners=True bilinear interpolation helpers (static, numpy)
# --------------------------------------------------------------------------
def _bilinear_coeffs(n_in: int, n_out: int):
    """2-tap indices/weights for align_corners=True interpolation n_in -> n_out."""
    if n_out == 1:
        return (np.zeros(1, np.int64), np.zeros(1, np.int64), np.zeros(1, np.float64))
    j = np.arange(n_out)
    src = j * (n_in - 1) / (n_out - 1)
    i0 = np.clip(np.floor(src).astype(np.int64), 0, n_in - 1)
    i1 = np.minimum(i0 + 1, n_in - 1)
    frac = src - i0
    return i0, i1, frac


def _bilinear_matrix(n_in: int, n_out: int) -> np.ndarray:
    """Dense interpolation matrix (n_out, n_in) for align_corners=True bilinear."""
    U = np.zeros((n_out, n_in), np.float32)
    i0, i1, f = _bilinear_coeffs(n_in, n_out)
    j = np.arange(n_out)
    np.add.at(U, (j, i0), (1.0 - f).astype(np.float32))
    np.add.at(U, (j, i1), f.astype(np.float32))
    return U


def _ceil_to(a: int, b: int) -> int:
    return -(-a // b) * b


def _padded_vmem_bytes(shape, dtype) -> int:
    """(8,128)-tile padded VMEM footprint of a buffer with this shape/dtype."""
    itemsize = np.dtype(dtype).itemsize
    if len(shape) == 1:
        sub, lane, lead = 1, shape[0], 1
    else:
        sub, lane = shape[-2], shape[-1]
        lead = int(np.prod(shape[:-2], dtype=np.int64)) if len(shape) > 2 else 1
    return lead * _ceil_to(sub, 8) * _ceil_to(lane, 128) * itemsize


# --------------------------------------------------------------------------
# Pallas kernel
# --------------------------------------------------------------------------
def _make_kernel(H, W, Cin, Cout, H2, W2, use_norm, eps, mm_dtype):
    hi0, hi1, hfrac = _bilinear_coeffs(H, H2)

    def kernel(patches_ref, y_ref, w3f_ref, w1y_ref, uwb_ref,
               alpha_ref, gamma_ref, beta_ref, o_ref):
        # (1) fused 3x3 conv (+ the "upsample half" of the 1x1 conv, folded into
        #     w3f in the wrapper): one (H*W, 9*Cin) @ (9*Cin, Cout) MXU matmul.
        c = jnp.dot(patches_ref[...], w3f_ref[...],
                    preferred_element_type=jnp.float32)              # (H*W, Cout) f32
        c3 = c.reshape(H, W, Cout).astype(mm_dtype)                  # leading-dim split

        # (2) separable bilinear upsample (align_corners=True).
        # (2a) width: batched matmul over the H axis, Uw pre-broadcast to (H, W2, W).
        s = jnp.einsum("hqw,hwc->hqc", uwb_ref[...], c3,
                       preferred_element_type=jnp.float32)           # (H, W2, Cout) f32
        # (2b) height: minimal 2-tap interpolation with static indices/weights (VPU).
        rows = []
        for p in range(H2):
            f = float(hfrac[p])
            r = s[int(hi0[p])]
            if f > 0.0:
                r = (1.0 - f) * r + f * s[int(hi1[p])]
            rows.append(r)
        up = jnp.stack(rows, axis=0).reshape(H2 * W2, Cout)          # leading-dim merge

        # (3) "y half" of the 1x1 conv -- no channel concatenation needed.
        zy = jnp.dot(y_ref[...], w1y_ref[...],
                     preferred_element_type=jnp.float32)             # (H2*W2, Cout) f32
        z = up + zy

        # (4) PReLU with a single shared alpha (scalar in SMEM).
        a = alpha_ref[0]
        z = jnp.where(z >= 0, z, a * z)

        # (5) channels-first LayerNorm over Cout; f32 statistics, rsqrt on the EUP.
        if use_norm:
            u = jnp.mean(z, axis=-1, keepdims=True)
            d = z - u
            v = jnp.mean(d * d, axis=-1, keepdims=True)
            z = d * jax.lax.rsqrt(v + eps)
            z = gamma_ref[...] * z + beta_ref[...]

        o_ref[...] = z.reshape(H2, W2, Cout).astype(o_ref.dtype)

    return kernel


# --------------------------------------------------------------------------
# wrapper
# --------------------------------------------------------------------------
@functools.partial(jax.jit, static_argnames=("scale", "use_norm", "eps", "mm_dtype"))
def norm_upsample(x, y, w3, w1, alpha, gamma, beta, *, scale=2,
                  use_norm=False, eps=1e-6, mm_dtype=jnp.float32):
    """x: (N, Cin, H, W), y: (N, Cout, scale*H, scale*W) -> (N, Cout, scale*H, scale*W)."""
    N, Cin, H, W = x.shape
    _, Cout, H2, W2 = y.shape
    assert H2 == scale * H and W2 == scale * W
    K9 = 9 * Cin

    # ---- layout glue + parameter folding (plain JAX, outside the kernel) ----
    # im2col patches (N, H*W, 9*Cin), tap order (kh, kw, ci): a single fused conv
    # matmul in the kernel instead of 9 shifted slice+reshape matmuls.
    x_nhwc = jnp.transpose(x, (0, 2, 3, 1))
    xpad = jnp.pad(x_nhwc, ((0, 0), (1, 1), (1, 1), (0, 0)))
    taps = [xpad[:, kh:kh + H, kw:kw + W, :] for kh in range(3) for kw in range(3)]
    patches = jnp.concatenate(taps, axis=-1).reshape(N, H * W, K9).astype(mm_dtype)

    y_flat = jnp.transpose(y, (0, 2, 3, 1)).reshape(N, H2 * W2, Cout).astype(mm_dtype)

    # Split the 1x1 conv; fold its "upsampled" half into the 3x3 conv weights
    # (the bilinear upsample is channel-independent, so the two ops commute).
    w1_up = jnp.transpose(w1[:, :Cout, 0, 0], (1, 0)).astype(jnp.float32)    # (Cout, Cout)
    w1_y = jnp.transpose(w1[:, Cout:, 0, 0], (1, 0)).astype(mm_dtype)        # (Cout, Cout)
    w3_k = jnp.transpose(w3, (2, 3, 1, 0)).astype(jnp.float32)               # (3,3,Cin,Cout)
    w3f = jnp.einsum("hwic,co->hwio", w3_k, w1_up).reshape(K9, Cout).astype(mm_dtype)

    # Separable bilinear: width operator, broadcast over H once in the wrapper so
    # the kernel's batched matmul needs no per-step broadcast.
    Uw = _bilinear_matrix(W, W2)                                             # (W2, W)
    uwb = jnp.broadcast_to(jnp.asarray(Uw, mm_dtype), (H, W2, W))

    alpha_v = jnp.asarray(alpha, jnp.float32).reshape(1)
    gamma_v = jnp.asarray(gamma, jnp.float32).reshape(1, Cout)
    beta_v = jnp.asarray(beta, jnp.float32).reshape(1, Cout)

    kernel = _make_kernel(H, W, Cin, Cout, H2, W2, use_norm, eps, mm_dtype)

    # Explicit VMEM budget: double-buffered per-image blocks + resident constants.
    per_step = (_padded_vmem_bytes((H * W, K9), mm_dtype)
                + _padded_vmem_bytes((H2 * W2, Cout), mm_dtype)
                + _padded_vmem_bytes((H2, W2, Cout), x.dtype))
    consts = (_padded_vmem_bytes((K9, Cout), mm_dtype)
              + _padded_vmem_bytes((Cout, Cout), mm_dtype)
              + _padded_vmem_bytes((H, W2, W), mm_dtype)
              + 2 * _padded_vmem_bytes((1, Cout), jnp.float32))
    vmem_limit = int(min(max(4 * per_step + 2 * consts + (8 << 20), 32 << 20), 64 << 20))

    # TODO(synk): for large H/W (esp. v7x's 64 MiB VMEM) add spatial row tiling on the
    # grid with a 1-row interpolation halo; one image per grid step is fine here.
    out_nhwc = pl.pallas_call(
        kernel,
        out_shape=jax.ShapeDtypeStruct((N, H2, W2, Cout), x.dtype),
        grid=(N,),
        in_specs=[
            pl.BlockSpec((None, H * W, K9), lambda n: (n, 0, 0)),
            pl.BlockSpec((None, H2 * W2, Cout), lambda n: (n, 0, 0)),
            pl.BlockSpec((K9, Cout), lambda n: (0, 0)),
            pl.BlockSpec((Cout, Cout), lambda n: (0, 0)),
            pl.BlockSpec((H, W2, W), lambda n: (0, 0, 0)),
            pl.BlockSpec((1,), lambda n: (0,),
                         memory_space=pltpu.MemorySpace.SMEM),
            pl.BlockSpec((1, Cout), lambda n: (0, 0)),
            pl.BlockSpec((1, Cout), lambda n: (0, 0)),
        ],
        out_specs=pl.BlockSpec((None, H2, W2, Cout), lambda n: (n, 0, 0, 0)),
        compiler_params=pltpu.CompilerParams(
            dimension_semantics=("parallel",),
            vmem_limit_bytes=vmem_limit),
    )(patches, y_flat, w3f, w1_y, uwb, alpha_v, gamma_v, beta_v)

    return jnp.transpose(out_nhwc, (0, 3, 1, 2))


# --------------------------------------------------------------------------
# pure-JAX reference (mirrors the PyTorch forward, NCHW)
# --------------------------------------------------------------------------
def _reference(x, y, w3, w1, alpha, gamma, beta, scale, use_norm, eps):
    N, Cin, H, W = x.shape
    _, Cout, H2, W2 = y.shape
    conv = jax.lax.conv_general_dilated(
        x, w3, window_strides=(1, 1), padding="SAME",
        dimension_numbers=("NCHW", "OIHW", "NCHW"))
    Uh = jnp.asarray(_bilinear_matrix(H, H2))
    Uw = jnp.asarray(_bilinear_matrix(W, W2))
    up = jnp.einsum("ph,qw,nchw->ncpq", Uh, Uw, conv)
    cat = jnp.concatenate([up, y], axis=1)
    z = jnp.einsum("nchw,oc->nohw", cat, w1[:, :, 0, 0])
    z = jnp.where(z >= 0, z, alpha * z)
    if use_norm:
        u = jnp.mean(z, axis=1, keepdims=True)
        s = jnp.mean((z - u) ** 2, axis=1, keepdims=True)
        z = (z - u) / jnp.sqrt(s + eps)
        z = gamma[None, :, None, None] * z + beta[None, :, None, None]
    return z


if __name__ == "__main__":
    # small shapes consistent with the module
    N, in_ch, out_ch, H, W, scale = 2, 4, 8, 16, 16, 2
    H2, W2 = scale * H, scale * W

    key = jax.random.PRNGKey(0)
    kx, ky, kw3, kw1 = jax.random.split(key, 4)
    x = jax.random.normal(kx, (N, in_ch, H, W), jnp.float32)
    y = jax.random.normal(ky, (N, out_ch, H2, W2), jnp.float32)

    # deterministic parameter init (module __init__ shapes)
    w3 = 0.1 * jax.random.normal(kw3, (out_ch, in_ch, 3, 3), jnp.float32)       # up_scale conv
    w1 = 0.1 * jax.random.normal(kw1, (out_ch, 2 * out_ch, 1, 1), jnp.float32)  # 1x1 "up" conv
    alpha = jnp.float32(0.25)                                                   # PReLU init
    gamma = jnp.ones((out_ch,), jnp.float32)                                    # LayerNorm weight
    beta = jnp.zeros((out_ch,), jnp.float32)                                    # LayerNorm bias

    for use_norm in (False, True):
        ref = _reference(x, y, w3, w1, alpha, gamma, beta, scale, use_norm, 1e-6)
        for mm_dtype, atol, rtol in ((jnp.float32, 2e-4, 2e-4),
                                     (jnp.bfloat16, 1.5e-1, 5e-2)):
            out = norm_upsample(x, y, w3, w1, alpha, gamma, beta,
                                scale=scale, use_norm=use_norm, mm_dtype=mm_dtype)
            out = jax.block_until_ready(out)
            assert out.shape == (N, out_ch, H2, W2)
            if not bool(jnp.allclose(out, ref, rtol=rtol, atol=atol)):
                raise AssertionError(
                    f"mismatch (use_norm={use_norm}, mm_dtype={mm_dtype}): "
                    f"max err {float(jnp.max(jnp.abs(out - ref)))}")

    print("KERNEL_OK")
</pallas_src>

<mosaic_0001>
module attributes {stable_mosaic.version = 11 : i64} {
  func.func @kernel(%arg0: i32, %arg1: memref<1x256x36xf32, #tpu.memory_space<vmem>>, %arg2: memref<1x1024x8xf32, #tpu.memory_space<vmem>>, %arg3: memref<36x8xf32, #tpu.memory_space<vmem>>, %arg4: memref<8x8xf32, #tpu.memory_space<vmem>>, %arg5: memref<16x32x16xf32, #tpu.memory_space<vmem>>, %arg6: memref<1xf32, #tpu.memory_space<smem>>, %arg7: memref<1x8xf32, #tpu.memory_space<vmem>>, %arg8: memref<1x8xf32, #tpu.memory_space<vmem>>, %arg9: memref<1x32x32x8xf32, #tpu.memory_space<vmem>>) attributes {dimension_semantics = [#tpu.dimension_semantics<parallel>], iteration_bounds = array<i64: 2>, scalar_prefetch = 0 : i64, scratch_operands = 0 : i64, tpu.core_type = #tpu.core_type<tc>, window_params = [{transform_indices = @transform_0, window_bounds = array<i64: 1, 256, 36>}, {transform_indices = @transform_1, window_bounds = array<i64: 1, 1024, 8>}, {pipeline_mode = #tpu.pipeline_mode<synchronous>, transform_indices = @transform_2, window_bounds = array<i64: 36, 8>}, {pipeline_mode = #tpu.pipeline_mode<synchronous>, transform_indices = @transform_3, window_bounds = array<i64: 8, 8>}, {pipeline_mode = #tpu.pipeline_mode<synchronous>, transform_indices = @transform_4, window_bounds = array<i64: 16, 32, 16>}, {transform_indices = @transform_5, window_bounds = array<i64: 1>}, {pipeline_mode = #tpu.pipeline_mode<synchronous>, transform_indices = @transform_6, window_bounds = array<i64: 1, 8>}, {pipeline_mode = #tpu.pipeline_mode<synchronous>, transform_indices = @transform_7, window_bounds = array<i64: 1, 8>}, {transform_indices = @transform_8, window_bounds = array<i64: 1, 32, 32, 8>}]} {
    %c0 = arith.constant 0 : index
    %c0_0 = arith.constant 0 : index
    %c0_1 = arith.constant 0 : index
    %0 = vector.load %arg1[%c0, %c0_0, %c0_1] : memref<1x256x36xf32, #tpu.memory_space<vmem>>, vector<1x256x36xf32>
    %1 = vector.shape_cast %0 : vector<1x256x36xf32> to vector<256x36xf32>
    %c0_2 = arith.constant 0 : index
    %c0_3 = arith.constant 0 : index
    %2 = vector.load %arg3[%c0_2, %c0_3] : memref<36x8xf32, #tpu.memory_space<vmem>>, vector<36x8xf32>
    %cst = arith.constant dense<0.000000e+00> : vector<256x8xf32>
    %3 = tpu.matmul %1, %2, %cst {dimension_numbers = #tpu.dot_dimension_numbers<[1], [0], [0], [1], [0, 0, 1, 1], [], []>} : vector<256x36xf32>, vector<36x8xf32>, vector<256x8xf32> -> vector<256x8xf32>
    %4 = vector.shape_cast %3 : vector<256x8xf32> to vector<16x16x8xf32>
    %c0_4 = arith.constant 0 : index
    %c0_5 = arith.constant 0 : index
    %c0_6 = arith.constant 0 : index
    %5 = vector.load %arg5[%c0_4, %c0_5, %c0_6] : memref<16x32x16xf32, #tpu.memory_space<vmem>>, vector<16x32x16xf32>
    "tpu.trace_start"() <{level = 10 : i32, message = "hqw,hwc->hqc"}> : () -> ()
    %cst_7 = arith.constant dense<0.000000e+00> : vector<16x32x8xf32>
    %6 = tpu.matmul %5, %4, %cst_7 {dimension_numbers = #tpu.dot_dimension_numbers<[2], [1], [1], [2], [0, 0, 0, 1, 1, 2], [0], [0]>} : vector<16x32x16xf32>, vector<16x16x8xf32>, vector<16x32x8xf32> -> vector<16x32x8xf32>
    "tpu.trace_stop"() : () -> ()
    %7 = vector.extract_strided_slice %6 {offsets = [0, 0, 0], sizes = [1, 32, 8], strides = [1, 1, 1]} : vector<16x32x8xf32> to vector<1x32x8xf32>
    %8 = vector.shape_cast %7 : vector<1x32x8xf32> to vector<32x8xf32>
    %9 = vector.extract_strided_slice %6 {offsets = [0, 0, 0], sizes = [1, 32, 8], strides = [1, 1, 1]} : vector<16x32x8xf32> to vector<1x32x8xf32>
    %10 = vector.shape_cast %9 : vector<1x32x8xf32> to vector<32x8xf32>
    %cst_8 = arith.constant 5.161290e-01 : f32
    %11 = vector.broadcast %cst_8 : f32 to vector<32x8xf32>
    %12 = arith.mulf %11, %10 : vector<32x8xf32>
    %13 = vector.extract_strided_slice %6 {offsets = [1, 0, 0], sizes = [1, 32, 8], strides = [1, 1, 1]} : vector<16x32x8xf32> to vector<1x32x8xf32>
    %14 = vector.shape_cast %13 : vector<1x32x8xf32> to vector<32x8xf32>
    %cst_9 = arith.constant 0.483870953 : f32
    %15 = vector.broadcast %cst_9 : f32 to vector<32x8xf32>
    %16 = arith.mulf %15, %14 : vector<32x8xf32>
    %17 = arith.addf %12, %16 : vector<32x8xf32>
    %18 = vector.extract_strided_slice %6 {offsets = [0, 0, 0], sizes = [1, 32, 8], strides = [1, 1, 1]} : vector<16x32x8xf32> to vector<1x32x8xf32>
    %19 = vector.shape_cast %18 : vector<1x32x8xf32> to vector<32x8xf32>
    %cst_10 = arith.constant 0.0322580636 : f32
    %20 = vector.broadcast %cst_10 : f32 to vector<32x8xf32>
    %21 = arith.mulf %20, %19 : vector<32x8xf32>
    %22 = vector.extract_strided_slice %6 {offsets = [1, 0, 0], sizes = [1, 32, 8], strides = [1, 1, 1]} : vector<16x32x8xf32> to vector<1x32x8xf32>
    %23 = vector.shape_cast %22 : vector<1x32x8xf32> to vector<32x8xf32>
    %cst_11 = arith.constant 0.967741906 : f32
    %24 = vector.broadcast %cst_11 : f32 to vector<32x8xf32>
    %25 = arith.mulf %24, %23 : vector<32x8xf32>
    %26 = arith.addf %21, %25 : vector<32x8xf32>
    %27 = vector.extract_strided_slice %6 {offsets = [1, 0, 0], sizes = [1, 32, 8], strides = [1, 1, 1]} : vector<16x32x8xf32> to vector<1x32x8xf32>
    %28 = vector.shape_cast %27 : vector<1x32x8xf32> to vector<32x8xf32>
    %cst_12 = arith.constant 0.54838711 : f32
    %29 = vector.broadcast %cst_12 : f32 to vector<32x8xf32>
    %30 = arith.mulf %29, %28 : vector<32x8xf32>
    %31 = vector.extract_strided_slice %6 {offsets = [2, 0, 0], sizes = [1, 32, 8], strides = [1, 1, 1]} : vector<16x32x8xf32> to vector<1x32x8xf32>
    %32 = vector.shape_cast %31 : vector<1x32x8xf32> to vector<32x8xf32>
    %cst_13 = arith.constant 0.45161289 : f32
    %33 = vector.broadcast %cst_13 : f32 to vector<32x8xf32>
    %34 = arith.mulf %33, %32 : vector<32x8xf32>
    %35 = arith.addf %30, %34 : vector<32x8xf32>
    %36 = vector.extract_strided_slice %6 {offsets = [1, 0, 0], sizes = [1, 32, 8], strides = [1, 1, 1]} : vector<16x32x8xf32> to vector<1x32x8xf32>
    %37 = vector.shape_cast %36 : vector<1x32x8xf32> to vector<32x8xf32>
    %cst_14 = arith.constant 0.0645161271 : f32
    %38 = vector.broadcast %cst_14 : f32 to vector<32x8xf32>
    %39 = arith.mulf %38, %37 : vector<32x8xf32>
    %40 = vector.extract_strided_slice %6 {offsets = [2, 0, 0], sizes = [1, 32, 8], strides = [1, 1, 1]} : vector<16x32x8xf32> to vector<1x32x8xf32>
    %41 = vector.shape_cast %40 : vector<1x32x8xf32> to vector<32x8xf32>
    %cst_15 = arith.constant 0.935483872 : f32
    %42 = vector.broadcast %cst_15 : f32 to vector<32x8xf32>
    %43 = arith.mulf %42, %41 : vector<32x8xf32>
    %44 = arith.addf %39, %43 : vector<32x8xf32>
    %45 = vector.extract_strided_slice %6 {offsets = [2, 0, 0], sizes = [1, 32, 8], strides = [1, 1, 1]} : vector<16x32x8xf32> to vector<1x32x8xf32>
    %46 = vector.shape_cast %45 : vector<1x32x8xf32> to vector<32x8xf32>
    %cst_16 = arith.constant 0.580645144 : f32
    %47 = vector.broadcast %cst_16 : f32 to vector<32x8xf32>
    %48 = arith.mulf %47, %46 : vector<32x8xf32>
    %49 = vector.extract_strided_slice %6 {offsets = [3, 0, 0], sizes = [1, 32, 8], strides = [1, 1, 1]} : vector<16x32x8xf32> to vector<1x32x8xf32>
    %50 = vector.shape_cast %49 : vector<1x32x8xf32> to vector<32x8xf32>
    %cst_17 = arith.constant 0.419354826 : f32
    %51 = vector.broadcast %cst_17 : f32 to vector<32x8xf32>
    %52 = arith.mulf %51, %50 : vector<32x8xf32>
    %53 = arith.addf %48, %52 : vector<32x8xf32>
    %54 = vector.extract_strided_slice %6 {offsets = [2, 0, 0], sizes = [1, 32, 8], strides = [1, 1, 1]} : vector<16x32x8xf32> to vector<1x32x8xf32>
    %55 = vector.shape_cast %54 : vector<1x32x8xf32> to vector<32x8xf32>
    %cst_18 = arith.constant 0.0967741906 : f32
    %56 = vector.broadcast %cst_18 : f32 to vector<32x8xf32>
    %57 = arith.mulf %56, %55 : vector<32x8xf32>
    %58 = vector.extract_strided_slice %6 {offsets = [3, 0, 0], sizes = [1, 32, 8], strides = [1, 1, 1]} : vector<16x32x8xf32> to vector<1x32x8xf32>
    %59 = vector.shape_cast %58 : vector<1x32x8xf32> to vector<32x8xf32>
    %cst_19 = arith.constant 0.903225779 : f32
    %60 = vector.broadcast %cst_19 : f32 to vector<32x8xf32>
    %61 = arith.mulf %60, %59 : vector<32x8xf32>
    %62 = arith.addf %57, %61 : vector<32x8xf32>
    %63 = vector.extract_strided_slice %6 {offsets = [3, 0, 0], sizes = [1, 32, 8], strides = [1, 1, 1]} : vector<16x32x8xf32> to vector<1x32x8xf32>
    %64 = vector.shape_cast %63 : vector<1x32x8xf32> to vector<32x8xf32>
    %cst_20 = arith.constant 0.612903237 : f32
    %65 = vector.broadcast %cst_20 : f32 to vector<32x8xf32>
    %66 = arith.mulf %65, %64 : vector<32x8xf32>
    %67 = vector.extract_strided_slice %6 {offsets = [4, 0, 0], sizes = [1, 32, 8], strides = [1, 1, 1]} : vector<16x32x8xf32> to vector<1x32x8xf32>
    %68 = vector.shape_cast %67 : vector<1x32x8xf32> to vector<32x8xf32>
    %cst_21 = arith.constant 0.387096763 : f32
    %69 = vector.broadcast %cst_21 : f32 to vector<32x8xf32>
    %70 = arith.mulf %69, %68 : vector<32x8xf32>
    %71 = arith.addf %66, %70 : vector<32x8xf32>
    %72 = vector.extract_strided_slice %6 {offsets = [3, 0, 0], sizes = [1, 32, 8], strides = [1, 1, 1]} : vector<16x32x8xf32> to vector<1x32x8xf32>
    %73 = vector.shape_cast %72 : vector<1x32x8xf32> to vector<32x8xf32>
    %cst_22 = arith.constant 0.129032254 : f32
    %74 = vector.broadcast %cst_22 : f32 to vector<32x8xf32>
    %75 = arith.mulf %74, %73 : vector<32x8xf32>
    %76 = vector.extract_strided_slice %6 {offsets = [4, 0, 0], sizes = [1, 32, 8], strides = [1, 1, 1]} : vector<16x32x8xf32> to vector<1x32x8xf32>
    %77 = vector.shape_cast %76 : vector<1x32x8xf32> to vector<32x8xf32>
    %cst_23 = arith.constant 0.870967745 : f32
    %78 = vector.broadcast %cst_23 : f32 to vector<32x8xf32>
    %79 = arith.mulf %78, %77 : vector<32x8xf32>
    %80 = arith.addf %75, %79 : vector<32x8xf32>
    %81 = vector.extract_strided_slice %6 {offsets = [4, 0, 0], sizes = [1, 32, 8], strides = [1, 1, 1]} : vector<16x32x8xf32> to vector<1x32x8xf32>
    %82 = vector.shape_cast %81 : vector<1x32x8xf32> to vector<32x8xf32>
    %cst_24 = arith.constant 0.645161271 : f32
    %83 = vector.broadcast %cst_24 : f32 to vector<32x8xf32>
    %84 = arith.mulf %83, %82 : vector<32x8xf32>
    %85 = vector.extract_strided_slice %6 {offsets = [5, 0, 0], sizes = [1, 32, 8], strides = [1, 1, 1]} : vector<16x32x8xf32> to vector<1x32x8xf32>
    %86 = vector.shape_cast %85 : vector<1x32x8xf32> to vector<32x8xf32>
    %cst_25 = arith.constant 0.354838699 : f32
    %87 = vector.broadcast %cst_25 : f32 to vector<32x8xf32>
    %88 = arith.mulf %87, %86 : vector<32x8xf32>
    %89 = arith.addf %84, %88 : vector<32x8xf32>
    %90 = vector.extract_strided_slice %6 {offsets = [4, 0, 0], sizes = [1, 32, 8], strides = [1, 1, 1]} : vector<16x32x8xf32> to vector<1x32x8xf32>
    %91 = vector.shape_cast %90 : vector<1x32x8xf32> to vector<32x8xf32>
    %cst_26 = arith.constant 0.161290318 : f32
    %92 = vector.broadcast %cst_26 : f32 to vector<32x8xf32>
    %93 = arith.mulf %92, %91 : vector<32x8xf32>
    %94 = vector.extract_strided_slice %6 {offsets = [5, 0, 0], sizes = [1, 32, 8], strides = [1, 1, 1]} : vector<16x32x8xf32> to vector<1x32x8xf32>
    %95 = vector.shape_cast %94 : vector<1x32x8xf32> to vector<32x8xf32>
    %cst_27 = arith.constant 0.838709652 : f32
    %96 = vector.broadcast %cst_27 : f32 to vector<32x8xf32>
    %97 = arith.mulf %96, %95 : vector<32x8xf32>
    %98 = arith.addf %93, %97 : vector<32x8xf32>
    %99 = vector.extract_strided_slice %6 {offsets = [5, 0, 0], sizes = [1, 32, 8], strides = [1, 1, 1]} : vector<16x32x8xf32> to vector<1x32x8xf32>
    %100 = vector.shape_cast %99 : vector<1x32x8xf32> to vector<32x8xf32>
    %cst_28 = arith.constant 0.677419364 : f32
    %101 = vector.broadcast %cst_28 : f32 to vector<32x8xf32>
    %102 = arith.mulf %101, %100 : vector<32x8xf32>
    %103 = vector.extract_strided_slice %6 {offsets = [6, 0, 0], sizes = [1, 32, 8], strides = [1, 1, 1]} : vector<16x32x8xf32> to vector<1x32x8xf32>
    %104 = vector.shape_cast %103 : vector<1x32x8xf32> to vector<32x8xf32>
    %cst_29 = arith.constant 0.322580636 : f32
    %105 = vector.broadcast %cst_29 : f32 to vector<32x8xf32>
    %106 = arith.mulf %105, %104 : vector<32x8xf32>
    %107 = arith.addf %102, %106 : vector<32x8xf32>
    %108 = vector.extract_strided_slice %6 {offsets = [5, 0, 0], sizes = [1, 32, 8], strides = [1, 1, 1]} : vector<16x32x8xf32> to vector<1x32x8xf32>
    %109 = vector.shape_cast %108 : vector<1x32x8xf32> to vector<32x8xf32>
    %cst_30 = arith.constant 0.193548381 : f32
    %110 = vector.broadcast %cst_30 : f32 to vector<32x8xf32>
    %111 = arith.mulf %110, %109 : vector<32x8xf32>
    %112 = vector.extract_strided_slice %6 {offsets = [6, 0, 0], sizes = [1, 32, 8], strides = [1, 1, 1]} : vector<16x32x8xf32> to vector<1x32x8xf32>
    %113 = vector.shape_cast %112 : vector<1x32x8xf32> to vector<32x8xf32>
    %cst_31 = arith.constant 0.806451618 : f32
    %114 = vector.broadcast %cst_31 : f32 to vector<32x8xf32>
    %115 = arith.mulf %114, %113 : vector<32x8xf32>
    %116 = arith.addf %111, %115 : vector<32x8xf32>
    %117 = vector.extract_strided_slice %6 {offsets = [6, 0, 0], sizes = [1, 32, 8], strides = [1, 1, 1]} : vector<16x32x8xf32> to vector<1x32x8xf32>
    %118 = vector.shape_cast %117 : vector<1x32x8xf32> to vector<32x8xf32>
    %cst_32 = arith.constant 0.709677398 : f32
    %119 = vector.broadcast %cst_32 : f32 to vector<32x8xf32>
    %120 = arith.mulf %119, %118 : vector<32x8xf32>
    %121 = vector.extract_strided_slice %6 {offsets = [7, 0, 0], sizes = [1, 32, 8], strides = [1, 1, 1]} : vector<16x32x8xf32> to vector<1x32x8xf32>
    %122 = vector.shape_cast %121 : vector<1x32x8xf32> to vector<32x8xf32>
    %cst_33 = arith.constant 0.290322572 : f32
    %123 = vector.broadcast %cst_33 : f32 to vector<32x8xf32>
    %124 = arith.mulf %123, %122 : vector<32x8xf32>
    %125 = arith.addf %120, %124 : vector<32x8xf32>
    %126 = vector.extract_strided_slice %6 {offsets = [6, 0, 0], sizes = [1, 32, 8], strides = [1, 1, 1]} : vector<16x32x8xf32> to vector<1x32x8xf32>
    %127 = vector.shape_cast %126 : vector<1x32x8xf32> to vector<32x8xf32>
    %cst_34 = arith.constant 0.225806445 : f32
    %128 = vector.broadcast %cst_34 : f32 to vector<32x8xf32>
    %129 = arith.mulf %128, %127 : vector<32x8xf32>
    %130 = vector.extract_strided_slice %6 {offsets = [7, 0, 0], sizes = [1, 32, 8], strides = [1, 1, 1]} : vector<16x32x8xf32> to vector<1x32x8xf32>
    %131 = vector.shape_cast %130 : vector<1x32x8xf32> to vector<32x8xf32>
    %cst_35 = arith.constant 0.774193525 : f32
    %132 = vector.broadcast %cst_35 : f32 to vector<32x8xf32>
    %133 = arith.mulf %132, %131 : vector<32x8xf32>
    %134 = arith.addf %129, %133 : vector<32x8xf32>
    %135 = vector.extract_strided_slice %6 {offsets = [7, 0, 0], sizes = [1, 32, 8], strides = [1, 1, 1]} : vector<16x32x8xf32> to vector<1x32x8xf32>
    %136 = vector.shape_cast %135 : vector<1x32x8xf32> to vector<32x8xf32>
    %cst_36 = arith.constant 0.741935492 : f32
    %137 = vector.broadcast %cst_36 : f32 to vector<32x8xf32>
    %138 = arith.mulf %137, %136 : vector<32x8xf32>
    %139 = vector.extract_strided_slice %6 {offsets = [8, 0, 0], sizes = [1, 32, 8], strides = [1, 1, 1]} : vector<16x32x8xf32> to vector<1x32x8xf32>
    %140 = vector.shape_cast %139 : vector<1x32x8xf32> to vector<32x8xf32>
    %cst_37 = arith.constant 0.258064508 : f32
    %141 = vector.broadcast %cst_37 : f32 to vector<32x8xf32>
    %142 = arith.mulf %141, %140 : vector<32x8xf32>
    %143 = arith.addf %138, %142 : vector<32x8xf32>
    %144 = vector.extract_strided_slice %6 {offsets = [7, 0, 0], sizes = [1, 32, 8], strides = [1, 1, 1]} : vector<16x32x8xf32> to vector<1x32x8xf32>
    %145 = vector.shape_cast %144 : vector<1x32x8xf32> to vector<32x8xf32>
    %cst_38 = arith.constant 0.258064508 : f32
    %146 = vector.broadcast %cst_38 : f32 to vector<32x8xf32>
    %147 = arith.mulf %146, %145 : vector<32x8xf32>
    %148 = vector.extract_strided_slice %6 {offsets = [8, 0, 0], sizes = [1, 32, 8], strides = [1, 1, 1]} : vector<16x32x8xf32> to vector<1x32x8xf32>
    %149 = vector.shape_cast %148 : vector<1x32x8xf32> to vector<32x8xf32>
    %cst_39 = arith.constant 0.741935492 : f32
    %150 = vector.broadcast %cst_39 : f32 to vector<32x8xf32>
    %151 = arith.mulf %150, %149 : vector<32x8xf32>
    %152 = arith.addf %147, %151 : vector<32x8xf32>
    %153 = vector.extract_strided_slice %6 {offsets = [8, 0, 0], sizes = [1, 32, 8], strides = [1, 1, 1]} : vector<16x32x8xf32> to vector<1x32x8xf32>
    %154 = vector.shape_cast %153 : vector<1x32x8xf32> to vector<32x8xf32>
    %cst_40 = arith.constant 0.774193525 : f32
    %155 = vector.broadcast %cst_40 : f32 to vector<32x8xf32>
    %156 = arith.mulf %155, %154 : vector<32x8xf32>
    %157 = vector.extract_strided_slice %6 {offsets = [9, 0, 0], sizes = [1, 32, 8], strides = [1, 1, 1]} : vector<16x32x8xf32> to vector<1x32x8xf32>
    %158 = vector.shape_cast %157 : vector<1x32x8xf32> to vector<32x8xf32>
    %cst_41 = arith.constant 0.225806445 : f32
    %159 = vector.broadcast %cst_41 : f32 to vector<32x8xf32>
    %160 = arith.mulf %159, %158 : vector<32x8xf32>
    %161 = arith.addf %156, %160 : vector<32x8xf32>
    %162 = vector.extract_strided_slice %6 {offsets = [8, 0, 0], sizes = [1, 32, 8], strides = [1, 1, 1]} : vector<16x32x8xf32> to vector<1x32x8xf32>
    %163 = vector.shape_cast %162 : vector<1x32x8xf32> to vector<32x8xf32>
    %cst_42 = arith.constant 0.290322572 : f32
    %164 = vector.broadcast %cst_42 : f32 to vector<32x8xf32>
    %165 = arith.mulf %164, %163 : vector<32x8xf32>
    %166 = vector.extract_strided_slice %6 {offsets = [9, 0, 0], sizes = [1, 32, 8], strides = [1, 1, 1]} : vector<16x32x8xf32> to vector<1x32x8xf32>
    %167 = vector.shape_cast %166 : vector<1x32x8xf32> to vector<32x8xf32>
    %cst_43 = arith.constant 0.709677398 : f32
    %168 = vector.broadcast %cst_43 : f32 to vector<32x8xf32>
    %169 = arith.mulf %168, %167 : vector<32x8xf32>
    %170 = arith.addf %165, %169 : vector<32x8xf32>
    %171 = vector.extract_strided_slice %6 {offsets = [9, 0, 0], sizes = [1, 32, 8], strides = [1, 1, 1]} : vector<16x32x8xf32> to vector<1x32x8xf32>
    %172 = vector.shape_cast %171 : vector<1x32x8xf32> to vector<32x8xf32>
    %cst_44 = arith.constant 0.806451618 : f32
    %173 = vector.broadcast %cst_44 : f32 to vector<32x8xf32>
    %174 = arith.mulf %173, %172 : vector<32x8xf32>
    %175 = vector.extract_strided_slice %6 {offsets = [10, 0, 0], sizes = [1, 32, 8], strides = [1, 1, 1]} : vector<16x32x8xf32> to vector<1x32x8xf32>
    %176 = vector.shape_cast %175 : vector<1x32x8xf32> to vector<32x8xf32>
    %cst_45 = arith.constant 0.193548381 : f32
    %177 = vector.broadcast %cst_45 : f32 to vector<32x8xf32>
    %178 = arith.mulf %177, %176 : vector<32x8xf32>
    %179 = arith.addf %174, %178 : vector<32x8xf32>
    %180 = vector.extract_strided_slice %6 {offsets = [9, 0, 0], sizes = [1, 32, 8], strides = [1, 1, 1]} : vector<16x32x8xf32> to vector<1x32x8xf32>
    %181 = vector.shape_cast %180 : vector<1x32x8xf32> to vector<32x8xf32>
    %cst_46 = arith.constant 0.322580636 : f32
    %182 = vector.broadcast %cst_46 : f32 to vector<32x8xf32>
    %183 = arith.mulf %182, %181 : vector<32x8xf32>
    %184 = vector.extract_strided_slice %6 {offsets = [10, 0, 0], sizes = [1, 32, 8], strides = [1, 1, 1]} : vector<16x32x8xf32> to vector<1x32x8xf32>
    %185 = vector.shape_cast %184 : vector<1x32x8xf32> to vector<32x8xf32>
    %cst_47 = arith.constant 0.677419364 : f32
    %186 = vector.broadcast %cst_47 : f32 to vector<32x8xf32>
    %187 = arith.mulf %186, %185 : vector<32x8xf32>
    %188 = arith.addf %183, %187 : vector<32x8xf32>
    %189 = vector.extract_strided_slice %6 {offsets = [10, 0, 0], sizes = [1, 32, 8], strides = [1, 1, 1]} : vector<16x32x8xf32> to vector<1x32x8xf32>
    %190 = vector.shape_cast %189 : vector<1x32x8xf32> to vector<32x8xf32>
    %cst_48 = arith.constant 0.838709652 : f32
    %191 = vector.broadcast %cst_48 : f32 to vector<32x8xf32>
    %192 = arith.mulf %191, %190 : vector<32x8xf32>
    %193 = vector.extract_strided_slice %6 {offsets = [11, 0, 0], sizes = [1, 32, 8], strides = [1, 1, 1]} : vector<16x32x8xf32> to vector<1x32x8xf32>
    %194 = vector.shape_cast %193 : vector<1x32x8xf32> to vector<32x8xf32>
    %cst_49 = arith.constant 0.161290318 : f32
    %195 = vector.broadcast %cst_49 : f32 to vector<32x8xf32>
    %196 = arith.mulf %195, %194 : vector<32x8xf32>
    %197 = arith.addf %192, %196 : vector<32x8xf32>
    %198 = vector.extract_strided_slice %6 {offsets = [10, 0, 0], sizes = [1, 32, 8], strides = [1, 1, 1]} : vector<16x32x8xf32> to vector<1x32x8xf32>
    %199 = vector.shape_cast %198 : vector<1x32x8xf32> to vector<32x8xf32>
    %cst_50 = arith.constant 0.354838699 : f32
    %200 = vector.broadcast %cst_50 : f32 to vector<32x8xf32>
    %201 = arith.mulf %200, %199 : vector<32x8xf32>
    %202 = vector.extract_strided_slice %6 {offsets = [11, 0, 0], sizes = [1, 32, 8], strides = [1, 1, 1]} : vector<16x32x8xf32> to vector<1x32x8xf32>
    %203 = vector.shape_cast %202 : vector<1x32x8xf32> to vector<32x8xf32>
    %cst_51 = arith.constant 0.645161271 : f32
    %204 = vector.broadcast %cst_51 : f32 to vector<32x8xf32>
    %205 = arith.mulf %204, %203 : vector<32x8xf32>
    %206 = arith.addf %201, %205 : vector<32x8xf32>
    %207 = vector.extract_strided_slice %6 {offsets = [11, 0, 0], sizes = [1, 32, 8], strides = [1, 1, 1]} : vector<16x32x8xf32> to vector<1x32x8xf32>
    %208 = vector.shape_cast %207 : vector<1x32x8xf32> to vector<32x8xf32>
    %cst_52 = arith.constant 0.870967745 : f32
    %209 = vector.broadcast %cst_52 : f32 to vector<32x8xf32>
    %210 = arith.mulf %209, %208 : vector<32x8xf32>
    %211 = vector.extract_strided_slice %6 {offsets = [12, 0, 0], sizes = [1, 32, 8], strides = [1, 1, 1]} : vector<16x32x8xf32> to vector<1x32x8xf32>
    %212 = vector.shape_cast %211 : vector<1x32x8xf32> to vector<32x8xf32>
    %cst_53 = arith.constant 0.129032254 : f32
    %213 = vector.broadcast %cst_53 : f32 to vector<32x8xf32>
    %214 = arith.mulf %213, %212 : vector<32x8xf32>
    %215 = arith.addf %210, %214 : vector<32x8xf32>
    %216 = vector.extract_strided_slice %6 {offsets = [11, 0, 0], sizes = [1, 32, 8], strides = [1, 1, 1]} : vector<16x32x8xf32> to vector<1x32x8xf32>
    %217 = vector.shape_cast %216 : vector<1x32x8xf32> to vector<32x8xf32>
    %cst_54 = arith.constant 0.387096763 : f32
    %218 = vector.broadcast %cst_54 : f32 to vector<32x8xf32>
    %219 = arith.mulf %218, %217 : vector<32x8xf32>
    %220 = vector.extract_strided_slice %6 {offsets = [12, 0, 0], sizes = [1, 32, 8], strides = [1, 1, 1]} : vector<16x32x8xf32> to vector<1x32x8xf32>
    %221 = vector.shape_cast %220 : vector<1x32x8xf32> to vector<32x8xf32>
    %cst_55 = arith.constant 0.612903237 : f32
    %222 = vector.broadcast %cst_55 : f32 to vector<32x8xf32>
    %223 = arith.mulf %222, %221 : vector<32x8xf32>
    %224 = arith.addf %219, %223 : vector<32x8xf32>
    %225 = vector.extract_strided_slice %6 {offsets = [12, 0, 0], sizes = [1, 32, 8], strides = [1, 1, 1]} : vector<16x32x8xf32> to vector<1x32x8xf32>
    %226 = vector.shape_cast %225 : vector<1x32x8xf32> to vector<32x8xf32>
    %cst_56 = arith.constant 0.903225779 : f32
    %227 = vector.broadcast %cst_56 : f32 to vector<32x8xf32>
    %228 = arith.mulf %227, %226 : vector<32x8xf32>
    %229 = vector.extract_strided_slice %6 {offsets = [13, 0, 0], sizes = [1, 32, 8], strides = [1, 1, 1]} : vector<16x32x8xf32> to vector<1x32x8xf32>
    %230 = vector.shape_cast %229 : vector<1x32x8xf32> to vector<32x8xf32>
    %cst_57 = arith.constant 0.0967741906 : f32
    %231 = vector.broadcast %cst_57 : f32 to vector<32x8xf32>
    %232 = arith.mulf %231, %230 : vector<32x8xf32>
    %233 = arith.addf %228, %232 : vector<32x8xf32>
    %234 = vector.extract_strided_slice %6 {offsets = [12, 0, 0], sizes = [1, 32, 8], strides = [1, 1, 1]} : vector<16x32x8xf32> to vector<1x32x8xf32>
    %235 = vector.shape_cast %234 : vector<1x32x8xf32> to vector<32x8xf32>
    %cst_58 = arith.constant 0.419354826 : f32
    %236 = vector.broadcast %cst_58 : f32 to vector<32x8xf32>
    %237 = arith.mulf %236, %235 : vector<32x8xf32>
    %238 = vector.extract_strided_slice %6 {offsets = [13, 0, 0], sizes = [1, 32, 8], strides = [1, 1, 1]} : vector<16x32x8xf32> to vector<1x32x8xf32>
    %239 = vector.shape_cast %238 : vector<1x32x8xf32> to vector<32x8xf32>
    %cst_59 = arith.constant 0.580645144 : f32
    %240 = vector.broadcast %cst_59 : f32 to vector<32x8xf32>
    %241 = arith.mulf %240, %239 : vector<32x8xf32>
    %242 = arith.addf %237, %241 : vector<32x8xf32>
    %243 = vector.extract_strided_slice %6 {offsets = [13, 0, 0], sizes = [1, 32, 8], strides = [1, 1, 1]} : vector<16x32x8xf32> to vector<1x32x8xf32>
    %244 = vector.shape_cast %243 : vector<1x32x8xf32> to vector<32x8xf32>
    %cst_60 = arith.constant 0.935483872 : f32
    %245 = vector.broadcast %cst_60 : f32 to vector<32x8xf32>
    %246 = arith.mulf %245, %244 : vector<32x8xf32>
    %247 = vector.extract_strided_slice %6 {offsets = [14, 0, 0], sizes = [1, 32, 8], strides = [1, 1, 1]} : vector<16x32x8xf32> to vector<1x32x8xf32>
    %248 = vector.shape_cast %247 : vector<1x32x8xf32> to vector<32x8xf32>
    %cst_61 = arith.constant 0.0645161271 : f32
    %249 = vector.broadcast %cst_61 : f32 to vector<32x8xf32>
    %250 = arith.mulf %249, %248 : vector<32x8xf32>
    %251 = arith.addf %246, %250 : vector<32x8xf32>
    %252 = vector.extract_strided_slice %6 {offsets = [13, 0, 0], sizes = [1, 32, 8], strides = [1, 1, 1]} : vector<16x32x8xf32> to vector<1x32x8xf32>
    %253 = vector.shape_cast %252 : vector<1x32x8xf32> to vector<32x8xf32>
    %cst_62 = arith.constant 0.45161289 : f32
    %254 = vector.broadcast %cst_62 : f32 to vector<32x8xf32>
    %255 = arith.mulf %254, %253 : vector<32x8xf32>
    %256 = vector.extract_strided_slice %6 {offsets = [14, 0, 0], sizes = [1, 32, 8], strides = [1, 1, 1]} : vector<16x32x8xf32> to vector<1x32x8xf32>
    %257 = vector.shape_cast %256 : vector<1x32x8xf32> to vector<32x8xf32>
    %cst_63 = arith.constant 0.54838711 : f32
    %258 = vector.broadcast %cst_63 : f32 to vector<32x8xf32>
    %259 = arith.mulf %258, %257 : vector<32x8xf32>
    %260 = arith.addf %255, %259 : vector<32x8xf32>
    %261 = vector.extract_strided_slice %6 {offsets = [14, 0, 0], sizes = [1, 32, 8], strides = [1, 1, 1]} : vector<16x32x8xf32> to vector<1x32x8xf32>
    %262 = vector.shape_cast %261 : vector<1x32x8xf32> to vector<32x8xf32>
    %cst_64 = arith.constant 0.967741906 : f32
    %263 = vector.broadcast %cst_64 : f32 to vector<32x8xf32>
    %264 = arith.mulf %263, %262 : vector<32x8xf32>
    %265 = vector.extract_strided_slice %6 {offsets = [15, 0, 0], sizes = [1, 32, 8], strides = [1, 1, 1]} : vector<16x32x8xf32> to vector<1x32x8xf32>
    %266 = vector.shape_cast %265 : vector<1x32x8xf32> to vector<32x8xf32>
    %cst_65 = arith.constant 0.0322580636 : f32
    %267 = vector.broadcast %cst_65 : f32 to vector<32x8xf32>
    %268 = arith.mulf %267, %266 : vector<32x8xf32>
    %269 = arith.addf %264, %268 : vector<32x8xf32>
    %270 = vector.extract_strided_slice %6 {offsets = [14, 0, 0], sizes = [1, 32, 8], strides = [1, 1, 1]} : vector<16x32x8xf32> to vector<1x32x8xf32>
    %271 = vector.shape_cast %270 : vector<1x32x8xf32> to vector<32x8xf32>
    %cst_66 = arith.constant 0.483870953 : f32
    %272 = vector.broadcast %cst_66 : f32 to vector<32x8xf32>
    %273 = arith.mulf %272, %271 : vector<32x8xf32>
    %274 = vector.extract_strided_slice %6 {offsets = [15, 0, 0], sizes = [1, 32, 8], strides = [1, 1, 1]} : vector<16x32x8xf32> to vector<1x32x8xf32>
    %275 = vector.shape_cast %274 : vector<1x32x8xf32> to vector<32x8xf32>
    %cst_67 = arith.constant 5.161290e-01 : f32
    %276 = vector.broadcast %cst_67 : f32 to vector<32x8xf32>
    %277 = arith.mulf %276, %275 : vector<32x8xf32>
    %278 = arith.addf %273, %277 : vector<32x8xf32>
    %279 = vector.extract_strided_slice %6 {offsets = [15, 0, 0], sizes = [1, 32, 8], strides = [1, 1, 1]} : vector<16x32x8xf32> to vector<1x32x8xf32>
    %280 = vector.shape_cast %279 : vector<1x32x8xf32> to vector<32x8xf32>
    %281 = vector.shape_cast %8 : vector<32x8xf32> to vector<1x32x8xf32>
    %282 = vector.shape_cast %17 : vector<32x8xf32> to vector<1x32x8xf32>
    %283 = vector.shape_cast %26 : vector<32x8xf32> to vector<1x32x8xf32>
    %284 = vector.shape_cast %35 : vector<32x8xf32> to vector<1x32x8xf32>
    %285 = vector.shape_cast %44 : vector<32x8xf32> to vector<1x32x8xf32>
    %286 = vector.shape_cast %53 : vector<32x8xf32> to vector<1x32x8xf32>
    %287 = vector.shape_cast %62 : vector<32x8xf32> to vector<1x32x8xf32>
    %288 = vector.shape_cast %71 : vector<32x8xf32> to vector<1x32x8xf32>
    %289 = vector.shape_cast %80 : vector<32x8xf32> to vector<1x32x8xf32>
    %290 = vector.shape_cast %89 : vector<32x8xf32> to vector<1x32x8xf32>
    %291 = vector.shape_cast %98 : vector<32x8xf32> to vector<1x32x8xf32>
    %292 = vector.shape_cast %107 : vector<32x8xf32> to vector<1x32x8xf32>
    %293 = vector.shape_cast %116 : vector<32x8xf32> to vector<1x32x8xf32>
    %294 = vector.shape_cast %125 : vector<32x8xf32> to vector<1x32x8xf32>
    %295 = vector.shape_cast %134 : vector<32x8xf32> to vector<1x32x8xf32>
    %296 = vector.shape_cast %143 : vector<32x8xf32> to vector<1x32x8xf32>
    %297 = vector.shape_cast %152 : vector<32x8xf32> to vector<1x32x8xf32>
    %298 = vector.shape_cast %161 : vector<32x8xf32> to vector<1x32x8xf32>
    %299 = vector.shape_cast %170 : vector<32x8xf32> to vector<1x32x8xf32>
    %300 = vector.shape_cast %179 : vector<32x8xf32> to vector<1x32x8xf32>
    %301 = vector.shape_cast %188 : vector<32x8xf32> to vector<1x32x8xf32>
    %302 = vector.shape_cast %197 : vector<32x8xf32> to vector<1x32x8xf32>
    %303 = vector.shape_cast %206 : vector<32x8xf32> to vector<1x32x8xf32>
    %304 = vector.shape_cast %215 : vector<32x8xf32> to vector<1x32x8xf32>
    %305 = vector.shape_cast %224 : vector<32x8xf32> to vector<1x32x8xf32>
    %306 = vector.shape_cast %233 : vector<32x8xf32> to vector<1x32x8xf32>
    %307 = vector.shape_cast %242 : vector<32x8xf32> to vector<1x32x8xf32>
    %308 = vector.shape_cast %251 : vector<32x8xf32> to vector<1x32x8xf32>
    %309 = vector.shape_cast %260 : vector<32x8xf32> to vector<1x32x8xf32>
    %310 = vector.shape_cast %269 : vector<32x8xf32> to vector<1x32x8xf32>
    %311 = vector.shape_cast %278 : vector<32x8xf32> to vector<1x32x8xf32>
    %312 = vector.shape_cast %280 : vector<32x8xf32> to vector<1x32x8xf32>
    %313 = tpu.concatenate %281, %282, %283, %284, %285, %286, %287, %288, %289, %290, %291, %292, %293, %294, %295, %296 in 0 : vector<1x32x8xf32>, vector<1x32x8xf32>, vector<1x32x8xf32>, vector<1x32x8xf32>, vector<1x32x8xf32>, vector<1x32x8xf32>, vector<1x32x8xf32>, vector<1x32x8xf32>, vector<1x32x8xf32>, vector<1x32x8xf32>, vector<1x32x8xf32>, vector<1x32x8xf32>, vector<1x32x8xf32>, vector<1x32x8xf32>, vector<1x32x8xf32>, vector<1x32x8xf32> -> vector<16x32x8xf32>
    %314 = tpu.concatenate %297, %298, %299, %300, %301, %302, %303, %304, %305, %306, %307, %308, %309, %310, %311, %312 in 0 : vector<1x32x8xf32>, vector<1x32x8xf32>, vector<1x32x8xf32>, vector<1x32x8xf32>, vector<1x32x8xf32>, vector<1x32x8xf32>, vector<1x32x8xf32>, vector<1x32x8xf32>, vector<1x32x8xf32>, vector<1x32x8xf32>, vector<1x32x8xf32>, vector<1x32x8xf32>, vector<1x32x8xf32>, vector<1x32x8xf32>, vector<1x32x8xf32>, vector<1x32x8xf32> -> vector<16x32x8xf32>
    %315 = tpu.concatenate %313, %314 in 0 : vector<16x32x8xf32>, vector<16x32x8xf32> -> vector<32x32x8xf32>
    %316 = vector.shape_cast %315 : vector<32x32x8xf32> to vector<1024x8xf32>
    %c0_68 = arith.constant 0 : index
    %c0_69 = arith.constant 0 : index
    %c0_70 = arith.constant 0 : index
    %317 = vector.load %arg2[%c0_68, %c0_69, %c0_70] : memref<1x1024x8xf32, #tpu.memory_space<vmem>>, vector<1x1024x8xf32>
    %318 = vector.shape_cast %317 : vector<1x1024x8xf32> to vector<1024x8xf32>
    %c0_71 = arith.constant 0 : index
    %c0_72 = arith.constant 0 : index
    %319 = vector.load %arg4[%c0_71, %c0_72] : memref<8x8xf32, #tpu.memory_space<vmem>>, vector<8x8xf32>
    %cst_73 = arith.constant dense<0.000000e+00> : vector<1024x8xf32>
    %320 = tpu.matmul %318, %319, %cst_73 {dimension_numbers = #tpu.dot_dimension_numbers<[1], [0], [0], [1], [0, 0, 1, 1], [], []>} : vector<1024x8xf32>, vector<8x8xf32>, vector<1024x8xf32> -> vector<1024x8xf32>
    %321 = arith.addf %316, %320 : vector<1024x8xf32>
    %c0_74 = arith.constant 0 : index
    %322 = memref.load %arg6[%c0_74] : memref<1xf32, #tpu.memory_space<smem>>
    %cst_75 = arith.constant 0.000000e+00 : f32
    %323 = vector.broadcast %cst_75 : f32 to vector<1024x8xf32>
    %324 = arith.cmpf oge, %321, %323 : vector<1024x8xf32>
    %325 = vector.broadcast %322 : f32 to vector<1024x8xf32>
    %326 = arith.mulf %325, %321 : vector<1024x8xf32>
    %327 = arith.select %324, %321, %326 : vector<1024x8xi1>, vector<1024x8xf32>
    %328 = vector.shape_cast %327 : vector<1024x8xf32> to vector<32x32x8xf32>
    %c0_76 = arith.constant 0 : index
    %c0_77 = arith.constant 0 : index
    %c0_78 = arith.constant 0 : index
    %c0_79 = arith.constant 0 : index
    %329 = vector.load %arg9[%c0_76, %c0_77, %c0_78, %c0_79] : memref<1x32x32x8xf32, #tpu.memory_space<vmem>>, vector<1x32x32x8xf32>
    %330 = vector.shape_cast %329 : vector<1x32x32x8xf32> to vector<32x32x8xf32>
    %331 = vector.shape_cast %328 : vector<32x32x8xf32> to vector<1x32x32x8xf32>
    tpu.vector_store %arg9[%c0_76, %c0_77, %c0_78, %c0_79], %331 {strides = array<i32>} : memref<1x32x32x8xf32, #tpu.memory_space<vmem>>, vector<1x32x32x8xf32>,
    return
  }
  func.func @transform_0(%arg0: i32) -> (i32, i32, i32) {
    %c0_i32 = arith.constant 0 : i32
    %c0_i32_0 = arith.constant 0 : i32
    %c0_i32_1 = arith.constant 0 : i32
    return %arg0, %c0_i32, %c0_i32_0 : i32, i32, i32
  }
  func.func @transform_1(%arg0: i32) -> (i32, i32, i32) {
    %c0_i32 = arith.constant 0 : i32
    %c0_i32_0 = arith.constant 0 : i32
    %c0_i32_1 = arith.constant 0 : i32
    return %arg0, %c0_i32, %c0_i32_0 : i32, i32, i32
  }
  func.func @transform_2(%arg0: i32) -> (i32, i32) {
    %c0_i32 = arith.constant 0 : i32
    %c0_i32_0 = arith.constant 0 : i32
    %c0_i32_1 = arith.constant 0 : i32
    return %c0_i32, %c0_i32_0 : i32, i32
  }
  func.func @transform_3(%arg0: i32) -> (i32, i32) {
    %c0_i32 = arith.constant 0 : i32
    %c0_i32_0 = arith.constant 0 : i32
    %c0_i32_1 = arith.constant 0 : i32
    return %c0_i32, %c0_i32_0 : i32, i32
  }
  func.func @transform_4(%arg0: i32) -> (i32, i32, i32) {
    %c0_i32 = arith.constant 0 : i32
    %c0_i32_0 = arith.constant 0 : i32
    %c0_i32_1 = arith.constant 0 : i32
    %c0_i32_2 = arith.constant 0 : i32
    return %c0_i32, %c0_i32_0, %c0_i32_1 : i32, i32, i32
  }
  func.func @transform_5(%arg0: i32) -> i32 {
    %c0_i32 = arith.constant 0 : i32
    %c0_i32_0 = arith.constant 0 : i32
    return %c0_i32 : i32
  }
  func.func @transform_6(%arg0: i32) -> (i32, i32) {
    %c0_i32 = arith.constant 0 : i32
    %c0_i32_0 = arith.constant 0 : i32
    %c0_i32_1 = arith.constant 0 : i32
    return %c0_i32, %c0_i32_0 : i32, i32
  }
  func.func @transform_7(%arg0: i32) -> (i32, i32) {
    %c0_i32 = arith.constant 0 : i32
    %c0_i32_0 = arith.constant 0 : i32
    %c0_i32_1 = arith.constant 0 : i32
    return %c0_i32, %c0_i32_0 : i32, i32
  }
  func.func @transform_8(%arg0: i32) -> (i32, i32, i32, i32) {
    %c0_i32 = arith.constant 0 : i32
    %c0_i32_0 = arith.constant 0 : i32
    %c0_i32_1 = arith.constant 0 : i32
    %c0_i32_2 = arith.constant 0 : i32
    return %arg0, %c0_i32, %c0_i32_0, %c0_i32_1 : i32, i32, i32, i32
  }
}

</mosaic_0001>

<llo_original>
// kernel: norm_upsample.1
$region0: #{norm_upsample.1}
  #allocation0 [shape = 'u32[]', space=smem, size = 0x4, offset = 0x4, fixed_abs, tag = 'smem constant byte address 0x4 - core index']
  #allocation1 [shape = 'u32[72,128]{1,0:T(1,128)}', space=vmem, size = 0x9000, scoped, tag = 'internal scratch']
  #allocation2 [shape = 'f32[1]{0:T(128)S(6)}', space=smem, size = 0x200, scoped, tag = 'scoped memory for norm_upsample.1']
  %s0 = inlined_call_operand.vmem [shape: f32[2,256,36], index: 0, kind: input, shape index: {}]
  %s1 = inlined_call_operand.vmem [shape: f32[2,1024,8], index: 1, kind: input, shape index: {}]
  %s2 = inlined_call_operand.vmem [shape: f32[36,8], index: 2, kind: input, shape index: {}]
  %s3 = inlined_call_operand.vmem [shape: f32[8,8], index: 3, kind: input, shape index: {}]
  %s4 = inlined_call_operand.vmem [shape: f32[16,32,16], index: 4, kind: input, shape index: {}]
  %s5 = inlined_call_operand.<no memory space> [shape: f32[1], index: 5, kind: input, shape index: {}]
  %s6 = inlined_call_operand.vmem [shape: f32[1,8], index: 6, kind: input, shape index: {}]
  %s7 = inlined_call_operand.vmem [shape: f32[1,8], index: 7, kind: input, shape index: {}]
  %s8 = inlined_call_operand.vmem [shape: f32[2,32,32,8], index: 8, kind: output, shape index: {}]
  %s9 = sld [smem:[#allocation0]]
  $region65: #{norm_upsample.1} parent=0
    _
  %s11 = ssub.s32 1, %s9
  %s12 = scalar_select 0, %s11, %s9
  %13 = sst [smem:[#allocation2]] %s5
  loop: start=0, step=1, limit=4
  $region2: #{norm_upsample.1} parent=0 // loop_pre_header
    _
  $region3: #{norm_upsample.1} parent=0 // loop_header
    %s15 = sphi 0, %s19
    %p16 = scmp.ge.s32.totalorder %s15, 4
    %s25 = sphi 0, %s27
    %s28 = sphi 0, %s25
    %s29 = sphi 0, %s28
    %s45 = sphi 0, %s29
    %s51 = sphi 0, %s53
    %s54 = sphi 0, %s51
    %s55 = sphi 0, %s54
    %s71 = sphi 0, %s55
    %s75 = sphi 0, %s75
    %s77 = sphi 0, %s75
    %s78 = sphi 0, %s77
    %s92 = sphi 0, %s78
    %s96 = sphi 0, %s96
    %s98 = sphi 0, %s96
    %s99 = sphi 0, %s98
    %s113 = sphi 0, %s99
    %s117 = sphi 0, %s117
    %s119 = sphi 0, %s117
    %s120 = sphi 0, %s119
    %s134 = sphi 0, %s120
    %s138 = sphi 0, %s138
    %s140 = sphi 0, %s138
    %s141 = sphi 0, %s140
    %s155 = sphi 0, %s141
    %s159 = sphi 0, %s159
    %s161 = sphi 0, %s159
    %s162 = sphi 0, %s161
    %s176 = sphi 0, %s162
    %s180 = sphi 0, %s180
    %s182 = sphi 0, %s180
    %s183 = sphi 0, %s182
    %s197 = sphi 0, %s183
    %s203 = sphi 0, %s205
    %s206 = sphi 0, %s203
    %s207 = sphi 0, %s206
    %s223 = sphi 0, %s207
  $region4: #{norm_upsample.1} parent=0 // loop_header_branch
    %18 = sbr.rel (%p16) target = $region8
  $region5: #{norm_upsample.1} parent=0 // loop_body
    %s20 = ssub.s32 %s15, 1
    %s21 = ssub.s32 %s15, 2
    %s22 = sadd.s32 %s15, 1
    %s23 = ssub.s32 %s15, %s22
    %p24 = scmp.eq.s32.totalorder %s23, 0
    %s26 = sadd.s32 %s25, 1
    %s27 = scalar_select %p24, %s25, %s26
    %p30 = pneg %p24
    %p31 = scmp.eq.s32.totalorder %s15, 1
    %p32 = por %p30, %p31
    %p33 = scmp.ne.s32.totalorder %s25, %s28
    %p34 = scmp.eq.s32.totalorder %s15, 0
    %p35 = por %p33, %p34
    %p36 = scmp.ne.s32.totalorder %s25, %s28
    %p37 = scmp.eq.s32.totalorder %s20, 1
    %p38 = por %p36, %p37
    %p39 = scmp.ne.s32.totalorder %s28, %s29
    %p40 = scmp.eq.s32.totalorder %s20, 0
    %p41 = por %p39, %p40
    %p42 = scmp.ne.s32.totalorder %s28, %s29
    %p43 = scmp.eq.s32.totalorder %s21, 1
    %p44 = por %p42, %p43
    %p46 = scmp.ne.s32.totalorder %s29, %s45
    %p47 = scmp.eq.s32.totalorder %s21, 0
    %p48 = por %p46, %p47
    %s49 = ssub.s32 %s15, %s22
    %p50 = scmp.eq.s32.totalorder %s49, 0
    %s52 = sadd.s32 %s51, 1
    %s53 = scalar_select %p50, %s51, %s52
    %p56 = pneg %p50
    %p57 = scmp.eq.s32.totalorder %s15, 1
    %p58 = por %p56, %p57
    %p59 = scmp.ne.s32.totalorder %s51, %s54
    %p60 = scmp.eq.s32.totalorder %s15, 0
    %p61 = por %p59, %p60
    %p62 = scmp.ne.s32.totalorder %s51, %s54
    %p63 = scmp.eq.s32.totalorder %s20, 1
    %p64 = por %p62, %p63
    %p65 = scmp.ne.s32.totalorder %s54, %s55
    %p66 = scmp.eq.s32.totalorder %s20, 0
    %p67 = por %p65, %p66
    %p68 = scmp.ne.s32.totalorder %s54, %s55
    %p69 = scmp.eq.s32.totalorder %s21, 1
    %p70 = por %p68, %p69
    %p72 = scmp.ne.s32.totalorder %s55, %s71
    %p73 = scmp.eq.s32.totalorder %s21, 0
    %p74 = por %p72, %p73
    %s76 = sadd.s32 %s75, 1
    %p79 = scmp.eq.s32.totalorder %s15, 1
    %p80 = scmp.ne.s32.totalorder %s75, %s77
    %p81 = scmp.eq.s32.totalorder %s15, 0
    %p82 = por %p80, %p81
    %p83 = scmp.ne.s32.totalorder %s75, %s77
    %p84 = scmp.eq.s32.totalorder %s20, 1
    %p85 = por %p83, %p84
    %p86 = scmp.ne.s32.totalorder %s77, %s78
    %p87 = scmp.eq.s32.totalorder %s20, 0
    %p88 = por %p86, %p87
    %p89 = scmp.ne.s32.totalorder %s77, %s78
    %p90 = scmp.eq.s32.totalorder %s21, 1
    %p91 = por %p89, %p90
    %p93 = scmp.ne.s32.totalorder %s78, %s92
    %p94 = scmp.eq.s32.totalorder %s21, 0
    %p95 = por %p93, %p94
    %s97 = sadd.s32 %s96, 1
    %p100 = scmp.eq.s32.totalorder %s15, 1
    %p101 = scmp.ne.s32.totalorder %s96, %s98
    %p102 = scmp.eq.s32.totalorder %s15, 0
    %p103 = por %p101, %p102
    %p104 = scmp.ne.s32.totalorder %s96, %s98
    %p105 = scmp.eq.s32.totalorder %s20, 1
    %p106 = por %p104, %p105
    %p107 = scmp.ne.s32.totalorder %s98, %s99
    %p108 = scmp.eq.s32.totalorder %s20, 0
    %p109 = por %p107, %p108
    %p110 = scmp.ne.s32.totalorder %s98, %s99
    %p111 = scmp.eq.s32.totalorder %s21, 1
    %p112 = por %p110, %p111
    %p114 = scmp.ne.s32.totalorder %s99, %s113
    %p115 = scmp.eq.s32.totalorder %s21, 0
    %p116 = por %p114, %p115
    %s118 = sadd.s32 %s117, 1
    %p121 = scmp.eq.s32.totalorder %s15, 1
    %p122 = scmp.ne.s32.totalorder %s117, %s119
    %p123 = scmp.eq.s32.totalorder %s15, 0
    %p124 = por %p122, %p123
    %p125 = scmp.ne.s32.totalorder %s117, %s119
    %p126 = scmp.eq.s32.totalorder %s20, 1
    %p127 = por %p125, %p126
    %p128 = scmp.ne.s32.totalorder %s119, %s120
    %p129 = scmp.eq.s32.totalorder %s20, 0
    %p130 = por %p128, %p129
    %p131 = scmp.ne.s32.totalorder %s119, %s120
    %p132 = scmp.eq.s32.totalorder %s21, 1
    %p133 = por %p131, %p132
    %p135 = scmp.ne.s32.totalorder %s120, %s134
    %p136 = scmp.eq.s32.totalorder %s21, 0
    %p137 = por %p135, %p136
    %s139 = sadd.s32 %s138, 1
    %p142 = scmp.eq.s32.totalorder %s15, 1
    %p143 = scmp.ne.s32.totalorder %s138, %s140
    %p144 = scmp.eq.s32.totalorder %s15, 0
    %p145 = por %p143, %p144
    %p146 = scmp.ne.s32.totalorder %s138, %s140
    %p147 = scmp.eq.s32.totalorder %s20, 1
    %p148 = por %p146, %p147
    %p149 = scmp.ne.s32.totalorder %s140, %s141
    %p150 = scmp.eq.s32.totalorder %s20, 0
    %p151 = por %p149, %p150
    %p152 = scmp.ne.s32.totalorder %s140, %s141
    %p153 = scmp.eq.s32.totalorder %s21, 1
    %p154 = por %p152, %p153
    %p156 = scmp.ne.s32.totalorder %s141, %s155
    %p157 = scmp.eq.s32.totalorder %s21, 0
    %p158 = por %p156, %p157
    %s160 = sadd.s32 %s159, 1
    %p163 = scmp.eq.s32.totalorder %s15, 1
    %p164 = scmp.ne.s32.totalorder %s159, %s161
    %p165 = scmp.eq.s32.totalorder %s15, 0
    %p166 = por %p164, %p165
    %p167 = scmp.ne.s32.totalorder %s159, %s161
    %p168 = scmp.eq.s32.totalorder %s20, 1
    %p169 = por %p167, %p168
    %p170 = scmp.ne.s32.totalorder %s161, %s162
    %p171 = scmp.eq.s32.totalorder %s20, 0
    %p172 = por %p170, %p171
    %p173 = scmp.ne.s32.totalorder %s161, %s162
    %p174 = scmp.eq.s32.totalorder %s21, 1
    %p175 = por %p173, %p174
    %p177 = scmp.ne.s32.totalorder %s162, %s176
    %p178 = scmp.eq.s32.totalorder %s21, 0
    %p179 = por %p177, %p178
    %s181 = sadd.s32 %s180, 1
    %p184 = scmp.eq.s32.totalorder %s15, 1
    %p185 = scmp.ne.s32.totalorder %s180, %s182
    %p186 = scmp.eq.s32.totalorder %s15, 0
    %p187 = por %p185, %p186
    %p188 = scmp.ne.s32.totalorder %s180, %s182
    %p189 = scmp.eq.s32.totalorder %s20, 1
    %p190 = por %p188, %p189
    %p191 = scmp.ne.s32.totalorder %s182, %s183
    %p192 = scmp.eq.s32.totalorder %s20, 0
    %p193 = por %p191, %p192
    %p194 = scmp.ne.s32.totalorder %s182, %s183
    %p195 = scmp.eq.s32.totalorder %s21, 1
    %p196 = por %p194, %p195
    %p198 = scmp.ne.s32.totalorder %s183, %s197
    %p199 = scmp.eq.s32.totalorder %s21, 0
    %p200 = por %p198, %p199
    %s201 = ssub.s32 %s15, %s22
    %p202 = scmp.eq.s32.totalorder %s201, 0
    %s204 = sadd.s32 %s203, 1
    %s205 = scalar_select %p202, %s203, %s204
    %p208 = pneg %p202
    %p209 = scmp.eq.s32.totalorder %s15, 1
    %p210 = por %p208, %p209
    %p211 = scmp.ne.s32.totalorder %s203, %s206
    %p212 = scmp.eq.s32.totalorder %s15, 0
    %p213 = por %p211, %p212
    %p214 = scmp.ne.s32.totalorder %s203, %s206
    %p215 = scmp.eq.s32.totalorder %s20, 1
    %p216 = por %p214, %p215
    %p217 = scmp.ne.s32.totalorder %s206, %s207
    %p218 = scmp.eq.s32.totalorder %s20, 0
    %p219 = por %p217, %p218
    %p220 = scmp.ne.s32.totalorder %s206, %s207
    %p221 = scmp.eq.s32.totalorder %s21, 1
    %p222 = por %p220, %p221
    %p224 = scmp.ne.s32.totalorder %s207, %s223
    %p225 = scmp.eq.s32.totalorder %s21, 0
    %p226 = por %p224, %p225
    %p227 = scmp.le.s32.totalorder 1, %s15
    %p228 = scmp.lt.s32.totalorder %s15, 3
    %p229 = pnand %p227, %p228
    %p230 = pneg %p229
    // Predicated region
    $region9: #{norm_upsample.1} parent=5 // pred_check
      _
    $region10: #{norm_upsample.1} parent=5 // pred_check_branch
      %232 = sbr.rel (%p229) target = $region12
    $region11: #{norm_upsample.1} parent=5 // pred_region
      %s233 = ssub.s32 %s15, 1
      // Predicated region
      $region13: #{norm_upsample.1} parent=11 // pred_check
        %p234 = pneg %p88
      $region14: #{norm_upsample.1} parent=11 // pred_check_branch
        %236 = sbr.rel (%p234) target = $region16
      $region15: #{norm_upsample.1} parent=11 // pred_region
        _
      $region16: #{norm_upsample.1} parent=11 // pred_fallthru
        _
      // Predicated region
      $region17: #{norm_upsample.1} parent=11 // pred_check
        %p237 = pneg %p109
      $region18: #{norm_upsample.1} parent=11 // pred_check_branch
        %239 = sbr.rel (%p237) target = $region20
      $region19: #{norm_upsample.1} parent=11 // pred_region
        _
      $region20: #{norm_upsample.1} parent=11 // pred_fallthru
        _
      // Predicated region
      $region21: #{norm_upsample.1} parent=11 // pred_check
        %p240 = pneg %p130
      $region22: #{norm_upsample.1} parent=11 // pred_check_branch
        %242 = sbr.rel (%p240) target = $region24
      $region23: #{norm_upsample.1} parent=11 // pred_region
        _
      $region24: #{norm_upsample.1} parent=11 // pred_fallthru
        _
      // Predicated region
      $region25: #{norm_upsample.1} parent=11 // pred_check
        %p243 = pneg %p151
      $region26: #{norm_upsample.1} parent=11 // pred_check_branch
        %245 = sbr.rel (%p243) target = $region28
      $region27: #{norm_upsample.1} parent=11 // pred_region
        _
      $region28: #{norm_upsample.1} parent=11 // pred_fallthru
        _
      // Predicated region
      $region29: #{norm_upsample.1} parent=11 // pred_check
        %p246 = pneg %p172
      $region30: #{norm_upsample.1} parent=11 // pred_check_branch
        %248 = sbr.rel (%p246) target = $region32
      $region31: #{norm_upsample.1} parent=11 // pred_region
        _
      $region32: #{norm_upsample.1} parent=11 // pred_fallthru
        _
      // Predicated region
      $region33: #{norm_upsample.1} parent=11 // pred_check
        %p249 = pneg %p193
      $region34: #{norm_upsample.1} parent=11 // pred_check_branch
        %251 = sbr.rel (%p249) target = $region36
      $region35: #{norm_upsample.1} parent=11 // pred_region
        _
      $region36: #{norm_upsample.1} parent=11 // pred_fallthru
        _
    $region12: #{norm_upsample.1} parent=5 // pred_fallthru
      _
    %p252 = scmp.lt.s32.totalorder %s15, 2
    // Predicated region
    $region37: #{norm_upsample.1} parent=5 // pred_check
      %p253 = pneg %p252
    $region38: #{norm_upsample.1} parent=5 // pred_check_branch
      %255 = sbr.rel (%p253) target = $region40
    $region39: #{norm_upsample.1} parent=5 // pred_region
      // Predicated region
      $region41: #{norm_upsample.1} parent=39 // pred_check
        %p256 = pneg %p35
      $region42: #{norm_upsample.1} parent=39 // pred_check_branch
        %258 = sbr.rel (%p256) target = $region44
      $region43: #{norm_upsample.1} parent=39 // pred_region
        %p259 = scmp.lt.s32.totalorder %s15, 1
        %s260 = scalar_select %p259, %s15, 1
        %s261 = smul.addr %s260, 32
        %s262 = smul.addr %s261, 8
        %s263 = scalar_lea.vmem %s0, %s262
      $region44: #{norm_upsample.1} parent=39 // pred_fallthru
        _
      // Predicated region
      $region45: #{norm_upsample.1} parent=39 // pred_check
        %p264 = pneg %p61
      $region46: #{norm_upsample.1} parent=39 // pred_check_branch
        %266 = sbr.rel (%p264) target = $region48
      $region47: #{norm_upsample.1} parent=39 // pred_region
        %p267 = scmp.lt.s32.totalorder %s15, 1
        %s268 = scalar_select %p267, %s15, 1
        %s269 = smul.addr %s268, 128
        %s270 = smul.addr %s269, 8
        %s271 = scalar_lea.vmem %s1, %s270
      $region48: #{norm_upsample.1} parent=39 // pred_fallthru
        _
    $region40: #{norm_upsample.1} parent=5 // pred_fallthru
      _
    %p272 = scmp.le.s32.totalorder 1, %s15
    %p273 = scmp.lt.s32.totalorder %s15, 3
    %p274 = pnand %p272, %p273
    %p275 = pneg %p274
    // Predicated region
    $region49: #{norm_upsample.1} parent=5 // pred_check
      _
    $region50: #{norm_upsample.1} parent=5 // pred_check_branch
      %277 = sbr.rel (%p274) target = $region52
    $region51: #{norm_upsample.1} parent=5 // pred_region
      %s278 = ssub.s32 %s15, 1
      %p279 = scmp.lt.s32.totalorder %s20, 1
      %s280 = scalar_select %p279, %s20, 1
      %s281 = smul.addr %s280, 32
      %s282 = smul.addr %s281, 8
      %s283 = scalar_lea.vmem %s0, %s282
      %p284 = pneg %p41
      %p285 = pneg %p38
      %p286 = scmp.lt.s32.totalorder %s20, 1
      %s287 = scalar_select %p286, %s20, 1
      %s288 = smul.addr %s287, 128
      %s289 = smul.addr %s288, 8
      %s290 = scalar_lea.vmem %s1, %s289
      %p291 = pneg %p67
      %p292 = pneg %p64
      %p293 = pneg %p88
      %p294 = pneg %p85
      %p295 = pneg %p109
      %p296 = pneg %p106
      %p297 = pneg %p130
      %p298 = pneg %p127
      %p299 = pneg %p151
      %p300 = pneg %p148
      %p301 = pneg %p172
      %p302 = pneg %p169
      %p303 = pneg %p193
      %p304 = pneg %p190
      %p305 = pneg %p219
      %p306 = pneg %p216
      %p307 = scmp.lt.s32.totalorder %s20, 1
      %s308 = scalar_select %p307, %s20, 1
      %s309 = smul.addr %s308, 128
      %s310 = smul.addr %s309, 8
      %s311 = scalar_lea.vmem %s8, %s310
      %p312 = scmp.lt.s32.totalorder %s20, 1
      %s313 = scalar_select %p312, %s20, 1
      %s314 = smul.addr %s313, 32
      %s315 = smul.addr %s314, 8
      %s316 = scalar_lea.vmem %s0, %s315
      %p317 = scmp.lt.s32.totalorder %s20, 1
      %s318 = scalar_select %p317, %s20, 1
      %s319 = smul.addr %s318, 128
      %s320 = smul.addr %s319, 8
      %s321 = scalar_lea.vmem %s1, %s320
      %p322 = scmp.lt.s32.totalorder %s20, 1
      %s323 = scalar_select %p322, %s20, 1
      %s324 = smul.addr %s323, 128
      %s325 = smul.addr %s324, 8
      %s326 = scalar_lea.vmem %s8, %s325
      %v327 = vld [vmem:[%s316] sm:$0xff]
      %v328 = vld [vmem:[%s316 + $0x8] sm:$0xff]
      %v329 = vld [vmem:[%s316 + $0x10] sm:$0xff]
      %v330 = vld [vmem:[%s316 + $0x18] sm:$0xff]
      %v331 = vld [vmem:[%s316 + $0x20] sm:$0xff]
      %v332 = vld [vmem:[%s316 + $0x28] sm:$0xff]
      %v333 = vld [vmem:[%s316 + $0x30] sm:$0xff]
      %v334 = vld [vmem:[%s316 + $0x38] sm:$0xff]
      %v335 = vld [vmem:[%s316 + $0x40] sm:$0xff]
      %v336 = vld [vmem:[%s316 + $0x48] sm:$0xff]
      %v337 = vld [vmem:[%s316 + $0x50] sm:$0xff]
      %v338 = vld [vmem:[%s316 + $0x58] sm:$0xff]
      %v339 = vld [vmem:[%s316 + $0x60] sm:$0xff]
      %v340 = vld [vmem:[%s316 + $0x68] sm:$0xff]
      %v341 = vld [vmem:[%s316 + $0x70] sm:$0xff]
      %v342 = vld [vmem:[%s316 + $0x78] sm:$0xff]
      %v343 = vld [vmem:[%s316 + $0x80] sm:$0xff]
      %v344 = vld [vmem:[%s316 + $0x88] sm:$0xff]
      %v345 = vld [vmem:[%s316 + $0x90] sm:$0xff]
      %v346 = vld [vmem:[%s316 + $0x98] sm:$0xff]
      %v347 = vld [vmem:[%s316 + $0xa0] sm:$0xff]
      %v348 = vld [vmem:[%s316 + $0xa8] sm:$0xff]
      %v349 = vld [vmem:[%s316 + $0xb0] sm:$0xff]
      %v350 = vld [vmem:[%s316 + $0xb8] sm:$0xff]
      %v351 = vld [vmem:[%s316 + $0xc0] sm:$0xff]
      %v352 = vld [vmem:[%s316 + $0xc8] sm:$0xff]
      %v353 = vld [vmem:[%s316 + $0xd0] sm:$0xff]
      %v354 = vld [vmem:[%s316 + $0xd8] sm:$0xff]
      %v355 = vld [vmem:[%s316 + $0xe0] sm:$0xff]
      %v356 = vld [vmem:[%s316 + $0xe8] sm:$0xff]
      %v357 = vld [vmem:[%s316 + $0xf0] sm:$0xff]
      %v358 = vld [vmem:[%s316 + $0xf8] sm:$0xff]
      %v359 = vld [vmem:[%s2] sm:$0xff]
      %v360 = vld [vmem:[%s2 + $0x8] sm:$0xff]
      %v361 = vld [vmem:[%s2 + $0x10] sm:$0xff]
      %v362 = vld [vmem:[%s2 + $0x18] sm:$0xff]
      %v363 = vld [vmem:[%s2 + $0x20] sm:$0xf]
      %vm364 = vcmask 293888
      %v366 = vsel %vm364, %v327, 0
      %v369 = vsel %vm364, %v328, 0
      %v372 = vsel %vm364, %v329, 0
      %v375 = vsel %vm364, %v330, 0
      %v378 = vsel %vm364, %v331, 0
      %v381 = vsel %vm364, %v332, 0
      %v384 = vsel %vm364, %v333, 0
      %v387 = vsel %vm364, %v334, 0
      %v390 = vsel %vm364, %v335, 0
      %v393 = vsel %vm364, %v336, 0
      %v396 = vsel %vm364, %v337, 0
      %v399 = vsel %vm364, %v338, 0
      %v402 = vsel %vm364, %v339, 0
      %v405 = vsel %vm364, %v340, 0
      %v408 = vsel %vm364, %v341, 0
      %v411 = vsel %vm364, %v342, 0
      %v414 = vsel %vm364, %v343, 0
      %v417 = vsel %vm364, %v344, 0
      %v420 = vsel %vm364, %v345, 0
      %v423 = vsel %vm364, %v346, 0
      %v426 = vsel %vm364, %v347, 0
      %v429 = vsel %vm364, %v348, 0
      %v432 = vsel %vm364, %v349, 0
      %v435 = vsel %vm364, %v350, 0
      %v438 = vsel %vm364, %v351, 0
      %v441 = vsel %vm364, %v352, 0
      %v444 = vsel %vm364, %v353, 0
      %v447 = vsel %vm364, %v354, 0
      %v450 = vsel %vm364, %v355, 0
      %v453 = vsel %vm364, %v356, 0
      %v456 = vsel %vm364, %v357, 0
      %v459 = vsel %vm364, %v358, 0
      %vm461 = vcmask 1043456
      %v463 = vsel %vm461, %v363, 0
      %465 = vmatpush.msra.mxu0 0.0
      %466 = vmatpush.msra.mxu0 0.0
      %467 = vmatpush.msra.mxu0 0.0
      %468 = vmatpush.msra.mxu0 0.0
      %469 = vmatpush.msra.mxu0 0.0
      %470 = vmatpush.msra.mxu0 0.0
      %471 = vmatpush.msra.mxu0 0.0
      %472 = vmatpush.msra.mxu0 0.0
      %473 = vmatpush.msra.mxu0 0.0
      %474 = vmatpush.msra.mxu0 0.0
      %475 = vmatpush.msra.mxu0 0.0
      %476 = vmatpush.msra.mxu0 %v463
      %477 = vmatpush.msra.mxu0 %v362
      %478 = vmatpush.msra.mxu0 %v361
      %479 = vmatpush.msra.mxu0 %v360
      %480 = vmatpush.msra.mxu0 %v359
      %481 = vmatmul.f32.gmra.mxu0 %v366
      %v482 = vpop.f32.mrf.mxu0
      %v483 = vadd.f32 0.0, %v482
      %484 = vmatmul.f32.gmra.mxu0 %v369
      %v485 = vpop.f32.mrf.mxu0
      %v486 = vadd.f32 0.0, %v485
      %487 = vmatmul.f32.gmra.mxu0 %v372
      %v488 = vpop.f32.mrf.mxu0
      %v489 = vadd.f32 0.0, %v488
      %490 = vmatmul.f32.gmra.mxu0 %v375
      %v491 = vpop.f32.mrf.mxu0
      %v492 = vadd.f32 0.0, %v491
      %493 = vmatmul.f32.gmra.mxu0 %v378
      %v494 = vpop.f32.mrf.mxu0
      %v495 = vadd.f32 0.0, %v494
      %496 = vmatmul.f32.gmra.mxu0 %v381
      %v497 = vpop.f32.mrf.mxu0
      %v498 = vadd.f32 0.0, %v497
      %499 = vmatmul.f32.gmra.mxu0 %v384
      %v500 = vpop.f32.mrf.mxu0
      %v501 = vadd.f32 0.0, %v500
      %502 = vmatmul.f32.gmra.mxu0 %v387
      %v503 = vpop.f32.mrf.mxu0
      %v504 = vadd.f32 0.0, %v503
      %505 = vmatmul.f32.gmra.mxu0 %v390
      %v506 = vpop.f32.mrf.mxu0
      %v507 = vadd.f32 0.0, %v506
      %508 = vmatmul.f32.gmra.mxu0 %v393
      %v509 = vpop.f32.mrf.mxu0
      %v510 = vadd.f32 0.0, %v509
      %511 = vmatmul.f32.gmra.mxu0 %v396
      %v512 = vpop.f32.mrf.mxu0
      %v513 = vadd.f32 0.0, %v512
      %514 = vmatmul.f32.gmra.mxu0 %v399
      %v515 = vpop.f32.mrf.mxu0
      %v516 = vadd.f32 0.0, %v515
      %517 = vmatmul.f32.gmra.mxu0 %v402
      %v518 = vpop.f32.mrf.mxu0
      %v519 = vadd.f32 0.0, %v518
      %520 = vmatmul.f32.gmra.mxu0 %v405
      %v521 = vpop.f32.mrf.mxu0
      %v522 = vadd.f32 0.0, %v521
      %523 = vmatmul.f32.gmra.mxu0 %v408
      %v524 = vpop.f32.mrf.mxu0
      %v525 = vadd.f32 0.0, %v524
      %526 = vmatmul.f32.gmra.mxu0 %v411
      %v527 = vpop.f32.mrf.mxu0
      %v528 = vadd.f32 0.0, %v527
      %529 = vmatmul.f32.gmra.mxu0 %v414
      %v530 = vpop.f32.mrf.mxu0
      %v531 = vadd.f32 0.0, %v530
      %532 = vmatmul.f32.gmra.mxu0 %v417
      %v533 = vpop.f32.mrf.mxu0
      %v534 = vadd.f32 0.0, %v533
      %535 = vmatmul.f32.gmra.mxu0 %v420
      %v536 = vpop.f32.mrf.mxu0
      %v537 = vadd.f32 0.0, %v536
      %538 = vmatmul.f32.gmra.mxu0 %v423
      %v539 = vpop.f32.mrf.mxu0
      %v540 = vadd.f32 0.0, %v539
      %541 = vmatmul.f32.gmra.mxu0 %v426
      %v542 = vpop.f32.mrf.mxu0
      %v543 = vadd.f32 0.0, %v542
      %544 = vmatmul.f32.gmra.mxu0 %v429
      %v545 = vpop.f32.mrf.mxu0
      %v546 = vadd.f32 0.0, %v545
      %547 = vmatmul.f32.gmra.mxu0 %v432
      %v548 = vpop.f32.mrf.mxu0
      %v549 = vadd.f32 0.0, %v548
      %550 = vmatmul.f32.gmra.mxu0 %v435
      %v551 = vpop.f32.mrf.mxu0
      %v552 = vadd.f32 0.0, %v551
      %553 = vmatmul.f32.gmra.mxu0 %v438
      %v554 = vpop.f32.mrf.mxu0
      %v555 = vadd.f32 0.0, %v554
      %556 = vmatmul.f32.gmra.mxu0 %v441
      %v557 = vpop.f32.mrf.mxu0
      %v558 = vadd.f32 0.0, %v557
      %559 = vmatmul.f32.gmra.mxu0 %v444
      %v560 = vpop.f32.mrf.mxu0
      %v561 = vadd.f32 0.0, %v560
      %562 = vmatmul.f32.gmra.mxu0 %v447
      %v563 = vpop.f32.mrf.mxu0
      %v564 = vadd.f32 0.0, %v563
      %565 = vmatmul.f32.gmra.mxu0 %v450
      %v566 = vpop.f32.mrf.mxu0
      %v567 = vadd.f32 0.0, %v566
      %568 = vmatmul.f32.gmra.mxu0 %v453
      %v569 = vpop.f32.mrf.mxu0
      %v570 = vadd.f32 0.0, %v569
      %571 = vmatmul.f32.gmra.mxu0 %v456
      %v572 = vpop.f32.mrf.mxu0
      %v573 = vadd.f32 0.0, %v572
      %574 = vmatmul.f32.gmra.mxu0 %v459
      %v575 = vpop.f32.mrf.mxu0
      %v576 = vadd.f32 0.0, %v575
      %577 = vdwg.mxu0
      %v578 = vld [vmem:[%s4] sm:$0xff]
      %v579 = vld [vmem:[%s4 + $0x8] sm:$0xff]
      %v580 = vld [vmem:[%s4 + $0x10] sm:$0xff]
      %v581 = vld [vmem:[%s4 + $0x18] sm:$0xff]
      %v582 = vld [vmem:[%s4 + $0x20] sm:$0xff]
      %v583 = vld [vmem:[%s4 + $0x28] sm:$0xff]
      %v584 = vld [vmem:[%s4 + $0x30] sm:$0xff]
      %v585 = vld [vmem:[%s4 + $0x38] sm:$0xff]
      %v586 = vld [vmem:[%s4 + $0x40] sm:$0xff]
      %v587 = vld [vmem:[%s4 + $0x48] sm:$0xff]
      %v588 = vld [vmem:[%s4 + $0x50] sm:$0xff]
      %v589 = vld [vmem:[%s4 + $0x58] sm:$0xff]
      %v590 = vld [vmem:[%s4 + $0x60] sm:$0xff]
      %v591 = vld [vmem:[%s4 + $0x68] sm:$0xff]
      %v592 = vld [vmem:[%s4 + $0x70] sm:$0xff]
      %v593 = vld [vmem:[%s4 + $0x78] sm:$0xff]
      %v594 = vld [vmem:[%s4 + $0x80] sm:$0xff]
      %v595 = vld [vmem:[%s4 + $0x88] sm:$0xff]
      %v596 = vld [vmem:[%s4 + $0x90] sm:$0xff]
      %v597 = vld [vmem:[%s4 + $0x98] sm:$0xff]
      %v598 = vld [vmem:[%s4 + $0xa0] sm:$0xff]
      %v599 = vld [vmem:[%s4 + $0xa8] sm:$0xff]
      %v600 = vld [vmem:[%s4 + $0xb0] sm:$0xff]
      %v601 = vld [vmem:[%s4 + $0xb8] sm:$0xff]
      %v602 = vld [vmem:[%s4 + $0xc0] sm:$0xff]
      %v603 = vld [vmem:[%s4 + $0xc8] sm:$0xff]
      %v604 = vld [vmem:[%s4 + $0xd0] sm:$0xff]
      %v605 = vld [vmem:[%s4 + $0xd8] sm:$0xff]
      %v606 = vld [vmem:[%s4 + $0xe0] sm:$0xff]
      %v607 = vld [vmem:[%s4 + $0xe8] sm:$0xff]
      %v608 = vld [vmem:[%s4 + $0xf0] sm:$0xff]
      %v609 = vld [vmem:[%s4 + $0xf8] sm:$0xff]
      %v610 = vld [vmem:[%s4 + $0x100] sm:$0xff]
      %v611 = vld [vmem:[%s4 + $0x108] sm:$0xff]
      %v612 = vld [vmem:[%s4 + $0x110] sm:$0xff]
      %v613 = vld [vmem:[%s4 + $0x118] sm:$0xff]
      %v614 = vld [vmem:[%s4 + $0x120] sm:$0xff]
      %v615 = vld [vmem:[%s4 + $0x128] sm:$0xff]
      %v616 = vld [vmem:[%s4 + $0x130] sm:$0xff]
      %v617 = vld [vmem:[%s4 + $0x138] sm:$0xff]
      %v618 = vld [vmem:[%s4 + $0x140] sm:$0xff]
      %v619 = vld [vmem:[%s4 + $0x148] sm:$0xff]
      %v620 = vld [vmem:[%s4 + $0x150] sm:$0xff]
      %v621 = vld [vmem:[%s4 + $0x158] sm:$0xff]
      %v622 = vld [vmem:[%s4 + $0x160] sm:$0xff]
      %v623 = vld [vmem:[%s4 + $0x168] sm:$0xff]
      %v624 = vld [vmem:[%s4 + $0x170] sm:$0xff]
      %v625 = vld [vmem:[%s4 + $0x178] sm:$0xff]
      %v626 = vld [vmem:[%s4 + $0x180] sm:$0xff]
      %v627 = vld [vmem:[%s4 + $0x188] sm:$0xff]
      %v628 = vld [vmem:[%s4 + $0x190] sm:$0xff]
      %v629 = vld [vmem:[%s4 + $0x198] sm:$0xff]
      %v630 = vld [vmem:[%s4 + $0x1a0] sm:$0xff]
      %v631 = vld [vmem:[%s4 + $0x1a8] sm:$0xff]
      %v632 = vld [vmem:[%s4 + $0x1b0] sm:$0xff]
      %v633 = vld [vmem:[%s4 + $0x1b8] sm:$0xff]
      %v634 = vld [vmem:[%s4 + $0x1c0] sm:$0xff]
      %v635 = vld [vmem:[%s4 + $0x1c8] sm:$0xff]
      %v636 = vld [vmem:[%s4 + $0x1d0] sm:$0xff]
      %v637 = vld [vmem:[%s4 + $0x1d8] sm:$0xff]
      %v638 = vld [vmem:[%s4 + $0x1e0] sm:$0xff]
      %v639 = vld [vmem:[%s4 + $0x1e8] sm:$0xff]
      %v640 = vld [vmem:[%s4 + $0x1f0] sm:$0xff]
      %v641 = vld [vmem:[%s4 + $0x1f8] sm:$0xff]
      %vm642 = vcmask 130048
      %v644 = vsel %vm642, %v578, 0
      %v647 = vsel %vm642, %v579, 0
      %v650 = vsel %vm642, %v580, 0
      %v653 = vsel %vm642, %v581, 0
      %655 = vmatpush.msra.mxu0 0.0
      %656 = vmatpush.msra.mxu0 0.0
      %657 = vmatpush.msra.mxu0 0.0
      %658 = vmatpush.msra.mxu0 0.0
      %659 = vmatpush.msra.mxu0 0.0
      %660 = vmatpush.msra.mxu0 0.0
      %661 = vmatpush.msra.mxu0 0.0
      %662 = vmatpush.msra.mxu0 0.0
      %663 = vmatpush.msra.mxu0 0.0
      %664 = vmatpush.msra.mxu0 0.0
      %665 = vmatpush.msra.mxu0 0.0
      %666 = vmatpush.msra.mxu0 0.0
      %667 = vmatpush.msra.mxu0 0.0
      %668 = vmatpush.msra.mxu0 0.0
      %669 = vmatpush.msra.mxu0 %v486
      %670 = vmatpush.msra.mxu0 %v483
      %671 = vmatmul.f32.gmra.mxu0 %v644
      %v672 = vpop.f32.mrf.mxu0
      %v673 = vadd.f32 0.0, %v672
      %674 = vmatmul.f32.gmra.mxu0 %v647
      %v675 = vpop.f32.mrf.mxu0
      %v676 = vadd.f32 0.0, %v675
      %677 = vmatmul.f32.gmra.mxu0 %v650
      %v678 = vpop.f32.mrf.mxu0
      %v679 = vadd.f32 0.0, %v678
      %680 = vmatmul.f32.gmra.mxu0 %v653
      %v681 = vpop.f32.mrf.mxu0
      %v682 = vadd.f32 0.0, %v681
      %683 = vdwg.mxu0
      %v685 = vsel %vm642, %v582, 0
      %v688 = vsel %vm642, %v583, 0
      %v691 = vsel %vm642, %v584, 0
      %v694 = vsel %vm642, %v585, 0
      %696 = vmatpush.msra.mxu0 0.0
      %697 = vmatpush.msra.mxu0 0.0
      %698 = vmatpush.msra.mxu0 0.0
      %699 = vmatpush.msra.mxu0 0.0
      %700 = vmatpush.msra.mxu0 0.0
      %701 = vmatpush.msra.mxu0 0.0
      %702 = vmatpush.msra.mxu0 0.0
      %703 = vmatpush.msra.mxu0 0.0
      %704 = vmatpush.msra.mxu0 0.0
      %705 = vmatpush.msra.mxu0 0.0
      %706 = vmatpush.msra.mxu0 0.0
      %707 = vmatpush.msra.mxu0 0.0
      %708 = vmatpush.msra.mxu0 0.0
      %709 = vmatpush.msra.mxu0 0.0
      %710 = vmatpush.msra.mxu0 %v492
      %711 = vmatpush.msra.mxu0 %v489
      %712 = vmatmul.f32.gmra.mxu0 %v685
      %v713 = vpop.f32.mrf.mxu0
      %v714 = vadd.f32 0.0, %v713
      %715 = vmatmul.f32.gmra.mxu0 %v688
      %v716 = vpop.f32.mrf.mxu0
      %v717 = vadd.f32 0.0, %v716
      %718 = vmatmul.f32.gmra.mxu0 %v691
      %v719 = vpop.f32.mrf.mxu0
      %v720 = vadd.f32 0.0, %v719
      %721 = vmatmul.f32.gmra.mxu0 %v694
      %v722 = vpop.f32.mrf.mxu0
      %v723 = vadd.f32 0.0, %v722
      %724 = vdwg.mxu0
      %v726 = vsel %vm642, %v586, 0
      %v729 = vsel %vm642, %v587, 0
      %v732 = vsel %vm642, %v588, 0
      %v735 = vsel %vm642, %v589, 0
      %737 = vmatpush.msra.mxu0 0.0
      %738 = vmatpush.msra.mxu0 0.0
      %739 = vmatpush.msra.mxu0 0.0
      %740 = vmatpush.msra.mxu0 0.0
      %741 = vmatpush.msra.mxu0 0.0
      %742 = vmatpush.msra.mxu0 0.0
      %743 = vmatpush.msra.mxu0 0.0
      %744 = vmatpush.msra.mxu0 0.0
      %745 = vmatpush.msra.mxu0 0.0
      %746 = vmatpush.msra.mxu0 0.0
      %747 = vmatpush.msra.mxu0 0.0
      %748 = vmatpush.msra.mxu0 0.0
      %749 = vmatpush.msra.mxu0 0.0
      %750 = vmatpush.msra.mxu0 0.0
      %751 = vmatpush.msra.mxu0 %v498
      %752 = vmatpush.msra.mxu0 %v495
      %753 = vmatmul.f32.gmra.mxu0 %v726
      %v754 = vpop.f32.mrf.mxu0
      %v755 = vadd.f32 0.0, %v754
      %756 = vmatmul.f32.gmra.mxu0 %v729
      %v757 = vpop.f32.mrf.mxu0
      %v758 = vadd.f32 0.0, %v757
      %759 = vmatmul.f32.gmra.mxu0 %v732
      %v760 = vpop.f32.mrf.mxu0
      %v761 = vadd.f32 0.0, %v760
      %762 = vmatmul.f32.gmra.mxu0 %v735
      %v763 = vpop.f32.mrf.mxu0
      %v764 = vadd.f32 0.0, %v763
      %765 = vdwg.mxu0
      %v767 = vsel %vm642, %v590, 0
      %v770 = vsel %vm642, %v591, 0
      %v773 = vsel %vm642, %v592, 0
      %v776 = vsel %vm642, %v593, 0
      %778 = vmatpush.msra.mxu0 0.0
      %779 = vmatpush.msra.mxu0 0.0
      %780 = vmatpush.msra.mxu0 0.0
      %781 = vmatpush.msra.mxu0 0.0
      %782 = vmatpush.msra.mxu0 0.0
      %783 = vmatpush.msra.mxu0 0.0
      %784 = vmatpush.msra.mxu0 0.0
      %785 = vmatpush.msra.mxu0 0.0
      %786 = vmatpush.msra.mxu0 0.0
      %787 = vmatpush.msra.mxu0 0.0
      %788 = vmatpush.msra.mxu0 0.0
      %789 = vmatpush.msra.mxu0 0.0
      %790 = vmatpush.msra.mxu0 0.0
      %791 = vmatpush.msra.mxu0 0.0
      %792 = vmatpush.msra.mxu0 %v504
      %793 = vmatpush.msra.mxu0 %v501
      %794 = vmatmul.f32.gmra.mxu0 %v767
      %v795 = vpop.f32.mrf.mxu0
      %v796 = vadd.f32 0.0, %v795
      %797 = vmatmul.f32.gmra.mxu0 %v770
      %v798 = vpop.f32.mrf.mxu0
      %v799 = vadd.f32 0.0, %v798
      %800 = vmatmul.f32.gmra.mxu0 %v773
      %v801 = vpop.f32.mrf.mxu0
      %v802 = vadd.f32 0.0, %v801
      %803 = vmatmul.f32.gmra.mxu0 %v776
      %v804 = vpop.f32.mrf.mxu0
      %v805 = vadd.f32 0.0, %v804
      %806 = vdwg.mxu0
      %v808 = vsel %vm642, %v594, 0
      %v811 = vsel %vm642, %v595, 0
      %v814 = vsel %vm642, %v596, 0
      %v817 = vsel %vm642, %v597, 0
      %819 = vmatpush.msra.mxu0 0.0
      %820 = vmatpush.msra.mxu0 0.0
      %821 = vmatpush.msra.mxu0 0.0
      %822 = vmatpush.msra.mxu0 0.0
      %823 = vmatpush.msra.mxu0 0.0
      %824 = vmatpush.msra.mxu0 0.0
      %825 = vmatpush.msra.mxu0 0.0
      %826 = vmatpush.msra.mxu0 0.0
      %827 = vmatpush.msra.mxu0 0.0
      %828 = vmatpush.msra.mxu0 0.0
      %829 = vmatpush.msra.mxu0 0.0
      %830 = vmatpush.msra.mxu0 0.0
      %831 = vmatpush.msra.mxu0 0.0
      %832 = vmatpush.msra.mxu0 0.0
      %833 = vmatpush.msra.mxu0 %v510
      %834 = vmatpush.msra.mxu0 %v507
      %835 = vmatmul.f32.gmra.mxu0 %v808
      %v836 = vpop.f32.mrf.mxu0
      %v837 = vadd.f32 0.0, %v836
      %838 = vmatmul.f32.gmra.mxu0 %v811
      %v839 = vpop.f32.mrf.mxu0
      %v840 = vadd.f32 0.0, %v839
      %841 = vmatmul.f32.gmra.mxu0 %v814
      %v842 = vpop.f32.mrf.mxu0
      %v843 = vadd.f32 0.0, %v842
      %844 = vmatmul.f32.gmra.mxu0 %v817
      %v845 = vpop.f32.mrf.mxu0
      %v846 = vadd.f32 0.0, %v845
      %847 = vdwg.mxu0
      %v849 = vsel %vm642, %v598, 0
      %v852 = vsel %vm642, %v599, 0
      %v855 = vsel %vm642, %v600, 0
      %v858 = vsel %vm642, %v601, 0
      %860 = vmatpush.msra.mxu0 0.0
      %861 = vmatpush.msra.mxu0 0.0
      %862 = vmatpush.msra.mxu0 0.0
      %863 = vmatpush.msra.mxu0 0.0
      %864 = vmatpush.msra.mxu0 0.0
      %865 = vmatpush.msra.mxu0 0.0
      %866 = vmatpush.msra.mxu0 0.0
      %867 = vmatpush.msra.mxu0 0.0
      %868 = vmatpush.msra.mxu0 0.0
      %869 = vmatpush.msra.mxu0 0.0
      %870 = vmatpush.msra.mxu0 0.0
      %871 = vmatpush.msra.mxu0 0.0
      %872 = vmatpush.msra.mxu0 0.0
      %873 = vmatpush.msra.mxu0 0.0
      %874 = vmatpush.msra.mxu0 %v516
      %875 = vmatpush.msra.mxu0 %v513
      %876 = vmatmul.f32.gmra.mxu0 %v849
      %v877 = vpop.f32.mrf.mxu0
      %v878 = vadd.f32 0.0, %v877
      %879 = vmatmul.f32.gmra.mxu0 %v852
      %v880 = vpop.f32.mrf.mxu0
      %v881 = vadd.f32 0.0, %v880
      %882 = vmatmul.f32.gmra.mxu0 %v855
      %v883 = vpop.f32.mrf.mxu0
      %v884 = vadd.f32 0.0, %v883
      %885 = vmatmul.f32.gmra.mxu0 %v858
      %v886 = vpop.f32.mrf.mxu0
      %v887 = vadd.f32 0.0, %v886
      %888 = vdwg.mxu0
      %v890 = vsel %vm642, %v602, 0
      %v893 = vsel %vm642, %v603, 0
      %v896 = vsel %vm642, %v604, 0
      %v899 = vsel %vm642, %v605, 0
      %901 = vmatpush.msra.mxu0 0.0
      %902 = vmatpush.msra.mxu0 0.0
      %903 = vmatpush.msra.mxu0 0.0
      %904 = vmatpush.msra.mxu0 0.0
      %905 = vmatpush.msra.mxu0 0.0
      %906 = vmatpush.msra.mxu0 0.0
      %907 = vmatpush.msra.mxu0 0.0
      %908 = vmatpush.msra.mxu0 0.0
      %909 = vmatpush.msra.mxu0 0.0
      %910 = vmatpush.msra.mxu0 0.0
      %911 = vmatpush.msra.mxu0 0.0
      %912 = vmatpush.msra.mxu0 0.0
      %913 = vmatpush.msra.mxu0 0.0
      %914 = vmatpush.msra.mxu0 0.0
      %915 = vmatpush.msra.mxu0 %v522
      %916 = vmatpush.msra.mxu0 %v519
      %917 = vmatmul.f32.gmra.mxu0 %v890
      %v918 = vpop.f32.mrf.mxu0
      %v919 = vadd.f32 0.0, %v918
      %920 = vmatmul.f32.gmra.mxu0 %v893
      %v921 = vpop.f32.mrf.mxu0
      %v922 = vadd.f32 0.0, %v921
      %923 = vmatmul.f32.gmra.mxu0 %v896
      %v924 = vpop.f32.mrf.mxu0
      %v925 = vadd.f32 0.0, %v924
      %926 = vmatmul.f32.gmra.mxu0 %v899
      %v927 = vpop.f32.mrf.mxu0
      %v928 = vadd.f32 0.0, %v927
      %929 = vdwg.mxu0
      %v931 = vsel %vm642, %v606, 0
      %v934 = vsel %vm642, %v607, 0
      %v937 = vsel %vm642, %v608, 0
      %v940 = vsel %vm642, %v609, 0
      %942 = vmatpush.msra.mxu0 0.0
      %943 = vmatpush.msra.mxu0 0.0
      %944 = vmatpush.msra.mxu0 0.0
      %945 = vmatpush.msra.mxu0 0.0
      %946 = vmatpush.msra.mxu0 0.0
      %947 = vmatpush.msra.mxu0 0.0
      %948 = vmatpush.msra.mxu0 0.0
      %949 = vmatpush.msra.mxu0 0.0
      %950 = vmatpush.msra.mxu0 0.0
      %951 = vmatpush.msra.mxu0 0.0
      %952 = vmatpush.msra.mxu0 0.0
      %953 = vmatpush.msra.mxu0 0.0
      %954 = vmatpush.msra.mxu0 0.0
      %955 = vmatpush.msra.mxu0 0.0
      %956 = vmatpush.msra.mxu0 %v528
      %957 = vmatpush.msra.mxu0 %v525
      %958 = vmatmul.f32.gmra.mxu0 %v931
      %v959 = vpop.f32.mrf.mxu0
      %v960 = vadd.f32 0.0, %v959
      %961 = vmatmul.f32.gmra.mxu0 %v934
      %v962 = vpop.f32.mrf.mxu0
      %v963 = vadd.f32 0.0, %v962
      %964 = vmatmul.f32.gmra.mxu0 %v937
      %v965 = vpop.f32.mrf.mxu0
      %v966 = vadd.f32 0.0, %v965
      %967 = vmatmul.f32.gmra.mxu0 %v940
      %v968 = vpop.f32.mrf.mxu0
      %v969 = vadd.f32 0.0, %v968
      %970 = vdwg.mxu0
      %v972 = vsel %vm642, %v610, 0
      %v975 = vsel %vm642, %v611, 0
      %v978 = vsel %vm642, %v612, 0
      %v981 = vsel %vm642, %v613, 0
      %983 = vmatpush.msra.mxu0 0.0
      %984 = vmatpush.msra.mxu0 0.0
      %985 = vmatpush.msra.mxu0 0.0
      %986 = vmatpush.msra.mxu0 0.0
      %987 = vmatpush.msra.mxu0 0.0
      %988 = vmatpush.msra.mxu0 0.0
      %989 = vmatpush.msra.mxu0 0.0
      %990 = vmatpush.msra.mxu0 0.0
      %991 = vmatpush.msra.mxu0 0.0
      %992 = vmatpush.msra.mxu0 0.0
      %993 = vmatpush.msra.mxu0 0.0
      %994 = vmatpush.msra.mxu0 0.0
      %995 = vmatpush.msra.mxu0 0.0
      %996 = vmatpush.msra.mxu0 0.0
      %997 = vmatpush.msra.mxu0 %v534
      %998 = vmatpush.msra.mxu0 %v531
      %999 = vmatmul.f32.gmra.mxu0 %v972
      %v1000 = vpop.f32.mrf.mxu0
      %v1001 = vadd.f32 0.0, %v1000
      %1002 = vmatmul.f32.gmra.mxu0 %v975
      %v1003 = vpop.f32.mrf.mxu0
      %v1004 = vadd.f32 0.0, %v1003
      %1005 = vmatmul.f32.gmra.mxu0 %v978
      %v1006 = vpop.f32.mrf.mxu0
      %v1007 = vadd.f32 0.0, %v1006
      %1008 = vmatmul.f32.gmra.mxu0 %v981
      %v1009 = vpop.f32.mrf.mxu0
      %v1010 = vadd.f32 0.0, %v1009
      %1011 = vdwg.mxu0
      %v1013 = vsel %vm642, %v614, 0
      %v1016 = vsel %vm642, %v615, 0
      %v1019 = vsel %vm642, %v616, 0
      %v1022 = vsel %vm642, %v617, 0
      %1024 = vmatpush.msra.mxu0 0.0
      %1025 = vmatpush.msra.mxu0 0.0
      %1026 = vmatpush.msra.mxu0 0.0
      %1027 = vmatpush.msra.mxu0 0.0
      %1028 = vmatpush.msra.mxu0 0.0
      %1029 = vmatpush.msra.mxu0 0.0
      %1030 = vmatpush.msra.mxu0 0.0
      %1031 = vmatpush.msra.mxu0 0.0
      %1032 = vmatpush.msra.mxu0 0.0
      %1033 = vmatpush.msra.mxu0 0.0
      %1034 = vmatpush.msra.mxu0 0.0
      %1035 = vmatpush.msra.mxu0 0.0
      %1036 = vmatpush.msra.mxu0 0.0
      %1037 = vmatpush.msra.mxu0 0.0
      %1038 = vmatpush.msra.mxu0 %v540
      %1039 = vmatpush.msra.mxu0 %v537
      %1040 = vmatmul.f32.gmra.mxu0 %v1013
      %v1041 = vpop.f32.mrf.mxu0
      %v1042 = vadd.f32 0.0, %v1041
      %1043 = vmatmul.f32.gmra.mxu0 %v1016
      %v1044 = vpop.f32.mrf.mxu0
      %v1045 = vadd.f32 0.0, %v1044
      %1046 = vmatmul.f32.gmra.mxu0 %v1019
      %v1047 = vpop.f32.mrf.mxu0
      %v1048 = vadd.f32 0.0, %v1047
      %1049 = vmatmul.f32.gmra.mxu0 %v1022
      %v1050 = vpop.f32.mrf.mxu0
      %v1051 = vadd.f32 0.0, %v1050
      %1052 = vdwg.mxu0
      %v1054 = vsel %vm642, %v618, 0
      %v1057 = vsel %vm642, %v619, 0
      %v1060 = vsel %vm642, %v620, 0
      %v1063 = vsel %vm642, %v621, 0
      %1065 = vmatpush.msra.mxu0 0.0
      %1066 = vmatpush.msra.mxu0 0.0
      %1067 = vmatpush.msra.mxu0 0.0
      %1068 = vmatpush.msra.mxu0 0.0
      %1069 = vmatpush.msra.mxu0 0.0
      %1070 = vmatpush.msra.mxu0 0.0
      %1071 = vmatpush.msra.mxu0 0.0
      %1072 = vmatpush.msra.mxu0 0.0
      %1073 = vmatpush.msra.mxu0 0.0
      %1074 = vmatpush.msra.mxu0 0.0
      %1075 = vmatpush.msra.mxu0 0.0
      %1076 = vmatpush.msra.mxu0 0.0
      %1077 = vmatpush.msra.mxu0 0.0
      %1078 = vmatpush.msra.mxu0 0.0
      %1079 = vmatpush.msra.mxu0 %v546
      %1080 = vmatpush.msra.mxu0 %v543
      %1081 = vmatmul.f32.gmra.mxu0 %v1054
      %v1082 = vpop.f32.mrf.mxu0
      %v1083 = vadd.f32 0.0, %v1082
      %1084 = vmatmul.f32.gmra.mxu0 %v1057
      %v1085 = vpop.f32.mrf.mxu0
      %v1086 = vadd.f32 0.0, %v1085
      %1087 = vmatmul.f32.gmra.mxu0 %v1060
      %v1088 = vpop.f32.mrf.mxu0
      %v1089 = vadd.f32 0.0, %v1088
      %1090 = vmatmul.f32.gmra.mxu0 %v1063
      %v1091 = vpop.f32.mrf.mxu0
      %v1092 = vadd.f32 0.0, %v1091
      %1093 = vdwg.mxu0
      %v1095 = vsel %vm642, %v622, 0
      %v1098 = vsel %vm642, %v623, 0
      %v1101 = vsel %vm642, %v624, 0
      %v1104 = vsel %vm642, %v625, 0
      %1106 = vmatpush.msra.mxu0 0.0
      %1107 = vmatpush.msra.mxu0 0.0
      %1108 = vmatpush.msra.mxu0 0.0
      %1109 = vmatpush.msra.mxu0 0.0
      %1110 = vmatpush.msra.mxu0 0.0
      %1111 = vmatpush.msra.mxu0 0.0
      %1112 = vmatpush.msra.mxu0 0.0
      %1113 = vmatpush.msra.mxu0 0.0
      %1114 = vmatpush.msra.mxu0 0.0
      %1115 = vmatpush.msra.mxu0 0.0
      %1116 = vmatpush.msra.mxu0 0.0
      %1117 = vmatpush.msra.mxu0 0.0
      %1118 = vmatpush.msra.mxu0 0.0
      %1119 = vmatpush.msra.mxu0 0.0
      %1120 = vmatpush.msra.mxu0 %v552
      %1121 = vmatpush.msra.mxu0 %v549
      %1122 = vmatmul.f32.gmra.mxu0 %v1095
      %v1123 = vpop.f32.mrf.mxu0
      %v1124 = vadd.f32 0.0, %v1123
      %1125 = vmatmul.f32.gmra.mxu0 %v1098
      %v1126 = vpop.f32.mrf.mxu0
      %v1127 = vadd.f32 0.0, %v1126
      %1128 = vmatmul.f32.gmra.mxu0 %v1101
      %v1129 = vpop.f32.mrf.mxu0
      %v1130 = vadd.f32 0.0, %v1129
      %1131 = vmatmul.f32.gmra.mxu0 %v1104
      %v1132 = vpop.f32.mrf.mxu0
      %v1133 = vadd.f32 0.0, %v1132
      %1134 = vdwg.mxu0
      %v1136 = vsel %vm642, %v626, 0
      %v1139 = vsel %vm642, %v627, 0
      %v1142 = vsel %vm642, %v628, 0
      %v1145 = vsel %vm642, %v629, 0
      %1147 = vmatpush.msra.mxu0 0.0
      %1148 = vmatpush.msra.mxu0 0.0
      %1149 = vmatpush.msra.mxu0 0.0
      %1150 = vmatpush.msra.mxu0 0.0
      %1151 = vmatpush.msra.mxu0 0.0
      %1152 = vmatpush.msra.mxu0 0.0
      %1153 = vmatpush.msra.mxu0 0.0
      %1154 = vmatpush.msra.mxu0 0.0
      %1155 = vmatpush.msra.mxu0 0.0
      %1156 = vmatpush.msra.mxu0 0.0
      %1157 = vmatpush.msra.mxu0 0.0
      %1158 = vmatpush.msra.mxu0 0.0
      %1159 = vmatpush.msra.mxu0 0.0
      %1160 = vmatpush.msra.mxu0 0.0
      %1161 = vmatpush.msra.mxu0 %v558
      %1162 = vmatpush.msra.mxu0 %v555
      %1163 = vmatmul.f32.gmra.mxu0 %v1136
      %v1164 = vpop.f32.mrf.mxu0
      %v1165 = vadd.f32 0.0, %v1164
      %1166 = vmatmul.f32.gmra.mxu0 %v1139
      %v1167 = vpop.f32.mrf.mxu0
      %v1168 = vadd.f32 0.0, %v1167
      %1169 = vmatmul.f32.gmra.mxu0 %v1142
      %v1170 = vpop.f32.mrf.mxu0
      %v1171 = vadd.f32 0.0, %v1170
      %1172 = vmatmul.f32.gmra.mxu0 %v1145
      %v1173 = vpop.f32.mrf.mxu0
      %v1174 = vadd.f32 0.0, %v1173
      %1175 = vdwg.mxu0
      %v1177 = vsel %vm642, %v630, 0
      %v1180 = vsel %vm642, %v631, 0
      %v1183 = vsel %vm642, %v632, 0
      %v1186 = vsel %vm642, %v633, 0
      %1188 = vmatpush.msra.mxu0 0.0
      %1189 = vmatpush.msra.mxu0 0.0
      %1190 = vmatpush.msra.mxu0 0.0
      %1191 = vmatpush.msra.mxu0 0.0
      %1192 = vmatpush.msra.mxu0 0.0
      %1193 = vmatpush.msra.mxu0 0.0
      %1194 = vmatpush.msra.mxu0 0.0
      %1195 = vmatpush.msra.mxu0 0.0
      %1196 = vmatpush.msra.mxu0 0.0
      %1197 = vmatpush.msra.mxu0 0.0
      %1198 = vmatpush.msra.mxu0 0.0
      %1199 = vmatpush.msra.mxu0 0.0
      %1200 = vmatpush.msra.mxu0 0.0
      %1201 = vmatpush.msra.mxu0 0.0
      %1202 = vmatpush.msra.mxu0 %v564
      %1203 = vmatpush.msra.mxu0 %v561
      %1204 = vmatmul.f32.gmra.mxu0 %v1177
      %v1205 = vpop.f32.mrf.mxu0
      %v1206 = vadd.f32 0.0, %v1205
      %1207 = vmatmul.f32.gmra.mxu0 %v1180
      %v1208 = vpop.f32.mrf.mxu0
      %v1209 = vadd.f32 0.0, %v1208
      %1210 = vmatmul.f32.gmra.mxu0 %v1183
      %v1211 = vpop.f32.mrf.mxu0
      %v1212 = vadd.f32 0.0, %v1211
      %1213 = vmatmul.f32.gmra.mxu0 %v1186
      %v1214 = vpop.f32.mrf.mxu0
      %v1215 = vadd.f32 0.0, %v1214
      %1216 = vdwg.mxu0
      %v1218 = vsel %vm642, %v634, 0
      %v1221 = vsel %vm642, %v635, 0
      %v1224 = vsel %vm642, %v636, 0
      %v1227 = vsel %vm642, %v637, 0
      %1229 = vmatpush.msra.mxu0 0.0
      %1230 = vmatpush.msra.mxu0 0.0
      %1231 = vmatpush.msra.mxu0 0.0
      %1232 = vmatpush.msra.mxu0 0.0
      %1233 = vmatpush.msra.mxu0 0.0
      %1234 = vmatpush.msra.mxu0 0.0
      %1235 = vmatpush.msra.mxu0 0.0
      %1236 = vmatpush.msra.mxu0 0.0
      %1237 = vmatpush.msra.mxu0 0.0
      %1238 = vmatpush.msra.mxu0 0.0
      %1239 = vmatpush.msra.mxu0 0.0
      %1240 = vmatpush.msra.mxu0 0.0
      %1241 = vmatpush.msra.mxu0 0.0
      %1242 = vmatpush.msra.mxu0 0.0
      %1243 = vmatpush.msra.mxu0 %v570
      %1244 = vmatpush.msra.mxu0 %v567
      %1245 = vmatmul.f32.gmra.mxu0 %v1218
      %v1246 = vpop.f32.mrf.mxu0
      %v1247 = vadd.f32 0.0, %v1246
      %1248 = vmatmul.f32.gmra.mxu0 %v1221
      %v1249 = vpop.f32.mrf.mxu0
      %v1250 = vadd.f32 0.0, %v1249
      %1251 = vmatmul.f32.gmra.mxu0 %v1224
      %v1252 = vpop.f32.mrf.mxu0
      %v1253 = vadd.f32 0.0, %v1252
      %1254 = vmatmul.f32.gmra.mxu0 %v1227
      %v1255 = vpop.f32.mrf.mxu0
      %v1256 = vadd.f32 0.0, %v1255
      %1257 = vdwg.mxu0
      %v1259 = vsel %vm642, %v638, 0
      %v1262 = vsel %vm642, %v639, 0
      %v1265 = vsel %vm642, %v640, 0
      %v1268 = vsel %vm642, %v641, 0
      %1270 = vmatpush.msra.mxu0 0.0
      %1271 = vmatpush.msra.mxu0 0.0
      %1272 = vmatpush.msra.mxu0 0.0
      %1273 = vmatpush.msra.mxu0 0.0
      %1274 = vmatpush.msra.mxu0 0.0
      %1275 = vmatpush.msra.mxu0 0.0
      %1276 = vmatpush.msra.mxu0 0.0
      %1277 = vmatpush.msra.mxu0 0.0
      %1278 = vmatpush.msra.mxu0 0.0
      %1279 = vmatpush.msra.mxu0 0.0
      %1280 = vmatpush.msra.mxu0 0.0
      %1281 = vmatpush.msra.mxu0 0.0
      %1282 = vmatpush.msra.mxu0 0.0
      %1283 = vmatpush.msra.mxu0 0.0
      %1284 = vmatpush.msra.mxu0 %v576
      %1285 = vmatpush.msra.mxu0 %v573
      %1286 = vmatmul.f32.gmra.mxu0 %v1259
      %v1287 = vpop.f32.mrf.mxu0
      %v1288 = vadd.f32 0.0, %v1287
      %1289 = vmatmul.f32.gmra.mxu0 %v1262
      %v1290 = vpop.f32.mrf.mxu0
      %v1291 = vadd.f32 0.0, %v1290
      %1292 = vmatmul.f32.gmra.mxu0 %v1265
      %v1293 = vpop.f32.mrf.mxu0
      %v1294 = vadd.f32 0.0, %v1293
      %1295 = vmatmul.f32.gmra.mxu0 %v1268
      %v1296 = vpop.f32.mrf.mxu0
      %v1297 = vadd.f32 0.0, %v1296
      %1298 = vdwg.mxu0
      %v1299 = vmul.f32 %v673, 0.516129
      %v1300 = vmul.f32 %v676, 0.516129
      %v1301 = vmul.f32 %v679, 0.516129
      %v1302 = vmul.f32 %v682, 0.516129
      %v1303 = vmul.f32 %v714, 0.48387095
      %v1304 = vmul.f32 %v717, 0.48387095
      %v1305 = vmul.f32 %v720, 0.48387095
      %v1306 = vmul.f32 %v723, 0.48387095
      %v1307 = vadd.f32 %v1299, %v1303
      %v1308 = vadd.f32 %v1300, %v1304
      %v1309 = vadd.f32 %v1301, %v1305
      %v1310 = vadd.f32 %v1302, %v1306
      %v1311 = vmul.f32 %v673, 0.032258064
      %v1312 = vmul.f32 %v676, 0.032258064
      %v1313 = vmul.f32 %v679, 0.032258064
      %v1314 = vmul.f32 %v682, 0.032258064
      %v1315 = vmul.f32 %v714, 0.9677419
      %v1316 = vmul.f32 %v717, 0.9677419
      %v1317 = vmul.f32 %v720, 0.9677419
      %v1318 = vmul.f32 %v723, 0.9677419
      %v1319 = vadd.f32 %v1311, %v1315
      %v1320 = vadd.f32 %v1312, %v1316
      %v1321 = vadd.f32 %v1313, %v1317
      %v1322 = vadd.f32 %v1314, %v1318
      %v1323 = vmul.f32 %v714, 0.5483871
      %v1324 = vmul.f32 %v717, 0.5483871
      %v1325 = vmul.f32 %v720, 0.5483871
      %v1326 = vmul.f32 %v723, 0.5483871
      %v1327 = vmul.f32 %v755, 0.4516129
      %v1328 = vmul.f32 %v758, 0.4516129
      %v1329 = vmul.f32 %v761, 0.4516129
      %v1330 = vmul.f32 %v764, 0.4516129
      %v1331 = vadd.f32 %v1323, %v1327
      %v1332 = vadd.f32 %v1324, %v1328
      %v1333 = vadd.f32 %v1325, %v1329
      %v1334 = vadd.f32 %v1326, %v1330
      %v1335 = vmul.f32 %v714, 0.06451613
      %v1336 = vmul.f32 %v717, 0.06451613
      %v1337 = vmul.f32 %v720, 0.06451613
      %v1338 = vmul.f32 %v723, 0.06451613
      %v1339 = vmul.f32 %v755, 0.9354839
      %v1340 = vmul.f32 %v758, 0.9354839
      %v1341 = vmul.f32 %v761, 0.9354839
      %v1342 = vmul.f32 %v764, 0.9354839
      %v1343 = vadd.f32 %v1335, %v1339
      %v1344 = vadd.f32 %v1336, %v1340
      %v1345 = vadd.f32 %v1337, %v1341
      %v1346 = vadd.f32 %v1338, %v1342
      %v1347 = vmul.f32 %v755, 0.58064514
      %v1348 = vmul.f32 %v758, 0.58064514
      %v1349 = vmul.f32 %v761, 0.58064514
      %v1350 = vmul.f32 %v764, 0.58064514
      %v1351 = vmul.f32 %v796, 0.41935483
      %v1352 = vmul.f32 %v799, 0.41935483
      %v1353 = vmul.f32 %v802, 0.41935483
      %v1354 = vmul.f32 %v805, 0.41935483
      %v1355 = vadd.f32 %v1347, %v1351
      %v1356 = vadd.f32 %v1348, %v1352
      %v1357 = vadd.f32 %v1349, %v1353
      %v1358 = vadd.f32 %v1350, %v1354
      %v1359 = vmul.f32 %v755, 0.09677419
      %v1360 = vmul.f32 %v758, 0.09677419
      %v1361 = vmul.f32 %v761, 0.09677419
      %v1362 = vmul.f32 %v764, 0.09677419
      %v1363 = vmul.f32 %v796, 0.9032258
      %v1364 = vmul.f32 %v799, 0.9032258
      %v1365 = vmul.f32 %v802, 0.9032258
      %v1366 = vmul.f32 %v805, 0.9032258
      %v1367 = vadd.f32 %v1359, %v1363
      %v1368 = vadd.f32 %v1360, %v1364
      %v1369 = vadd.f32 %v1361, %v1365
      %v1370 = vadd.f32 %v1362, %v1366
      %v1371 = vmul.f32 %v796, 0.61290324
      %v1372 = vmul.f32 %v799, 0.61290324
      %v1373 = vmul.f32 %v802, 0.61290324
      %v1374 = vmul.f32 %v805, 0.61290324
      %v1375 = vmul.f32 %v837, 0.38709676
      %v1376 = vmul.f32 %v840, 0.38709676
      %v1377 = vmul.f32 %v843, 0.38709676
      %v1378 = vmul.f32 %v846, 0.38709676
      %v1379 = vadd.f32 %v1371, %v1375
      %v1380 = vadd.f32 %v1372, %v1376
      %v1381 = vadd.f32 %v1373, %v1377
      %v1382 = vadd.f32 %v1374, %v1378
      %v1383 = vmul.f32 %v796, 0.12903225
      %v1384 = vmul.f32 %v799, 0.12903225
      %v1385 = vmul.f32 %v802, 0.12903225
      %v1386 = vmul.f32 %v805, 0.12903225
      %v1387 = vmul.f32 %v837, 0.87096775
      %v1388 = vmul.f32 %v840, 0.87096775
      %v1389 = vmul.f32 %v843, 0.87096775
      %v1390 = vmul.f32 %v846, 0.87096775
      %v1391 = vadd.f32 %v1383, %v1387
      %v1392 = vadd.f32 %v1384, %v1388
      %v1393 = vadd.f32 %v1385, %v1389
      %v1394 = vadd.f32 %v1386, %v1390
      %v1395 = vmul.f32 %v837, 0.6451613
      %v1396 = vmul.f32 %v840, 0.6451613
      %v1397 = vmul.f32 %v843, 0.6451613
      %v1398 = vmul.f32 %v846, 0.6451613
      %v1399 = vmul.f32 %v878, 0.3548387
      %v1400 = vmul.f32 %v881, 0.3548387
      %v1401 = vmul.f32 %v884, 0.3548387
      %v1402 = vmul.f32 %v887, 0.3548387
      %v1403 = vadd.f32 %v1395, %v1399
      %v1404 = vadd.f32 %v1396, %v1400
      %v1405 = vadd.f32 %v1397, %v1401
      %v1406 = vadd.f32 %v1398, %v1402
      %v1407 = vmul.f32 %v837, 0.16129032
      %v1408 = vmul.f32 %v840, 0.16129032
      %v1409 = vmul.f32 %v843, 0.16129032
      %v1410 = vmul.f32 %v846, 0.16129032
      %v1411 = vmul.f32 %v878, 0.83870965
      %v1412 = vmul.f32 %v881, 0.83870965
      %v1413 = vmul.f32 %v884, 0.83870965
      %v1414 = vmul.f32 %v887, 0.83870965
      %v1415 = vadd.f32 %v1407, %v1411
      %v1416 = vadd.f32 %v1408, %v1412
      %v1417 = vadd.f32 %v1409, %v1413
      %v1418 = vadd.f32 %v1410, %v1414
      %v1419 = vmul.f32 %v878, 0.67741936
      %v1420 = vmul.f32 %v881, 0.67741936
      %v1421 = vmul.f32 %v884, 0.67741936
      %v1422 = vmul.f32 %v887, 0.67741936
      %v1423 = vmul.f32 %v919, 0.32258064
      %v1424 = vmul.f32 %v922, 0.32258064
      %v1425 = vmul.f32 %v925, 0.32258064
      %v1426 = vmul.f32 %v928, 0.32258064
      %v1427 = vadd.f32 %v1419, %v1423
      %v1428 = vadd.f32 %v1420, %v1424
      %v1429 = vadd.f32 %v1421, %v1425
      %v1430 = vadd.f32 %v1422, %v1426
      %v1431 = vmul.f32 %v878, 0.19354838
      %v1432 = vmul.f32 %v881, 0.19354838
      %v1433 = vmul.f32 %v884, 0.19354838
      %v1434 = vmul.f32 %v887, 0.19354838
      %v1435 = vmul.f32 %v919, 0.8064516
      %v1436 = vmul.f32 %v922, 0.8064516
      %v1437 = vmul.f32 %v925, 0.8064516
      %v1438 = vmul.f32 %v928, 0.8064516
      %v1439 = vadd.f32 %v1431, %v1435
      %v1440 = vadd.f32 %v1432, %v1436
      %v1441 = vadd.f32 %v1433, %v1437
      %v1442 = vadd.f32 %v1434, %v1438
      %v1443 = vmul.f32 %v919, 0.7096774
      %v1444 = vmul.f32 %v922, 0.7096774
      %v1445 = vmul.f32 %v925, 0.7096774
      %v1446 = vmul.f32 %v928, 0.7096774
      %v1447 = vmul.f32 %v960, 0.29032257
      %v1448 = vmul.f32 %v963, 0.29032257
      %v1449 = vmul.f32 %v966, 0.29032257
      %v1450 = vmul.f32 %v969, 0.29032257
      %v1451 = vadd.f32 %v1443, %v1447
      %v1452 = vadd.f32 %v1444, %v1448
      %v1453 = vadd.f32 %v1445, %v1449
      %v1454 = vadd.f32 %v1446, %v1450
      %v1455 = vmul.f32 %v919, 0.22580644
      %v1456 = vmul.f32 %v922, 0.22580644
      %v1457 = vmul.f32 %v925, 0.22580644
      %v1458 = vmul.f32 %v928, 0.22580644
      %v1459 = vmul.f32 %v960, 0.7741935
      %v1460 = vmul.f32 %v963, 0.7741935
      %v1461 = vmul.f32 %v966, 0.7741935
      %v1462 = vmul.f32 %v969, 0.7741935
      %v1463 = vadd.f32 %v1455, %v1459
      %v1464 = vadd.f32 %v1456, %v1460
      %v1465 = vadd.f32 %v1457, %v1461
      %v1466 = vadd.f32 %v1458, %v1462
      %v1467 = vmul.f32 %v960, 0.7419355
      %v1468 = vmul.f32 %v963, 0.7419355
      %v1469 = vmul.f32 %v966, 0.7419355
      %v1470 = vmul.f32 %v969, 0.7419355
      %v1471 = vmul.f32 %v1001, 0.2580645
      %v1472 = vmul.f32 %v1004, 0.2580645
      %v1473 = vmul.f32 %v1007, 0.2580645
      %v1474 = vmul.f32 %v1010, 0.2580645
      %v1475 = vadd.f32 %v1467, %v1471
      %v1476 = vadd.f32 %v1468, %v1472
      %v1477 = vadd.f32 %v1469, %v1473
      %v1478 = vadd.f32 %v1470, %v1474
      %v1479 = vmul.f32 %v960, 0.2580645
      %v1480 = vmul.f32 %v963, 0.2580645
      %v1481 = vmul.f32 %v966, 0.2580645
      %v1482 = vmul.f32 %v969, 0.2580645
      %v1483 = vmul.f32 %v1001, 0.7419355
      %v1484 = vmul.f32 %v1004, 0.7419355
      %v1485 = vmul.f32 %v1007, 0.7419355
      %v1486 = vmul.f32 %v1010, 0.7419355
      %v1487 = vadd.f32 %v1479, %v1483
      %v1488 = vadd.f32 %v1480, %v1484
      %v1489 = vadd.f32 %v1481, %v1485
      %v1490 = vadd.f32 %v1482, %v1486
      %v1491 = vmul.f32 %v1001, 0.7741935
      %v1492 = vmul.f32 %v1004, 0.7741935
      %v1493 = vmul.f32 %v1007, 0.7741935
      %v1494 = vmul.f32 %v1010, 0.7741935
      %v1495 = vmul.f32 %v1042, 0.22580644
      %v1496 = vmul.f32 %v1045, 0.22580644
      %v1497 = vmul.f32 %v1048, 0.22580644
      %v1498 = vmul.f32 %v1051, 0.22580644
      %v1499 = vadd.f32 %v1491, %v1495
      %v1500 = vadd.f32 %v1492, %v1496
      %v1501 = vadd.f32 %v1493, %v1497
      %v1502 = vadd.f32 %v1494, %v1498
      %v1503 = vmul.f32 %v1001, 0.29032257
      %v1504 = vmul.f32 %v1004, 0.29032257
      %v1505 = vmul.f32 %v1007, 0.29032257
      %v1506 = vmul.f32 %v1010, 0.29032257
      %v1507 = vmul.f32 %v1042, 0.7096774
      %v1508 = vmul.f32 %v1045, 0.7096774
      %v1509 = vmul.f32 %v1048, 0.7096774
      %v1510 = vmul.f32 %v1051, 0.7096774
      %v1511 = vadd.f32 %v1503, %v1507
      %v1512 = vadd.f32 %v1504, %v1508
      %v1513 = vadd.f32 %v1505, %v1509
      %v1514 = vadd.f32 %v1506, %v1510
      %v1515 = vmul.f32 %v1042, 0.8064516
      %v1516 = vmul.f32 %v1045, 0.8064516
      %v1517 = vmul.f32 %v1048, 0.8064516
      %v1518 = vmul.f32 %v1051, 0.8064516
      %v1519 = vmul.f32 %v1083, 0.19354838
      %v1520 = vmul.f32 %v1086, 0.19354838
      %v1521 = vmul.f32 %v1089, 0.19354838
      %v1522 = vmul.f32 %v1092, 0.19354838
      %v1523 = vadd.f32 %v1515, %v1519
      %v1524 = vadd.f32 %v1516, %v1520
      %v1525 = vadd.f32 %v1517, %v1521
      %v1526 = vadd.f32 %v1518, %v1522
      %v1527 = vmul.f32 %v1042, 0.32258064
      %v1528 = vmul.f32 %v1045, 0.32258064
      %v1529 = vmul.f32 %v1048, 0.32258064
      %v1530 = vmul.f32 %v1051, 0.32258064
      %v1531 = vmul.f32 %v1083, 0.67741936
      %v1532 = vmul.f32 %v1086, 0.67741936
      %v1533 = vmul.f32 %v1089, 0.67741936
      %v1534 = vmul.f32 %v1092, 0.67741936
      %v1535 = vadd.f32 %v1527, %v1531
      %v1536 = vadd.f32 %v1528, %v1532
      %v1537 = vadd.f32 %v1529, %v1533
      %v1538 = vadd.f32 %v1530, %v1534
      %v1539 = vmul.f32 %v1083, 0.83870965
      %v1540 = vmul.f32 %v1086, 0.83870965
      %v1541 = vmul.f32 %v1089, 0.83870965
      %v1542 = vmul.f32 %v1092, 0.83870965
      %v1543 = vmul.f32 %v1124, 0.16129032
      %v1544 = vmul.f32 %v1127, 0.16129032
      %v1545 = vmul.f32 %v1130, 0.16129032
      %v1546 = vmul.f32 %v1133, 0.16129032
      %v1547 = vadd.f32 %v1539, %v1543
      %v1548 = vadd.f32 %v1540, %v1544
      %v1549 = vadd.f32 %v1541, %v1545
      %v1550 = vadd.f32 %v1542, %v1546
      %v1551 = vmul.f32 %v1083, 0.3548387
      %v1552 = vmul.f32 %v1086, 0.3548387
      %v1553 = vmul.f32 %v1089, 0.3548387
      %v1554 = vmul.f32 %v1092, 0.3548387
      %v1555 = vmul.f32 %v1124, 0.6451613
      %v1556 = vmul.f32 %v1127, 0.6451613
      %v1557 = vmul.f32 %v1130, 0.6451613
      %v1558 = vmul.f32 %v1133, 0.6451613
      %v1559 = vadd.f32 %v1551, %v1555
      %v1560 = vadd.f32 %v1552, %v1556
      %v1561 = vadd.f32 %v1553, %v1557
      %v1562 = vadd.f32 %v1554, %v1558
      %v1563 = vmul.f32 %v1124, 0.87096775
      %v1564 = vmul.f32 %v1127, 0.87096775
      %v1565 = vmul.f32 %v1130, 0.87096775
      %v1566 = vmul.f32 %v1133, 0.87096775
      %v1567 = vmul.f32 %v1165, 0.12903225
      %v1568 = vmul.f32 %v1168, 0.12903225
      %v1569 = vmul.f32 %v1171, 0.12903225
      %v1570 = vmul.f32 %v1174, 0.12903225
      %v1571 = vadd.f32 %v1563, %v1567
      %v1572 = vadd.f32 %v1564, %v1568
      %v1573 = vadd.f32 %v1565, %v1569
      %v1574 = vadd.f32 %v1566, %v1570
      %v1575 = vmul.f32 %v1124, 0.38709676
      %v1576 = vmul.f32 %v1127, 0.38709676
      %v1577 = vmul.f32 %v1130, 0.38709676
      %v1578 = vmul.f32 %v1133, 0.38709676
      %v1579 = vmul.f32 %v1165, 0.61290324
      %v1580 = vmul.f32 %v1168, 0.61290324
      %v1581 = vmul.f32 %v1171, 0.61290324
      %v1582 = vmul.f32 %v1174, 0.61290324
      %v1583 = vadd.f32 %v1575, %v1579
      %v1584 = vadd.f32 %v1576, %v1580
      %v1585 = vadd.f32 %v1577, %v1581
      %v1586 = vadd.f32 %v1578, %v1582
      %v1587 = vmul.f32 %v1165, 0.9032258
      %v1588 = vmul.f32 %v1168, 0.9032258
      %v1589 = vmul.f32 %v1171, 0.9032258
      %v1590 = vmul.f32 %v1174, 0.9032258
      %v1591 = vmul.f32 %v1206, 0.09677419
      %v1592 = vmul.f32 %v1209, 0.09677419
      %v1593 = vmul.f32 %v1212, 0.09677419
      %v1594 = vmul.f32 %v1215, 0.09677419
      %v1595 = vadd.f32 %v1587, %v1591
      %v1596 = vadd.f32 %v1588, %v1592
      %v1597 = vadd.f32 %v1589, %v1593
      %v1598 = vadd.f32 %v1590, %v1594
      %v1599 = vmul.f32 %v1165, 0.41935483
      %v1600 = vmul.f32 %v1168, 0.41935483
      %v1601 = vmul.f32 %v1171, 0.41935483
      %v1602 = vmul.f32 %v1174, 0.41935483
      %v1603 = vmul.f32 %v1206, 0.58064514
      %v1604 = vmul.f32 %v1209, 0.58064514
      %v1605 = vmul.f32 %v1212, 0.58064514
      %v1606 = vmul.f32 %v1215, 0.58064514
      %v1607 = vadd.f32 %v1599, %v1603
      %v1608 = vadd.f32 %v1600, %v1604
      %v1609 = vadd.f32 %v1601, %v1605
      %v1610 = vadd.f32 %v1602, %v1606
      %v1611 = vmul.f32 %v1206, 0.9354839
      %v1612 = vmul.f32 %v1209, 0.9354839
      %v1613 = vmul.f32 %v1212, 0.9354839
      %v1614 = vmul.f32 %v1215, 0.9354839
      %v1615 = vmul.f32 %v1247, 0.06451613
      %v1616 = vmul.f32 %v1250, 0.06451613
      %v1617 = vmul.f32 %v1253, 0.06451613
      %v1618 = vmul.f32 %v1256, 0.06451613
      %v1619 = vadd.f32 %v1611, %v1615
      %v1620 = vadd.f32 %v1612, %v1616
      %v1621 = vadd.f32 %v1613, %v1617
      %v1622 = vadd.f32 %v1614, %v1618
      %v1623 = vmul.f32 %v1206, 0.4516129
      %v1624 = vmul.f32 %v1209, 0.4516129
      %v1625 = vmul.f32 %v1212, 0.4516129
      %v1626 = vmul.f32 %v1215, 0.4516129
      %v1627 = vmul.f32 %v1247, 0.5483871
      %v1628 = vmul.f32 %v1250, 0.5483871
      %v1629 = vmul.f32 %v1253, 0.5483871
      %v1630 = vmul.f32 %v1256, 0.5483871
      %v1631 = vadd.f32 %v1623, %v1627
      %v1632 = vadd.f32 %v1624, %v1628
      %v1633 = vadd.f32 %v1625, %v1629
      %v1634 = vadd.f32 %v1626, %v1630
      %v1635 = vmul.f32 %v1247, 0.9677419
      %v1636 = vmul.f32 %v1250, 0.9677419
      %v1637 = vmul.f32 %v1253, 0.9677419
      %v1638 = vmul.f32 %v1256, 0.9677419
      %v1639 = vmul.f32 %v1288, 0.032258064
      %v1640 = vmul.f32 %v1291, 0.032258064
      %v1641 = vmul.f32 %v1294, 0.032258064
      %v1642 = vmul.f32 %v1297, 0.032258064
      %v1643 = vadd.f32 %v1635, %v1639
      %v1644 = vadd.f32 %v1636, %v1640
      %v1645 = vadd.f32 %v1637, %v1641
      %v1646 = vadd.f32 %v1638, %v1642
      %v1647 = vmul.f32 %v1247, 0.48387095
      %v1648 = vmul.f32 %v1250, 0.48387095
      %v1649 = vmul.f32 %v1253, 0.48387095
      %v1650 = vmul.f32 %v1256, 0.48387095
      %v1651 = vmul.f32 %v1288, 0.516129
      %v1652 = vmul.f32 %v1291, 0.516129
      %v1653 = vmul.f32 %v1294, 0.516129
      %v1654 = vmul.f32 %v1297, 0.516129
      %v1655 = vadd.f32 %v1647, %v1651
      %v1656 = vadd.f32 %v1648, %v1652
      %v1657 = vadd.f32 %v1649, %v1653
      %v1658 = vadd.f32 %v1650, %v1654
      %v1659 = vld [vmem:[%s321] sm:$0xff]
      %v1660 = vld [vmem:[%s321 + $0x8] sm:$0xff]
      %v1661 = vld [vmem:[%s321 + $0x10] sm:$0xff]
      %v1662 = vld [vmem:[%s321 + $0x18] sm:$0xff]
      %v1663 = vld [vmem:[%s321 + $0x20] sm:$0xff]
      %v1664 = vld [vmem:[%s321 + $0x28] sm:$0xff]
      %v1665 = vld [vmem:[%s321 + $0x30] sm:$0xff]
      %v1666 = vld [vmem:[%s321 + $0x38] sm:$0xff]
      %v1667 = vld [vmem:[%s321 + $0x40] sm:$0xff]
      %v1668 = vld [vmem:[%s321 + $0x48] sm:$0xff]
      %v1669 = vld [vmem:[%s321 + $0x50] sm:$0xff]
      %v1670 = vld [vmem:[%s321 + $0x58] sm:$0xff]
      %v1671 = vld [vmem:[%s321 + $0x60] sm:$0xff]
      %v1672 = vld [vmem:[%s321 + $0x68] sm:$0xff]
      %v1673 = vld [vmem:[%s321 + $0x70] sm:$0xff]
      %v1674 = vld [vmem:[%s321 + $0x78] sm:$0xff]
      %v1675 = vld [vmem:[%s321 + $0x80] sm:$0xff]
      %v1676 = vld [vmem:[%s321 + $0x88] sm:$0xff]
      %v1677 = vld [vmem:[%s321 + $0x90] sm:$0xff]
      %v1678 = vld [vmem:[%s321 + $0x98] sm:$0xff]
      %v1679 = vld [vmem:[%s321 + $0xa0] sm:$0xff]
      %v1680 = vld [vmem:[%s321 + $0xa8] sm:$0xff]
      %v1681 = vld [vmem:[%s321 + $0xb0] sm:$0xff]
      %v1682 = vld [vmem:[%s321 + $0xb8] sm:$0xff]
      %v1683 = vld [vmem:[%s321 + $0xc0] sm:$0xff]
      %v1684 = vld [vmem:[%s321 + $0xc8] sm:$0xff]
      %v1685 = vld [vmem:[%s321 + $0xd0] sm:$0xff]
      %v1686 = vld [vmem:[%s321 + $0xd8] sm:$0xff]
      %v1687 = vld [vmem:[%s321 + $0xe0] sm:$0xff]
      %v1688 = vld [vmem:[%s321 + $0xe8] sm:$0xff]
      %v1689 = vld [vmem:[%s321 + $0xf0] sm:$0xff]
      %v1690 = vld [vmem:[%s321 + $0xf8] sm:$0xff]
      %v1691 = vld [vmem:[%s321 + $0x100] sm:$0xff]
      %v1692 = vld [vmem:[%s321 + $0x108] sm:$0xff]
      %v1693 = vld [vmem:[%s321 + $0x110] sm:$0xff]
      %v1694 = vld [vmem:[%s321 + $0x118] sm:$0xff]
      %v1695 = vld [vmem:[%s321 + $0x120] sm:$0xff]
      %v1696 = vld [vmem:[%s321 + $0x128] sm:$0xff]
      %v1697 = vld [vmem:[%s321 + $0x130] sm:$0xff]
      %v1698 = vld [vmem:[%s321 + $0x138] sm:$0xff]
      %v1699 = vld [vmem:[%s321 + $0x140] sm:$0xff]
      %v1700 = vld [vmem:[%s321 + $0x148] sm:$0xff]
      %v1701 = vld [vmem:[%s321 + $0x150] sm:$0xff]
      %v1702 = vld [vmem:[%s321 + $0x158] sm:$0xff]
      %v1703 = vld [vmem:[%s321 + $0x160] sm:$0xff]
      %v1704 = vld [vmem:[%s321 + $0x168] sm:$0xff]
      %v1705 = vld [vmem:[%s321 + $0x170] sm:$0xff]
      %v1706 = vld [vmem:[%s321 + $0x178] sm:$0xff]
      %v1707 = vld [vmem:[%s321 + $0x180] sm:$0xff]
      %v1708 = vld [vmem:[%s321 + $0x188] sm:$0xff]
      %v1709 = vld [vmem:[%s321 + $0x190] sm:$0xff]
      %v1710 = vld [vmem:[%s321 + $0x198] sm:$0xff]
      %v1711 = vld [vmem:[%s321 + $0x1a0] sm:$0xff]
      %v1712 = vld [vmem:[%s321 + $0x1a8] sm:$0xff]
      %v1713 = vld [vmem:[%s321 + $0x1b0] sm:$0xff]
      %v1714 = vld [vmem:[%s321 + $0x1b8] sm:$0xff]
      %v1715 = vld [vmem:[%s321 + $0x1c0] sm:$0xff]
      %v1716 = vld [vmem:[%s321 + $0x1c8] sm:$0xff]
      %v1717 = vld [vmem:[%s321 + $0x1d0] sm:$0xff]
      %v1718 = vld [vmem:[%s321 + $0x1d8] sm:$0xff]
      %v1719 = vld [vmem:[%s321 + $0x1e0] sm:$0xff]
      %v1720 = vld [vmem:[%s321 + $0x1e8] sm:$0xff]
      %v1721 = vld [vmem:[%s321 + $0x1f0] sm:$0xff]
      %v1722 = vld [vmem:[%s321 + $0x1f8] sm:$0xff]
      %v1723 = vld [vmem:[%s321 + $0x200] sm:$0xff]
      %v1724 = vld [vmem:[%s321 + $0x208] sm:$0xff]
      %v1725 = vld [vmem:[%s321 + $0x210] sm:$0xff]
      %v1726 = vld [vmem:[%s321 + $0x218] sm:$0xff]
      %v1727 = vld [vmem:[%s321 + $0x220] sm:$0xff]
      %v1728 = vld [vmem:[%s321 + $0x228] sm:$0xff]
      %v1729 = vld [vmem:[%s321 + $0x230] sm:$0xff]
      %v1730 = vld [vmem:[%s321 + $0x238] sm:$0xff]
      %v1731 = vld [vmem:[%s321 + $0x240] sm:$0xff]
      %v1732 = vld [vmem:[%s321 + $0x248] sm:$0xff]
      %v1733 = vld [vmem:[%s321 + $0x250] sm:$0xff]
      %v1734 = vld [vmem:[%s321 + $0x258] sm:$0xff]
      %v1735 = vld [vmem:[%s321 + $0x260] sm:$0xff]
      %v1736 = vld [vmem:[%s321 + $0x268] sm:$0xff]
      %v1737 = vld [vmem:[%s321 + $0x270] sm:$0xff]
      %v1738 = vld [vmem:[%s321 + $0x278] sm:$0xff]
      %v1739 = vld [vmem:[%s321 + $0x280] sm:$0xff]
      %v1740 = vld [vmem:[%s321 + $0x288] sm:$0xff]
      %v1741 = vld [vmem:[%s321 + $0x290] sm:$0xff]
      %v1742 = vld [vmem:[%s321 + $0x298] sm:$0xff]
      %v1743 = vld [vmem:[%s321 + $0x2a0] sm:$0xff]
      %v1744 = vld [vmem:[%s321 + $0x2a8] sm:$0xff]
      %v1745 = vld [vmem:[%s321 + $0x2b0] sm:$0xff]
      %v1746 = vld [vmem:[%s321 + $0x2b8] sm:$0xff]
      %v1747 = vld [vmem:[%s321 + $0x2c0] sm:$0xff]
      %v1748 = vld [vmem:[%s321 + $0x2c8] sm:$0xff]
      %v1749 = vld [vmem:[%s321 + $0x2d0] sm:$0xff]
      %v1750 = vld [vmem:[%s321 + $0x2d8] sm:$0xff]
      %v1751 = vld [vmem:[%s321 + $0x2e0] sm:$0xff]
      %v1752 = vld [vmem:[%s321 + $0x2e8] sm:$0xff]
      %v1753 = vld [vmem:[%s321 + $0x2f0] sm:$0xff]
      %v1754 = vld [vmem:[%s321 + $0x2f8] sm:$0xff]
      %v1755 = vld [vmem:[%s321 + $0x300] sm:$0xff]
      %v1756 = vld [vmem:[%s321 + $0x308] sm:$0xff]
      %v1757 = vld [vmem:[%s321 + $0x310] sm:$0xff]
      %v1758 = vld [vmem:[%s321 + $0x318] sm:$0xff]
      %v1759 = vld [vmem:[%s321 + $0x320] sm:$0xff]
      %v1760 = vld [vmem:[%s321 + $0x328] sm:$0xff]
      %v1761 = vld [vmem:[%s321 + $0x330] sm:$0xff]
      %v1762 = vld [vmem:[%s321 + $0x338] sm:$0xff]
      %v1763 = vld [vmem:[%s321 + $0x340] sm:$0xff]
      %v1764 = vld [vmem:[%s321 + $0x348] sm:$0xff]
      %v1765 = vld [vmem:[%s321 + $0x350] sm:$0xff]
      %v1766 = vld [vmem:[%s321 + $0x358] sm:$0xff]
      %v1767 = vld [vmem:[%s321 + $0x360] sm:$0xff]
      %v1768 = vld [vmem:[%s321 + $0x368] sm:$0xff]
      %v1769 = vld [vmem:[%s321 + $0x370] sm:$0xff]
      %v1770 = vld [vmem:[%s321 + $0x378] sm:$0xff]
      %v1771 = vld [vmem:[%s321 + $0x380] sm:$0xff]
      %v1772 = vld [vmem:[%s321 + $0x388] sm:$0xff]
      %v1773 = vld [vmem:[%s321 + $0x390] sm:$0xff]
      %v1774 = vld [vmem:[%s321 + $0x398] sm:$0xff]
      %v1775 = vld [vmem:[%s321 + $0x3a0] sm:$0xff]
      %v1776 = vld [vmem:[%s321 + $0x3a8] sm:$0xff]
      %v1777 = vld [vmem:[%s321 + $0x3b0] sm:$0xff]
      %v1778 = vld [vmem:[%s321 + $0x3b8] sm:$0xff]
      %v1779 = vld [vmem:[%s321 + $0x3c0] sm:$0xff]
      %v1780 = vld [vmem:[%s321 + $0x3c8] sm:$0xff]
      %v1781 = vld [vmem:[%s321 + $0x3d0] sm:$0xff]
      %v1782 = vld [vmem:[%s321 + $0x3d8] sm:$0xff]
      %v1783 = vld [vmem:[%s321 + $0x3e0] sm:$0xff]
      %v1784 = vld [vmem:[%s321 + $0x3e8] sm:$0xff]
      %v1785 = vld [vmem:[%s321 + $0x3f0] sm:$0xff]
      %v1786 = vld [vmem:[%s321 + $0x3f8] sm:$0xff]
      %v1787 = vld [vmem:[%s3] sm:$0xff]
      %vm1788 = vcmask 64512
      %v1790 = vsel %vm1788, %v1659, 0
      %v1793 = vsel %vm1788, %v1660, 0
      %v1796 = vsel %vm1788, %v1661, 0
      %v1799 = vsel %vm1788, %v1662, 0
      %v1802 = vsel %vm1788, %v1663, 0
      %v1805 = vsel %vm1788, %v1664, 0
      %v1808 = vsel %vm1788, %v1665, 0
      %v1811 = vsel %vm1788, %v1666, 0
      %v1814 = vsel %vm1788, %v1667, 0
      %v1817 = vsel %vm1788, %v1668, 0
      %v1820 = vsel %vm1788, %v1669, 0
      %v1823 = vsel %vm1788, %v1670, 0
      %v1826 = vsel %vm1788, %v1671, 0
      %v1829 = vsel %vm1788, %v1672, 0
      %v1832 = vsel %vm1788, %v1673, 0
      %v1835 = vsel %vm1788, %v1674, 0
      %v1838 = vsel %vm1788, %v1675, 0
      %v1841 = vsel %vm1788, %v1676, 0
      %v1844 = vsel %vm1788, %v1677, 0
      %v1847 = vsel %vm1788, %v1678, 0
      %v1850 = vsel %vm1788, %v1679, 0
      %v1853 = vsel %vm1788, %v1680, 0
      %v1856 = vsel %vm1788, %v1681, 0
      %v1859 = vsel %vm1788, %v1682, 0
      %v1862 = vsel %vm1788, %v1683, 0
      %v1865 = vsel %vm1788, %v1684, 0
      %v1868 = vsel %vm1788, %v1685, 0
      %v1871 = vsel %vm1788, %v1686, 0
      %v1874 = vsel %vm1788, %v1687, 0
      %v1877 = vsel %vm1788, %v1688, 0
      %v1880 = vsel %vm1788, %v1689, 0
      %v1883 = vsel %vm1788, %v1690, 0
      %v1886 = vsel %vm1788, %v1691, 0
      %v1889 = vsel %vm1788, %v1692, 0
      %v1892 = vsel %vm1788, %v1693, 0
      %v1895 = vsel %vm1788, %v1694, 0
      %v1898 = vsel %vm1788, %v1695, 0
      %v1901 = vsel %vm1788, %v1696, 0
      %v1904 = vsel %vm1788, %v1697, 0
      %v1907 = vsel %vm1788, %v1698, 0
      %v1910 = vsel %vm1788, %v1699, 0
      %v1913 = vsel %vm1788, %v1700, 0
      %v1916 = vsel %vm1788, %v1701, 0
      %v1919 = vsel %vm1788, %v1702, 0
      %v1922 = vsel %vm1788, %v1703, 0
      %v1925 = vsel %vm1788, %v1704, 0
      %v1928 = vsel %vm1788, %v1705, 0
      %v1931 = vsel %vm1788, %v1706, 0
      %v1934 = vsel %vm1788, %v1707, 0
      %v1937 = vsel %vm1788, %v1708, 0
      %v1940 = vsel %vm1788, %v1709, 0
      %v1943 = vsel %vm1788, %v1710, 0
      %v1946 = vsel %vm1788, %v1711, 0
      %v1949 = vsel %vm1788, %v1712, 0
      %v1952 = vsel %vm1788, %v1713, 0
      %v1955 = vsel %vm1788, %v1714, 0
      %v1958 = vsel %vm1788, %v1715, 0
      %v1961 = vsel %vm1788, %v1716, 0
      %v1964 = vsel %vm1788, %v1717, 0
      %v1967 = vsel %vm1788, %v1718, 0
      %v1970 = vsel %vm1788, %v1719, 0
      %v1973 = vsel %vm1788, %v1720, 0
      %v1976 = vsel %vm1788, %v1721, 0
      %v1979 = vsel %vm1788, %v1722, 0
      %v1982 = vsel %vm1788, %v1723, 0
      %v1985 = vsel %vm1788, %v1724, 0
      %v1988 = vsel %vm1788, %v1725, 0
      %v1991 = vsel %vm1788, %v1726, 0
      %v1994 = vsel %vm1788, %v1727, 0
      %v1997 = vsel %vm1788, %v1728, 0
      %v2000 = vsel %vm1788, %v1729, 0
      %v2003 = vsel %vm1788, %v1730, 0
      %v2006 = vsel %vm1788, %v1731, 0
      %v2009 = vsel %vm1788, %v1732, 0
      %v2012 = vsel %vm1788, %v1733, 0
      %v2015 = vsel %vm1788, %v1734, 0
      %v2018 = vsel %vm1788, %v1735, 0
      %v2021 = vsel %vm1788, %v1736, 0
      %v2024 = vsel %vm1788, %v1737, 0
      %v2027 = vsel %vm1788, %v1738, 0
      %v2030 = vsel %vm1788, %v1739, 0
      %v2033 = vsel %vm1788, %v1740, 0
      %v2036 = vsel %vm1788, %v1741, 0
      %v2039 = vsel %vm1788, %v1742, 0
      %v2042 = vsel %vm1788, %v1743, 0
      %v2045 = vsel %vm1788, %v1744, 0
      %v2048 = vsel %vm1788, %v1745, 0
      %v2051 = vsel %vm1788, %v1746, 0
      %v2054 = vsel %vm1788, %v1747, 0
      %v2057 = vsel %vm1788, %v1748, 0
      %v2060 = vsel %vm1788, %v1749, 0
      %v2063 = vsel %vm1788, %v1750, 0
      %v2066 = vsel %vm1788, %v1751, 0
      %v2069 = vsel %vm1788, %v1752, 0
      %v2072 = vsel %vm1788, %v1753, 0
      %v2075 = vsel %vm1788, %v1754, 0
      %v2078 = vsel %vm1788, %v1755, 0
      %v2081 = vsel %vm1788, %v1756, 0
      %v2084 = vsel %vm1788, %v1757, 0
      %v2087 = vsel %vm1788, %v1758, 0
      %v2090 = vsel %vm1788, %v1759, 0
      %v2093 = vsel %vm1788, %v1760, 0
      %v2096 = vsel %vm1788, %v1761, 0
      %v2099 = vsel %vm1788, %v1762, 0
      %v2102 = vsel %vm1788, %v1763, 0
      %v2105 = vsel %vm1788, %v1764, 0
      %v2108 = vsel %vm1788, %v1765, 0
      %v2111 = vsel %vm1788, %v1766, 0
      %v2114 = vsel %vm1788, %v1767, 0
      %v2117 = vsel %vm1788, %v1768, 0
      %v2120 = vsel %vm1788, %v1769, 0
      %v2123 = vsel %vm1788, %v1770, 0
      %v2126 = vsel %vm1788, %v1771, 0
      %v2129 = vsel %vm1788, %v1772, 0
      %v2132 = vsel %vm1788, %v1773, 0
      %v2135 = vsel %vm1788, %v1774, 0
      %v2138 = vsel %vm1788, %v1775, 0
      %v2141 = vsel %vm1788, %v1776, 0
      %v2144 = vsel %vm1788, %v1777, 0
      %v2147 = vsel %vm1788, %v1778, 0
      %v2150 = vsel %vm1788, %v1779, 0
      %v2153 = vsel %vm1788, %v1780, 0
      %v2156 = vsel %vm1788, %v1781, 0
      %v2159 = vsel %vm1788, %v1782, 0
      %v2162 = vsel %vm1788, %v1783, 0
      %v2165 = vsel %vm1788, %v1784, 0
      %v2168 = vsel %vm1788, %v1785, 0
      %v2171 = vsel %vm1788, %v1786, 0
      %2173 = vmatpush.msra.mxu0 0.0
      %2174 = vmatpush.msra.mxu0 0.0
      %2175 = vmatpush.msra.mxu0 0.0
      %2176 = vmatpush.msra.mxu0 0.0
      %2177 = vmatpush.msra.mxu0 0.0
      %2178 = vmatpush.msra.mxu0 0.0
      %2179 = vmatpush.msra.mxu0 0.0
      %2180 = vmatpush.msra.mxu0 0.0
      %2181 = vmatpush.msra.mxu0 0.0
      %2182 = vmatpush.msra.mxu0 0.0
      %2183 = vmatpush.msra.mxu0 0.0
      %2184 = vmatpush.msra.mxu0 0.0
      %2185 = vmatpush.msra.mxu0 0.0
      %2186 = vmatpush.msra.mxu0 0.0
      %2187 = vmatpush.msra.mxu0 0.0
      %2188 = vmatpush.msra.mxu0 %v1787
      %2189 = vmatmul.f32.gmra.mxu0 %v1790
      %v2190 = vpop.f32.mrf.mxu0
      %v2191 = vadd.f32 0.0, %v2190
      %2192 = vmatmul.f32.gmra.mxu0 %v1793
      %v2193 = vpop.f32.mrf.mxu0
      %v2194 = vadd.f32 0.0, %v2193
      %2195 = vmatmul.f32.gmra.mxu0 %v1796
      %v2196 = vpop.f32.mrf.mxu0
      %v2197 = vadd.f32 0.0, %v2196
      %2198 = vmatmul.f32.gmra.mxu0 %v1799
      %v2199 = vpop.f32.mrf.mxu0
      %v2200 = vadd.f32 0.0, %v2199
      %2201 = vmatmul.f32.gmra.mxu0 %v1802
      %v2202 = vpop.f32.mrf.mxu0
      %v2203 = vadd.f32 0.0, %v2202
      %2204 = vmatmul.f32.gmra.mxu0 %v1805
      %v2205 = vpop.f32.mrf.mxu0
      %v2206 = vadd.f32 0.0, %v2205
      %2207 = vmatmul.f32.gmra.mxu0 %v1808
      %v2208 = vpop.f32.mrf.mxu0
      %v2209 = vadd.f32 0.0, %v2208
      %2210 = vmatmul.f32.gmra.mxu0 %v1811
      %v2211 = vpop.f32.mrf.mxu0
      %v2212 = vadd.f32 0.0, %v2211
      %2213 = vmatmul.f32.gmra.mxu0 %v1814
      %v2214 = vpop.f32.mrf.mxu0
      %v2215 = vadd.f32 0.0, %v2214
      %2216 = vmatmul.f32.gmra.mxu0 %v1817
      %v2217 = vpop.f32.mrf.mxu0
      %v2218 = vadd.f32 0.0, %v2217
      %2219 = vmatmul.f32.gmra.mxu0 %v1820
      %v2220 = vpop.f32.mrf.mxu0
      %v2221 = vadd.f32 0.0, %v2220
      %2222 = vmatmul.f32.gmra.mxu0 %v1823
      %v2223 = vpop.f32.mrf.mxu0
      %v2224 = vadd.f32 0.0, %v2223
      %2225 = vmatmul.f32.gmra.mxu0 %v1826
      %v2226 = vpop.f32.mrf.mxu0
      %v2227 = vadd.f32 0.0, %v2226
      %2228 = vmatmul.f32.gmra.mxu0 %v1829
      %v2229 = vpop.f32.mrf.mxu0
      %v2230 = vadd.f32 0.0, %v2229
      %2231 = vmatmul.f32.gmra.mxu0 %v1832
      %v2232 = vpop.f32.mrf.mxu0
      %v2233 = vadd.f32 0.0, %v2232
      %2234 = vmatmul.f32.gmra.mxu0 %v1835
      %v2235 = vpop.f32.mrf.mxu0
      %v2236 = vadd.f32 0.0, %v2235
      %2237 = vmatmul.f32.gmra.mxu0 %v1838
      %v2238 = vpop.f32.mrf.mxu0
      %v2239 = vadd.f32 0.0, %v2238
      %2240 = vmatmul.f32.gmra.mxu0 %v1841
      %v2241 = vpop.f32.mrf.mxu0
      %v2242 = vadd.f32 0.0, %v2241
      %2243 = vmatmul.f32.gmra.mxu0 %v1844
      %v2244 = vpop.f32.mrf.mxu0
      %v2245 = vadd.f32 0.0, %v2244
      %2246 = vmatmul.f32.gmra.mxu0 %v1847
      %v2247 = vpop.f32.mrf.mxu0
      %v2248 = vadd.f32 0.0, %v2247
      %2249 = vmatmul.f32.gmra.mxu0 %v1850
      %v2250 = vpop.f32.mrf.mxu0
      %v2251 = vadd.f32 0.0, %v2250
      %2252 = vmatmul.f32.gmra.mxu0 %v1853
      %v2253 = vpop.f32.mrf.mxu0
      %v2254 = vadd.f32 0.0, %v2253
      %2255 = vmatmul.f32.gmra.mxu0 %v1856
      %v2256 = vpop.f32.mrf.mxu0
      %v2257 = vadd.f32 0.0, %v2256
      %2258 = vmatmul.f32.gmra.mxu0 %v1859
      %v2259 = vpop.f32.mrf.mxu0
      %v2260 = vadd.f32 0.0, %v2259
      %2261 = vmatmul.f32.gmra.mxu0 %v1862
      %v2262 = vpop.f32.mrf.mxu0
      %v2263 = vadd.f32 0.0, %v2262
      %2264 = vmatmul.f32.gmra.mxu0 %v1865
      %v2265 = vpop.f32.mrf.mxu0
      %v2266 = vadd.f32 0.0, %v2265
      %2267 = vmatmul.f32.gmra.mxu0 %v1868
      %v2268 = vpop.f32.mrf.mxu0
      %v2269 = vadd.f32 0.0, %v2268
      %2270 = vmatmul.f32.gmra.mxu0 %v1871
      %v2271 = vpop.f32.mrf.mxu0
      %v2272 = vadd.f32 0.0, %v2271
      %2273 = vmatmul.f32.gmra.mxu0 %v1874
      %v2274 = vpop.f32.mrf.mxu0
      %v2275 = vadd.f32 0.0, %v2274
      %2276 = vmatmul.f32.gmra.mxu0 %v1877
      %v2277 = vpop.f32.mrf.mxu0
      %v2278 = vadd.f32 0.0, %v2277
      %2279 = vmatmul.f32.gmra.mxu0 %v1880
      %v2280 = vpop.f32.mrf.mxu0
      %v2281 = vadd.f32 0.0, %v2280
      %2282 = vmatmul.f32.gmra.mxu0 %v1883
      %v2283 = vpop.f32.mrf.mxu0
      %v2284 = vadd.f32 0.0, %v2283
      %2285 = vmatmul.f32.gmra.mxu0 %v1886
      %v2286 = vpop.f32.mrf.mxu0
      %v2287 = vadd.f32 0.0, %v2286
      %2288 = vmatmul.f32.gmra.mxu0 %v1889
      %v2289 = vpop.f32.mrf.mxu0
      %v2290 = vadd.f32 0.0, %v2289
      %2291 = vmatmul.f32.gmra.mxu0 %v1892
      %v2292 = vpop.f32.mrf.mxu0
      %v2293 = vadd.f32 0.0, %v2292
      %2294 = vmatmul.f32.gmra.mxu0 %v1895
      %v2295 = vpop.f32.mrf.mxu0
      %v2296 = vadd.f32 0.0, %v2295
      %2297 = vmatmul.f32.gmra.mxu0 %v1898
      %v2298 = vpop.f32.mrf.mxu0
      %v2299 = vadd.f32 0.0, %v2298
      %2300 = vmatmul.f32.gmra.mxu0 %v1901
      %v2301 = vpop.f32.mrf.mxu0
      %v2302 = vadd.f32 0.0, %v2301
      %2303 = vmatmul.f32.gmra.mxu0 %v1904
      %v2304 = vpop.f32.mrf.mxu0
      %v2305 = vadd.f32 0.0, %v2304
      %2306 = vmatmul.f32.gmra.mxu0 %v1907
      %v2307 = vpop.f32.mrf.mxu0
      %v2308 = vadd.f32 0.0, %v2307
      %2309 = vmatmul.f32.gmra.mxu0 %v1910
      %v2310 = vpop.f32.mrf.mxu0
      %v2311 = vadd.f32 0.0, %v2310
      %2312 = vmatmul.f32.gmra.mxu0 %v1913
      %v2313 = vpop.f32.mrf.mxu0
      %v2314 = vadd.f32 0.0, %v2313
      %2315 = vmatmul.f32.gmra.mxu0 %v1916
      %v2316 = vpop.f32.mrf.mxu0
      %v2317 = vadd.f32 0.0, %v2316
      %2318 = vmatmul.f32.gmra.mxu0 %v1919
      %v2319 = vpop.f32.mrf.mxu0
      %v2320 = vadd.f32 0.0, %v2319
      %2321 = vmatmul.f32.gmra.mxu0 %v1922
      %v2322 = vpop.f32.mrf.mxu0
      %v2323 = vadd.f32 0.0, %v2322
      %2324 = vmatmul.f32.gmra.mxu0 %v1925
      %v2325 = vpop.f32.mrf.mxu0
      %v2326 = vadd.f32 0.0, %v2325
      %2327 = vmatmul.f32.gmra.mxu0 %v1928
      %v2328 = vpop.f32.mrf.mxu0
      %v2329 = vadd.f32 0.0, %v2328
      %2330 = vmatmul.f32.gmra.mxu0 %v1931
      %v2331 = vpop.f32.mrf.mxu0
      %v2332 = vadd.f32 0.0, %v2331
      %2333 = vmatmul.f32.gmra.mxu0 %v1934
      %v2334 = vpop.f32.mrf.mxu0
      %v2335 = vadd.f32 0.0, %v2334
      %2336 = vmatmul.f32.gmra.mxu0 %v1937
      %v2337 = vpop.f32.mrf.mxu0
      %v2338 = vadd.f32 0.0, %v2337
      %2339 = vmatmul.f32.gmra.mxu0 %v1940
      %v2340 = vpop.f32.mrf.mxu0
      %v2341 = vadd.f32 0.0, %v2340
      %2342 = vmatmul.f32.gmra.mxu0 %v1943
      %v2343 = vpop.f32.mrf.mxu0
      %v2344 = vadd.f32 0.0, %v2343
      %2345 = vmatmul.f32.gmra.mxu0 %v1946
      %v2346 = vpop.f32.mrf.mxu0
      %v2347 = vadd.f32 0.0, %v2346
      %2348 = vmatmul.f32.gmra.mxu0 %v1949
      %v2349 = vpop.f32.mrf.mxu0
      %v2350 = vadd.f32 0.0, %v2349
      %2351 = vmatmul.f32.gmra.mxu0 %v1952
      %v2352 = vpop.f32.mrf.mxu0
      %v2353 = vadd.f32 0.0, %v2352
      %2354 = vmatmul.f32.gmra.mxu0 %v1955
      %v2355 = vpop.f32.mrf.mxu0
      %v2356 = vadd.f32 0.0, %v2355
      %2357 = vmatmul.f32.gmra.mxu0 %v1958
      %v2358 = vpop.f32.mrf.mxu0
      %v2359 = vadd.f32 0.0, %v2358
      %2360 = vmatmul.f32.gmra.mxu0 %v1961
      %v2361 = vpop.f32.mrf.mxu0
      %v2362 = vadd.f32 0.0, %v2361
      %2363 = vmatmul.f32.gmra.mxu0 %v1964
      %v2364 = vpop.f32.mrf.mxu0
      %v2365 = vadd.f32 0.0, %v2364
      %2366 = vmatmul.f32.gmra.mxu0 %v1967
      %v2367 = vpop.f32.mrf.mxu0
      %v2368 = vadd.f32 0.0, %v2367
      %2369 = vmatmul.f32.gmra.mxu0 %v1970
      %v2370 = vpop.f32.mrf.mxu0
      %v2371 = vadd.f32 0.0, %v2370
      %2372 = vmatmul.f32.gmra.mxu0 %v1973
      %v2373 = vpop.f32.mrf.mxu0
      %v2374 = vadd.f32 0.0, %v2373
      %2375 = vmatmul.f32.gmra.mxu0 %v1976
      %v2376 = vpop.f32.mrf.mxu0
      %v2377 = vadd.f32 0.0, %v2376
      %2378 = vmatmul.f32.gmra.mxu0 %v1979
      %v2379 = vpop.f32.mrf.mxu0
      %v2380 = vadd.f32 0.0, %v2379
      %2381 = vmatmul.f32.gmra.mxu0 %v1982
      %v2382 = vpop.f32.mrf.mxu0
      %v2383 = vadd.f32 0.0, %v2382
      %2384 = vmatmul.f32.gmra.mxu0 %v1985
      %v2385 = vpop.f32.mrf.mxu0
      %v2386 = vadd.f32 0.0, %v2385
      %2387 = vmatmul.f32.gmra.mxu0 %v1988
      %v2388 = vpop.f32.mrf.mxu0
      %v2389 = vadd.f32 0.0, %v2388
      %2390 = vmatmul.f32.gmra.mxu0 %v1991
      %v2391 = vpop.f32.mrf.mxu0
      %v2392 = vadd.f32 0.0, %v2391
      %2393 = vmatmul.f32.gmra.mxu0 %v1994
      %v2394 = vpop.f32.mrf.mxu0
      %v2395 = vadd.f32 0.0, %v2394
      %2396 = vmatmul.f32.gmra.mxu0 %v1997
      %v2397 = vpop.f32.mrf.mxu0
      %v2398 = vadd.f32 0.0, %v2397
      %2399 = vmatmul.f32.gmra.mxu0 %v2000
      %v2400 = vpop.f32.mrf.mxu0
      %v2401 = vadd.f32 0.0, %v2400
      %2402 = vmatmul.f32.gmra.mxu0 %v2003
      %v2403 = vpop.f32.mrf.mxu0
      %v2404 = vadd.f32 0.0, %v2403
      %2405 = vmatmul.f32.gmra.mxu0 %v2006
      %v2406 = vpop.f32.mrf.mxu0
      %v2407 = vadd.f32 0.0, %v2406
      %2408 = vmatmul.f32.gmra.mxu0 %v2009
      %v2409 = vpop.f32.mrf.mxu0
      %v2410 = vadd.f32 0.0, %v2409
      %2411 = vmatmul.f32.gmra.mxu0 %v2012
      %v2412 = vpop.f32.mrf.mxu0
      %v2413 = vadd.f32 0.0, %v2412
      %2414 = vmatmul.f32.gmra.mxu0 %v2015
      %v2415 = vpop.f32.mrf.mxu0
      %v2416 = vadd.f32 0.0, %v2415
      %2417 = vmatmul.f32.gmra.mxu0 %v2018
      %v2418 = vpop.f32.mrf.mxu0
      %v2419 = vadd.f32 0.0, %v2418
      %2420 = vmatmul.f32.gmra.mxu0 %v2021
      %v2421 = vpop.f32.mrf.mxu0
      %v2422 = vadd.f32 0.0, %v2421
      %2423 = vmatmul.f32.gmra.mxu0 %v2024
      %v2424 = vpop.f32.mrf.mxu0
      %v2425 = vadd.f32 0.0, %v2424
      %2426 = vmatmul.f32.gmra.mxu0 %v2027
      %v2427 = vpop.f32.mrf.mxu0
      %v2428 = vadd.f32 0.0, %v2427
      %2429 = vmatmul.f32.gmra.mxu0 %v2030
      %v2430 = vpop.f32.mrf.mxu0
      %v2431 = vadd.f32 0.0, %v2430
      %2432 = vmatmul.f32.gmra.mxu0 %v2033
      %v2433 = vpop.f32.mrf.mxu0
      %v2434 = vadd.f32 0.0, %v2433
      %2435 = vmatmul.f32.gmra.mxu0 %v2036
      %v2436 = vpop.f32.mrf.mxu0
      %v2437 = vadd.f32 0.0, %v2436
      %2438 = vmatmul.f32.gmra.mxu0 %v2039
      %v2439 = vpop.f32.mrf.mxu0
      %v2440 = vadd.f32 0.0, %v2439
      %2441 = vmatmul.f32.gmra.mxu0 %v2042
      %v2442 = vpop.f32.mrf.mxu0
      %v2443 = vadd.f32 0.0, %v2442
      %2444 = vmatmul.f32.gmra.mxu0 %v2045
      %v2445 = vpop.f32.mrf.mxu0
      %v2446 = vadd.f32 0.0, %v2445
      %2447 = vmatmul.f32.gmra.mxu0 %v2048
      %v2448 = vpop.f32.mrf.mxu0
      %v2449 = vadd.f32 0.0, %v2448
      %2450 = vmatmul.f32.gmra.mxu0 %v2051
      %v2451 = vpop.f32.mrf.mxu0
      %v2452 = vadd.f32 0.0, %v2451
      %2453 = vmatmul.f32.gmra.mxu0 %v2054
      %v2454 = vpop.f32.mrf.mxu0
      %v2455 = vadd.f32 0.0, %v2454
      %2456 = vmatmul.f32.gmra.mxu0 %v2057
      %v2457 = vpop.f32.mrf.mxu0
      %v2458 = vadd.f32 0.0, %v2457
      %2459 = vmatmul.f32.gmra.mxu0 %v2060
      %v2460 = vpop.f32.mrf.mxu0
      %v2461 = vadd.f32 0.0, %v2460
      %2462 = vmatmul.f32.gmra.mxu0 %v2063
      %v2463 = vpop.f32.mrf.mxu0
      %v2464 = vadd.f32 0.0, %v2463
      %2465 = vmatmul.f32.gmra.mxu0 %v2066
      %v2466 = vpop.f32.mrf.mxu0
      %v2467 = vadd.f32 0.0, %v2466
      %2468 = vmatmul.f32.gmra.mxu0 %v2069
      %v2469 = vpop.f32.mrf.mxu0
      %v2470 = vadd.f32 0.0, %v2469
      %2471 = vmatmul.f32.gmra.mxu0 %v2072
      %v2472 = vpop.f32.mrf.mxu0
      %v2473 = vadd.f32 0.0, %v2472
      %2474 = vmatmul.f32.gmra.mxu0 %v2075
      %v2475 = vpop.f32.mrf.mxu0
      %v2476 = vadd.f32 0.0, %v2475
      %2477 = vmatmul.f32.gmra.mxu0 %v2078
      %v2478 = vpop.f32.mrf.mxu0
      %v2479 = vadd.f32 0.0, %v2478
      %2480 = vmatmul.f32.gmra.mxu0 %v2081
      %v2481 = vpop.f32.mrf.mxu0
      %v2482 = vadd.f32 0.0, %v2481
      %2483 = vmatmul.f32.gmra.mxu0 %v2084
      %v2484 = vpop.f32.mrf.mxu0
      %v2485 = vadd.f32 0.0, %v2484
      %2486 = vmatmul.f32.gmra.mxu0 %v2087
      %v2487 = vpop.f32.mrf.mxu0
      %v2488 = vadd.f32 0.0, %v2487
      %2489 = vmatmul.f32.gmra.mxu0 %v2090
      %v2490 = vpop.f32.mrf.mxu0
      %v2491 = vadd.f32 0.0, %v2490
      %2492 = vmatmul.f32.gmra.mxu0 %v2093
      %v2493 = vpop.f32.mrf.mxu0
      %v2494 = vadd.f32 0.0, %v2493
      %2495 = vmatmul.f32.gmra.mxu0 %v2096
      %v2496 = vpop.f32.mrf.mxu0
      %v2497 = vadd.f32 0.0, %v2496
      %2498 = vmatmul.f32.gmra.mxu0 %v2099
      %v2499 = vpop.f32.mrf.mxu0
      %v2500 = vadd.f32 0.0, %v2499
      %2501 = vmatmul.f32.gmra.mxu0 %v2102
      %v2502 = vpop.f32.mrf.mxu0
      %v2503 = vadd.f32 0.0, %v2502
      %2504 = vmatmul.f32.gmra.mxu0 %v2105
      %v2505 = vpop.f32.mrf.mxu0
      %v2506 = vadd.f32 0.0, %v2505
      %2507 = vmatmul.f32.gmra.mxu0 %v2108
      %v2508 = vpop.f32.mrf.mxu0
      %v2509 = vadd.f32 0.0, %v2508
      %2510 = vmatmul.f32.gmra.mxu0 %v2111
      %v2511 = vpop.f32.mrf.mxu0
      %v2512 = vadd.f32 0.0, %v2511
      %2513 = vmatmul.f32.gmra.mxu0 %v2114
      %v2514 = vpop.f32.mrf.mxu0
      %v2515 = vadd.f32 0.0, %v2514
      %2516 = vmatmul.f32.gmra.mxu0 %v2117
      %v2517 = vpop.f32.mrf.mxu0
      %v2518 = vadd.f32 0.0, %v2517
      %2519 = vmatmul.f32.gmra.mxu0 %v2120
      %v2520 = vpop.f32.mrf.mxu0
      %v2521 = vadd.f32 0.0, %v2520
      %2522 = vmatmul.f32.gmra.mxu0 %v2123
      %v2523 = vpop.f32.mrf.mxu0
      %v2524 = vadd.f32 0.0, %v2523
      %2525 = vmatmul.f32.gmra.mxu0 %v2126
      %v2526 = vpop.f32.mrf.mxu0
      %v2527 = vadd.f32 0.0, %v2526
      %2528 = vmatmul.f32.gmra.mxu0 %v2129
      %v2529 = vpop.f32.mrf.mxu0
      %v2530 = vadd.f32 0.0, %v2529
      %2531 = vmatmul.f32.gmra.mxu0 %v2132
      %v2532 = vpop.f32.mrf.mxu0
      %v2533 = vadd.f32 0.0, %v2532
      %2534 = vmatmul.f32.gmra.mxu0 %v2135
      %v2535 = vpop.f32.mrf.mxu0
      %v2536 = vadd.f32 0.0, %v2535
      %2537 = vmatmul.f32.gmra.mxu0 %v2138
      %v2538 = vpop.f32.mrf.mxu0
      %v2539 = vadd.f32 0.0, %v2538
      %2540 = vmatmul.f32.gmra.mxu0 %v2141
      %v2541 = vpop.f32.mrf.mxu0
      %v2542 = vadd.f32 0.0, %v2541
      %2543 = vmatmul.f32.gmra.mxu0 %v2144
      %v2544 = vpop.f32.mrf.mxu0
      %v2545 = vadd.f32 0.0, %v2544
      %2546 = vmatmul.f32.gmra.mxu0 %v2147
      %v2547 = vpop.f32.mrf.mxu0
      %v2548 = vadd.f32 0.0, %v2547
      %2549 = vmatmul.f32.gmra.mxu0 %v2150
      %v2550 = vpop.f32.mrf.mxu0
      %v2551 = vadd.f32 0.0, %v2550
      %2552 = vmatmul.f32.gmra.mxu0 %v2153
      %v2553 = vpop.f32.mrf.mxu0
      %v2554 = vadd.f32 0.0, %v2553
      %2555 = vmatmul.f32.gmra.mxu0 %v2156
      %v2556 = vpop.f32.mrf.mxu0
      %v2557 = vadd.f32 0.0, %v2556
      %2558 = vmatmul.f32.gmra.mxu0 %v2159
      %v2559 = vpop.f32.mrf.mxu0
      %v2560 = vadd.f32 0.0, %v2559
      %2561 = vmatmul.f32.gmra.mxu0 %v2162
      %v2562 = vpop.f32.mrf.mxu0
      %v2563 = vadd.f32 0.0, %v2562
      %2564 = vmatmul.f32.gmra.mxu0 %v2165
      %v2565 = vpop.f32.mrf.mxu0
      %v2566 = vadd.f32 0.0, %v2565
      %2567 = vmatmul.f32.gmra.mxu0 %v2168
      %v2568 = vpop.f32.mrf.mxu0
      %v2569 = vadd.f32 0.0, %v2568
      %2570 = vmatmul.f32.gmra.mxu0 %v2171
      %v2571 = vpop.f32.mrf.mxu0
      %v2572 = vadd.f32 0.0, %v2571
      %2573 = vdwg.mxu0
      %v2574 = vadd.f32 %v673, %v2191
      %v2575 = vadd.f32 %v676, %v2194
      %v2576 = vadd.f32 %v679, %v2197
      %v2577 = vadd.f32 %v682, %v2200
      %v2578 = vadd.f32 %v1307, %v2203
      %v2579 = vadd.f32 %v1308, %v2206
      %v2580 = vadd.f32 %v1309, %v2209
      %v2581 = vadd.f32 %v1310, %v2212
      %v2582 = vadd.f32 %v1319, %v2215
      %v2583 = vadd.f32 %v1320, %v2218
      %v2584 = vadd.f32 %v1321, %v2221
      %v2585 = vadd.f32 %v1322, %v2224
      %v2586 = vadd.f32 %v1331, %v2227
      %v2587 = vadd.f32 %v1332, %v2230
      %v2588 = vadd.f32 %v1333, %v2233
      %v2589 = vadd.f32 %v1334, %v2236
      %v2590 = vadd.f32 %v1343, %v2239
      %v2591 = vadd.f32 %v1344, %v2242
      %v2592 = vadd.f32 %v1345, %v2245
      %v2593 = vadd.f32 %v1346, %v2248
      %v2594 = vadd.f32 %v1355, %v2251
      %v2595 = vadd.f32 %v1356, %v2254
      %v2596 = vadd.f32 %v1357, %v2257
      %v2597 = vadd.f32 %v1358, %v2260
      %v2598 = vadd.f32 %v1367, %v2263
      %v2599 = vadd.f32 %v1368, %v2266
      %v2600 = vadd.f32 %v1369, %v2269
      %v2601 = vadd.f32 %v1370, %v2272
      %v2602 = vadd.f32 %v1379, %v2275
      %v2603 = vadd.f32 %v1380, %v2278
      %v2604 = vadd.f32 %v1381, %v2281
      %v2605 = vadd.f32 %v1382, %v2284
      %v2606 = vadd.f32 %v1391, %v2287
      %v2607 = vadd.f32 %v1392, %v2290
      %v2608 = vadd.f32 %v1393, %v2293
      %v2609 = vadd.f32 %v1394, %v2296
      %v2610 = vadd.f32 %v1403, %v2299
      %v2611 = vadd.f32 %v1404, %v2302
      %v2612 = vadd.f32 %v1405, %v2305
      %v2613 = vadd.f32 %v1406, %v2308
      %v2614 = vadd.f32 %v1415, %v2311
      %v2615 = vadd.f32 %v1416, %v2314
      %v2616 = vadd.f32 %v1417, %v2317
      %v2617 = vadd.f32 %v1418, %v2320
      %v2618 = vadd.f32 %v1427, %v2323
      %v2619 = vadd.f32 %v1428, %v2326
      %v2620 = vadd.f32 %v1429, %v2329
      %v2621 = vadd.f32 %v1430, %v2332
      %v2622 = vadd.f32 %v1439, %v2335
      %v2623 = vadd.f32 %v1440, %v2338
      %v2624 = vadd.f32 %v1441, %v2341
      %v2625 = vadd.f32 %v1442, %v2344
      %v2626 = vadd.f32 %v1451, %v2347
      %v2627 = vadd.f32 %v1452, %v2350
      %v2628 = vadd.f32 %v1453, %v2353
      %v2629 = vadd.f32 %v1454, %v2356
      %v2630 = vadd.f32 %v1463, %v2359
      %v2631 = vadd.f32 %v1464, %v2362
      %v2632 = vadd.f32 %v1465, %v2365
      %v2633 = vadd.f32 %v1466, %v2368
      %v2634 = vadd.f32 %v1475, %v2371
      %v2635 = vadd.f32 %v1476, %v2374
      %v2636 = vadd.f32 %v1477, %v2377
      %v2637 = vadd.f32 %v1478, %v2380
      %v2638 = vadd.f32 %v1487, %v2383
      %v2639 = vadd.f32 %v1488, %v2386
      %v2640 = vadd.f32 %v1489, %v2389
      %v2641 = vadd.f32 %v1490, %v2392
      %v2642 = vadd.f32 %v1499, %v2395
      %v2643 = vadd.f32 %v1500, %v2398
      %v2644 = vadd.f32 %v1501, %v2401
      %v2645 = vadd.f32 %v1502, %v2404
      %v2646 = vadd.f32 %v1511, %v2407
      %v2647 = vadd.f32 %v1512, %v2410
      %v2648 = vadd.f32 %v1513, %v2413
      %v2649 = vadd.f32 %v1514, %v2416
      %v2650 = vadd.f32 %v1523, %v2419
      %v2651 = vadd.f32 %v1524, %v2422
      %v2652 = vadd.f32 %v1525, %v2425
      %v2653 = vadd.f32 %v1526, %v2428
      %v2654 = vadd.f32 %v1535, %v2431
      %v2655 = vadd.f32 %v1536, %v2434
      %v2656 = vadd.f32 %v1537, %v2437
      %v2657 = vadd.f32 %v1538, %v2440
      %v2658 = vadd.f32 %v1547, %v2443
      %v2659 = vadd.f32 %v1548, %v2446
      %v2660 = vadd.f32 %v1549, %v2449
      %v2661 = vadd.f32 %v1550, %v2452
      %v2662 = vadd.f32 %v1559, %v2455
      %v2663 = vadd.f32 %v1560, %v2458
      %v2664 = vadd.f32 %v1561, %v2461
      %v2665 = vadd.f32 %v1562, %v2464
      %v2666 = vadd.f32 %v1571, %v2467
      %v2667 = vadd.f32 %v1572, %v2470
      %v2668 = vadd.f32 %v1573, %v2473
      %v2669 = vadd.f32 %v1574, %v2476
      %v2670 = vadd.f32 %v1583, %v2479
      %v2671 = vadd.f32 %v1584, %v2482
      %v2672 = vadd.f32 %v1585, %v2485
      %v2673 = vadd.f32 %v1586, %v2488
      %v2674 = vadd.f32 %v1595, %v2491
      %v2675 = vadd.f32 %v1596, %v2494
      %v2676 = vadd.f32 %v1597, %v2497
      %v2677 = vadd.f32 %v1598, %v2500
      %v2678 = vadd.f32 %v1607, %v2503
      %v2679 = vadd.f32 %v1608, %v2506
      %v2680 = vadd.f32 %v1609, %v2509
      %v2681 = vadd.f32 %v1610, %v2512
      %v2682 = vadd.f32 %v1619, %v2515
      %v2683 = vadd.f32 %v1620, %v2518
      %v2684 = vadd.f32 %v1621, %v2521
      %v2685 = vadd.f32 %v1622, %v2524
      %v2686 = vadd.f32 %v1631, %v2527
      %v2687 = vadd.f32 %v1632, %v2530
      %v2688 = vadd.f32 %v1633, %v2533
      %v2689 = vadd.f32 %v1634, %v2536
      %v2690 = vadd.f32 %v1643, %v2539
      %v2691 = vadd.f32 %v1644, %v2542
      %v2692 = vadd.f32 %v1645, %v2545
      %v2693 = vadd.f32 %v1646, %v2548
      %v2694 = vadd.f32 %v1655, %v2551
      %v2695 = vadd.f32 %v1656, %v2554
      %v2696 = vadd.f32 %v1657, %v2557
      %v2697 = vadd.f32 %v1658, %v2560
      %v2698 = vadd.f32 %v1288, %v2563
      %v2699 = vadd.f32 %v1291, %v2566
      %v2700 = vadd.f32 %v1294, %v2569
      %v2701 = vadd.f32 %v1297, %v2572
      %s2702 = sld [smem:[#allocation2]]
      %vm2703 = vcmp.ge.f32.partialorder %v2574, 0.0
      %vm2704 = vcmp.ge.f32.partialorder %v2575, 0.0
      %vm2705 = vcmp.ge.f32.partialorder %v2576, 0.0
      %vm2706 = vcmp.ge.f32.partialorder %v2577, 0.0
      %vm2707 = vcmp.ge.f32.partialorder %v2578, 0.0
      %vm2708 = vcmp.ge.f32.partialorder %v2579, 0.0
      %vm2709 = vcmp.ge.f32.partialorder %v2580, 0.0
      %vm2710 = vcmp.ge.f32.partialorder %v2581, 0.0
      %vm2711 = vcmp.ge.f32.partialorder %v2582, 0.0
      %vm2712 = vcmp.ge.f32.partialorder %v2583, 0.0
      %vm2713 = vcmp.ge.f32.partialorder %v2584, 0.0
      %vm2714 = vcmp.ge.f32.partialorder %v2585, 0.0
      %vm2715 = vcmp.ge.f32.partialorder %v2586, 0.0
      %vm2716 = vcmp.ge.f32.partialorder %v2587, 0.0
      %vm2717 = vcmp.ge.f32.partialorder %v2588, 0.0
      %vm2718 = vcmp.ge.f32.partialorder %v2589, 0.0
      %vm2719 = vcmp.ge.f32.partialorder %v2590, 0.0
      %vm2720 = vcmp.ge.f32.partialorder %v2591, 0.0
      %vm2721 = vcmp.ge.f32.partialorder %v2592, 0.0
      %vm2722 = vcmp.ge.f32.partialorder %v2593, 0.0
      %vm2723 = vcmp.ge.f32.partialorder %v2594, 0.0
      %vm2724 = vcmp.ge.f32.partialorder %v2595, 0.0
      %vm2725 = vcmp.ge.f32.partialorder %v2596, 0.0
      %vm2726 = vcmp.ge.f32.partialorder %v2597, 0.0
      %vm2727 = vcmp.ge.f32.partialorder %v2598, 0.0
      %vm2728 = vcmp.ge.f32.partialorder %v2599, 0.0
      %vm2729 = vcmp.ge.f32.partialorder %v2600, 0.0
      %vm2730 = vcmp.ge.f32.partialorder %v2601, 0.0
      %vm2731 = vcmp.ge.f32.partialorder %v2602, 0.0
      %vm2732 = vcmp.ge.f32.partialorder %v2603, 0.0
      %vm2733 = vcmp.ge.f32.partialorder %v2604, 0.0
      %vm2734 = vcmp.ge.f32.partialorder %v2605, 0.0
      %vm2735 = vcmp.ge.f32.partialorder %v2606, 0.0
      %vm2736 = vcmp.ge.f32.partialorder %v2607, 0.0
      %vm2737 = vcmp.ge.f32.partialorder %v2608, 0.0
      %vm2738 = vcmp.ge.f32.partialorder %v2609, 0.0
      %vm2739 = vcmp.ge.f32.partialorder %v2610, 0.0
      %vm2740 = vcmp.ge.f32.partialorder %v2611, 0.0
      %vm2741 = vcmp.ge.f32.partialorder %v2612, 0.0
      %vm2742 = vcmp.ge.f32.partialorder %v2613, 0.0
      %vm2743 = vcmp.ge.f32.partialorder %v2614, 0.0
      %vm2744 = vcmp.ge.f32.partialorder %v2615, 0.0
      %vm2745 = vcmp.ge.f32.partialorder %v2616, 0.0
      %vm2746 = vcmp.ge.f32.partialorder %v2617, 0.0
      %vm2747 = vcmp.ge.f32.partialorder %v2618, 0.0
      %vm2748 = vcmp.ge.f32.partialorder %v2619, 0.0
      %vm2749 = vcmp.ge.f32.partialorder %v2620, 0.0
      %vm2750 = vcmp.ge.f32.partialorder %v2621, 0.0
      %vm2751 = vcmp.ge.f32.partialorder %v2622, 0.0
      %vm2752 = vcmp.ge.f32.partialorder %v2623, 0.0
      %vm2753 = vcmp.ge.f32.partialorder %v2624, 0.0
      %vm2754 = vcmp.ge.f32.partialorder %v2625, 0.0
      %vm2755 = vcmp.ge.f32.partialorder %v2626, 0.0
      %vm2756 = vcmp.ge.f32.partialorder %v2627, 0.0
      %vm2757 = vcmp.ge.f32.partialorder %v2628, 0.0
      %vm2758 = vcmp.ge.f32.partialorder %v2629, 0.0
      %vm2759 = vcmp.ge.f32.partialorder %v2630, 0.0
      %vm2760 = vcmp.ge.f32.partialorder %v2631, 0.0
      %vm2761 = vcmp.ge.f32.partialorder %v2632, 0.0
      %vm2762 = vcmp.ge.f32.partialorder %v2633, 0.0
      %vm2763 = vcmp.ge.f32.partialorder %v2634, 0.0
      %vm2764 = vcmp.ge.f32.partialorder %v2635, 0.0
      %vm2765 = vcmp.ge.f32.partialorder %v2636, 0.0
      %vm2766 = vcmp.ge.f32.partialorder %v2637, 0.0
      %vm2767 = vcmp.ge.f32.partialorder %v2638, 0.0
      %vm2768 = vcmp.ge.f32.partialorder %v2639, 0.0
      %vm2769 = vcmp.ge.f32.partialorder %v2640, 0.0
      %vm2770 = vcmp.ge.f32.partialorder %v2641, 0.0
      %vm2771 = vcmp.ge.f32.partialorder %v2642, 0.0
      %vm2772 = vcmp.ge.f32.partialorder %v2643, 0.0
      %vm2773 = vcmp.ge.f32.partialorder %v2644, 0.0
      %vm2774 = vcmp.ge.f32.partialorder %v2645, 0.0
      %vm2775 = vcmp.ge.f32.partialorder %v2646, 0.0
      %vm2776 = vcmp.ge.f32.partialorder %v2647, 0.0
      %vm2777 = vcmp.ge.f32.partialorder %v2648, 0.0
      %vm2778 = vcmp.ge.f32.partialorder %v2649, 0.0
      %vm2779 = vcmp.ge.f32.partialorder %v2650, 0.0
      %vm2780 = vcmp.ge.f32.partialorder %v2651, 0.0
      %vm2781 = vcmp.ge.f32.partialorder %v2652, 0.0
      %vm2782 = vcmp.ge.f32.partialorder %v2653, 0.0
      %vm2783 = vcmp.ge.f32.partialorder %v2654, 0.0
      %vm2784 = vcmp.ge.f32.partialorder %v2655, 0.0
      %vm2785 = vcmp.ge.f32.partialorder %v2656, 0.0
      %vm2786 = vcmp.ge.f32.partialorder %v2657, 0.0
      %vm2787 = vcmp.ge.f32.partialorder %v2658, 0.0
      %vm2788 = vcmp.ge.f32.partialorder %v2659, 0.0
      %vm2789 = vcmp.ge.f32.partialorder %v2660, 0.0
      %vm2790 = vcmp.ge.f32.partialorder %v2661, 0.0
      %vm2791 = vcmp.ge.f32.partialorder %v2662, 0.0
      %vm2792 = vcmp.ge.f32.partialorder %v2663, 0.0
      %vm2793 = vcmp.ge.f32.partialorder %v2664, 0.0
      %vm2794 = vcmp.ge.f32.partialorder %v2665, 0.0
      %vm2795 = vcmp.ge.f32.partialorder %v2666, 0.0
      %vm2796 = vcmp.ge.f32.partialorder %v2667, 0.0
      %vm2797 = vcmp.ge.f32.partialorder %v2668, 0.0
      %vm2798 = vcmp.ge.f32.partialorder %v2669, 0.0
      %vm2799 = vcmp.ge.f32.partialorder %v2670, 0.0
      %vm2800 = vcmp.ge.f32.partialorder %v2671, 0.0
      %vm2801 = vcmp.ge.f32.partialorder %v2672, 0.0
      %vm2802 = vcmp.ge.f32.partialorder %v2673, 0.0
      %vm2803 = vcmp.ge.f32.partialorder %v2674, 0.0
      %vm2804 = vcmp.ge.f32.partialorder %v2675, 0.0
      %vm2805 = vcmp.ge.f32.partialorder %v2676, 0.0
      %vm2806 = vcmp.ge.f32.partialorder %v2677, 0.0
      %vm2807 = vcmp.ge.f32.partialorder %v2678, 0.0
      %vm2808 = vcmp.ge.f32.partialorder %v2679, 0.0
      %vm2809 = vcmp.ge.f32.partialorder %v2680, 0.0
      %vm2810 = vcmp.ge.f32.partialorder %v2681, 0.0
      %vm2811 = vcmp.ge.f32.partialorder %v2682, 0.0
      %vm2812 = vcmp.ge.f32.partialorder %v2683, 0.0
      %vm2813 = vcmp.ge.f32.partialorder %v2684, 0.0
      %vm2814 = vcmp.ge.f32.partialorder %v2685, 0.0
      %vm2815 = vcmp.ge.f32.partialorder %v2686, 0.0
      %vm2816 = vcmp.ge.f32.partialorder %v2687, 0.0
      %vm2817 = vcmp.ge.f32.partialorder %v2688, 0.0
      %vm2818 = vcmp.ge.f32.partialorder %v2689, 0.0
      %vm2819 = vcmp.ge.f32.partialorder %v2690, 0.0
      %vm2820 = vcmp.ge.f32.partialorder %v2691, 0.0
      %vm2821 = vcmp.ge.f32.partialorder %v2692, 0.0
      %vm2822 = vcmp.ge.f32.partialorder %v2693, 0.0
      %vm2823 = vcmp.ge.f32.partialorder %v2694, 0.0
      %vm2824 = vcmp.ge.f32.partialorder %v2695, 0.0
      %vm2825 = vcmp.ge.f32.partialorder %v2696, 0.0
      %vm2826 = vcmp.ge.f32.partialorder %v2697, 0.0
      %vm2827 = vcmp.ge.f32.partialorder %v2698, 0.0
      %vm2828 = vcmp.ge.f32.partialorder %v2699, 0.0
      %vm2829 = vcmp.ge.f32.partialorder %v2700, 0.0
      %vm2830 = vcmp.ge.f32.partialorder %v2701, 0.0
      %v2831 = vstv %s2702
      %v2832 = vmul.f32 %v2831, %v2574
      %v2833 = vmul.f32 %v2831, %v2575
      %v2834 = vmul.f32 %v2831, %v2576
      %v2835 = vmul.f32 %v2831, %v2577
      %v2836 = vmul.f32 %v2831, %v2578
      %v2837 = vmul.f32 %v2831, %v2579
      %v2838 = vmul.f32 %v2831, %v2580
      %v2839 = vmul.f32 %v2831, %v2581
      %v2840 = vmul.f32 %v2831, %v2582
      %v2841 = vmul.f32 %v2831, %v2583
      %v2842 = vmul.f32 %v2831, %v2584
      %v2843 = vmul.f32 %v2831, %v2585
      %v2844 = vmul.f32 %v2831, %v2586
      %v2845 = vmul.f32 %v2831, %v2587
      %v2846 = vmul.f32 %v2831, %v2588
      %v2847 = vmul.f32 %v2831, %v2589
      %v2848 = vmul.f32 %v2831, %v2590
      %v2849 = vmul.f32 %v2831, %v2591
      %v2850 = vmul.f32 %v2831, %v2592
      %v2851 = vmul.f32 %v2831, %v2593
      %v2852 = vmul.f32 %v2831, %v2594
      %v2853 = vmul.f32 %v2831, %v2595
      %v2854 = vmul.f32 %v2831, %v2596
      %v2855 = vmul.f32 %v2831, %v2597
      %v2856 = vmul.f32 %v2831, %v2598
      %v2857 = vmul.f32 %v2831, %v2599
      %v2858 = vmul.f32 %v2831, %v2600
      %v2859 = vmul.f32 %v2831, %v2601
      %v2860 = vmul.f32 %v2831, %v2602
      %v2861 = vmul.f32 %v2831, %v2603
      %v2862 = vmul.f32 %v2831, %v2604
      %v2863 = vmul.f32 %v2831, %v2605
      %v2864 = vmul.f32 %v2831, %v2606
      %v2865 = vmul.f32 %v2831, %v2607
      %v2866 = vmul.f32 %v2831, %v2608
      %v2867 = vmul.f32 %v2831, %v2609
      %v2868 = vmul.f32 %v2831, %v2610
      %v2869 = vmul.f32 %v2831, %v2611
      %v2870 = vmul.f32 %v2831, %v2612
      %v2871 = vmul.f32 %v2831, %v2613
      %v2872 = vmul.f32 %v2831, %v2614
      %v2873 = vmul.f32 %v2831, %v2615
      %v2874 = vmul.f32 %v2831, %v2616
      %v2875 = vmul.f32 %v2831, %v2617
      %v2876 = vmul.f32 %v2831, %v2618
      %v2877 = vmul.f32 %v2831, %v2619
      %v2878 = vmul.f32 %v2831, %v2620
      %v2879 = vmul.f32 %v2831, %v2621
      %v2880 = vmul.f32 %v2831, %v2622
      %v2881 = vmul.f32 %v2831, %v2623
      %v2882 = vmul.f32 %v2831, %v2624
      %v2883 = vmul.f32 %v2831, %v2625
      %v2884 = vmul.f32 %v2831, %v2626
      %v2885 = vmul.f32 %v2831, %v2627
      %v2886 = vmul.f32 %v2831, %v2628
      %v2887 = vmul.f32 %v2831, %v2629
      %v2888 = vmul.f32 %v2831, %v2630
      %v2889 = vmul.f32 %v2831, %v2631
      %v2890 = vmul.f32 %v2831, %v2632
      %v2891 = vmul.f32 %v2831, %v2633
      %v2892 = vmul.f32 %v2831, %v2634
      %v2893 = vmul.f32 %v2831, %v2635
      %v2894 = vmul.f32 %v2831, %v2636
      %v2895 = vmul.f32 %v2831, %v2637
      %v2896 = vmul.f32 %v2831, %v2638
      %v2897 = vmul.f32 %v2831, %v2639
      %v2898 = vmul.f32 %v2831, %v2640
      %v2899 = vmul.f32 %v2831, %v2641
      %v2900 = vmul.f32 %v2831, %v2642
      %v2901 = vmul.f32 %v2831, %v2643
      %v2902 = vmul.f32 %v2831, %v2644
      %v2903 = vmul.f32 %v2831, %v2645
      %v2904 = vmul.f32 %v2831, %v2646
      %v2905 = vmul.f32 %v2831, %v2647
      %v2906 = vmul.f32 %v2831, %v2648
      %v2907 = vmul.f32 %v2831, %v2649
      %v2908 = vmul.f32 %v2831, %v2650
      %v2909 = vmul.f32 %v2831, %v2651
      %v2910 = vmul.f32 %v2831, %v2652
      %v2911 = vmul.f32 %v2831, %v2653
      %v2912 = vmul.f32 %v2831, %v2654
      %v2913 = vmul.f32 %v2831, %v2655
      %v2914 = vmul.f32 %v2831, %v2656
      %v2915 = vmul.f32 %v2831, %v2657
      %v2916 = vmul.f32 %v2831, %v2658
      %v2917 = vmul.f32 %v2831, %v2659
      %v2918 = vmul.f32 %v2831, %v2660
      %v2919 = vmul.f32 %v2831, %v2661
      %v2920 = vmul.f32 %v2831, %v2662
      %v2921 = vmul.f32 %v2831, %v2663
      %v2922 = vmul.f32 %v2831, %v2664
      %v2923 = vmul.f32 %v2831, %v2665
      %v2924 = vmul.f32 %v2831, %v2666
      %v2925 = vmul.f32 %v2831, %v2667
      %v2926 = vmul.f32 %v2831, %v2668
      %v2927 = vmul.f32 %v2831, %v2669
      %v2928 = vmul.f32 %v2831, %v2670
      %v2929 = vmul.f32 %v2831, %v2671
      %v2930 = vmul.f32 %v2831, %v2672
      %v2931 = vmul.f32 %v2831, %v2673
      %v2932 = vmul.f32 %v2831, %v2674
      %v2933 = vmul.f32 %v2831, %v2675
      %v2934 = vmul.f32 %v2831, %v2676
      %v2935 = vmul.f32 %v2831, %v2677
      %v2936 = vmul.f32 %v2831, %v2678
      %v2937 = vmul.f32 %v2831, %v2679
      %v2938 = vmul.f32 %v2831, %v2680
      %v2939 = vmul.f32 %v2831, %v2681
      %v2940 = vmul.f32 %v2831, %v2682
      %v2941 = vmul.f32 %v2831, %v2683
      %v2942 = vmul.f32 %v2831, %v2684
      %v2943 = vmul.f32 %v2831, %v2685
      %v2944 = vmul.f32 %v2831, %v2686
      %v2945 = vmul.f32 %v2831, %v2687
      %v2946 = vmul.f32 %v2831, %v2688
      %v2947 = vmul.f32 %v2831, %v2689
      %v2948 = vmul.f32 %v2831, %v2690
      %v2949 = vmul.f32 %v2831, %v2691
      %v2950 = vmul.f32 %v2831, %v2692
      %v2951 = vmul.f32 %v2831, %v2693
      %v2952 = vmul.f32 %v2831, %v2694
      %v2953 = vmul.f32 %v2831, %v2695
      %v2954 = vmul.f32 %v2831, %v2696
      %v2955 = vmul.f32 %v2831, %v2697
      %v2956 = vmul.f32 %v2831, %v2698
      %v2957 = vmul.f32 %v2831, %v2699
      %v2958 = vmul.f32 %v2831, %v2700
      %v2959 = vmul.f32 %v2831, %v2701
      %v2960 = vsel %vm2703, %v2574, %v2832
      %v2961 = vsel %vm2704, %v2575, %v2833
      %v2962 = vsel %vm2705, %v2576, %v2834
      %v2963 = vsel %vm2706, %v2577, %v2835
      %v2964 = vsel %vm2707, %v2578, %v2836
      %v2965 = vsel %vm2708, %v2579, %v2837
      %v2966 = vsel %vm2709, %v2580, %v2838
      %v2967 = vsel %vm2710, %v2581, %v2839
      %v2968 = vsel %vm2711, %v2582, %v2840
      %v2969 = vsel %vm2712, %v2583, %v2841
      %v2970 = vsel %vm2713, %v2584, %v2842
      %v2971 = vsel %vm2714, %v2585, %v2843
      %v2972 = vsel %vm2715, %v2586, %v2844
      %v2973 = vsel %vm2716, %v2587, %v2845
      %v2974 = vsel %vm2717, %v2588, %v2846
      %v2975 = vsel %vm2718, %v2589, %v2847
      %v2976 = vsel %vm2719, %v2590, %v2848
      %v2977 = vsel %vm2720, %v2591, %v2849
      %v2978 = vsel %vm2721, %v2592, %v2850
      %v2979 = vsel %vm2722, %v2593, %v2851
      %v2980 = vsel %vm2723, %v2594, %v2852
      %v2981 = vsel %vm2724, %v2595, %v2853
      %v2982 = vsel %vm2725, %v2596, %v2854
      %v2983 = vsel %vm2726, %v2597, %v2855
      %v2984 = vsel %vm2727, %v2598, %v2856
      %v2985 = vsel %vm2728, %v2599, %v2857
      %v2986 = vsel %vm2729, %v2600, %v2858
      %v2987 = vsel %vm2730, %v2601, %v2859
      %v2988 = vsel %vm2731, %v2602, %v2860
      %v2989 = vsel %vm2732, %v2603, %v2861
      %v2990 = vsel %vm2733, %v2604, %v2862
      %v2991 = vsel %vm2734, %v2605, %v2863
      %v2992 = vsel %vm2735, %v2606, %v2864
      %v2993 = vsel %vm2736, %v2607, %v2865
      %v2994 = vsel %vm2737, %v2608, %v2866
      %v2995 = vsel %vm2738, %v2609, %v2867
      %v2996 = vsel %vm2739, %v2610, %v2868
      %v2997 = vsel %vm2740, %v2611, %v2869
      %v2998 = vsel %vm2741, %v2612, %v2870
      %v2999 = vsel %vm2742, %v2613, %v2871
      %v3000 = vsel %vm2743, %v2614, %v2872
      %v3001 = vsel %vm2744, %v2615, %v2873
      %v3002 = vsel %vm2745, %v2616, %v2874
      %v3003 = vsel %vm2746, %v2617, %v2875
      %v3004 = vsel %vm2747, %v2618, %v2876
      %v3005 = vsel %vm2748, %v2619, %v2877
      %v3006 = vsel %vm2749, %v2620, %v2878
      %v3007 = vsel %vm2750, %v2621, %v2879
      %v3008 = vsel %vm2751, %v2622, %v2880
      %v3009 = vsel %vm2752, %v2623, %v2881
      %v3010 = vsel %vm2753, %v2624, %v2882
      %v3011 = vsel %vm2754, %v2625, %v2883
      %v3012 = vsel %vm2755, %v2626, %v2884
      %v3013 = vsel %vm2756, %v2627, %v2885
      %v3014 = vsel %vm2757, %v2628, %v2886
      %v3015 = vsel %vm2758, %v2629, %v2887
      %v3016 = vsel %vm2759, %v2630, %v2888
      %v3017 = vsel %vm2760, %v2631, %v2889
      %v3018 = vsel %vm2761, %v2632, %v2890
      %v3019 = vsel %vm2762, %v2633, %v2891
      %v3020 = vsel %vm2763, %v2634, %v2892
      %v3021 = vsel %vm2764, %v2635, %v2893
      %v3022 = vsel %vm2765, %v2636, %v2894
      %v3023 = vsel %vm2766, %v2637, %v2895
      %v3024 = vsel %vm2767, %v2638, %v2896
      %v3025 = vsel %vm2768, %v2639, %v2897
      %v3026 = vsel %vm2769, %v2640, %v2898
      %v3027 = vsel %vm2770, %v2641, %v2899
      %v3028 = vsel %vm2771, %v2642, %v2900
      %v3029 = vsel %vm2772, %v2643, %v2901
      %v3030 = vsel %vm2773, %v2644, %v2902
      %v3031 = vsel %vm2774, %v2645, %v2903
      %v3032 = vsel %vm2775, %v2646, %v2904
      %v3033 = vsel %vm2776, %v2647, %v2905
      %v3034 = vsel %vm2777, %v2648, %v2906
      %v3035 = vsel %vm2778, %v2649, %v2907
      %v3036 = vsel %vm2779, %v2650, %v2908
      %v3037 = vsel %vm2780, %v2651, %v2909
      %v3038 = vsel %vm2781, %v2652, %v2910
      %v3039 = vsel %vm2782, %v2653, %v2911
      %v3040 = vsel %vm2783, %v2654, %v2912
      %v3041 = vsel %vm2784, %v2655, %v2913
      %v3042 = vsel %vm2785, %v2656, %v2914
      %v3043 = vsel %vm2786, %v2657, %v2915
      %v3044 = vsel %vm2787, %v2658, %v2916
      %v3045 = vsel %vm2788, %v2659, %v2917
      %v3046 = vsel %vm2789, %v2660, %v2918
      %v3047 = vsel %vm2790, %v2661, %v2919
      %v3048 = vsel %vm2791, %v2662, %v2920
      %v3049 = vsel %vm2792, %v2663, %v2921
      %v3050 = vsel %vm2793, %v2664, %v2922
      %v3051 = vsel %vm2794, %v2665, %v2923
      %v3052 = vsel %vm2795, %v2666, %v2924
      %v3053 = vsel %vm2796, %v2667, %v2925
      %v3054 = vsel %vm2797, %v2668, %v2926
      %v3055 = vsel %vm2798, %v2669, %v2927
      %v3056 = vsel %vm2799, %v2670, %v2928
      %v3057 = vsel %vm2800, %v2671, %v2929
      %v3058 = vsel %vm2801, %v2672, %v2930
      %v3059 = vsel %vm2802, %v2673, %v2931
      %v3060 = vsel %vm2803, %v2674, %v2932
      %v3061 = vsel %vm2804, %v2675, %v2933
      %v3062 = vsel %vm2805, %v2676, %v2934
      %v3063 = vsel %vm2806, %v2677, %v2935
      %v3064 = vsel %vm2807, %v2678, %v2936
      %v3065 = vsel %vm2808, %v2679, %v2937
      %v3066 = vsel %vm2809, %v2680, %v2938
      %v3067 = vsel %vm2810, %v2681, %v2939
      %v3068 = vsel %vm2811, %v2682, %v2940
      %v3069 = vsel %vm2812, %v2683, %v2941
      %v3070 = vsel %vm2813, %v2684, %v2942
      %v3071 = vsel %vm2814, %v2685, %v2943
      %v3072 = vsel %vm2815, %v2686, %v2944
      %v3073 = vsel %vm2816, %v2687, %v2945
      %v3074 = vsel %vm2817, %v2688, %v2946
      %v3075 = vsel %vm2818, %v2689, %v2947
      %v3076 = vsel %vm2819, %v2690, %v2948
      %v3077 = vsel %vm2820, %v2691, %v2949
      %v3078 = vsel %vm2821, %v2692, %v2950
      %v3079 = vsel %vm2822, %v2693, %v2951
      %v3080 = vsel %vm2823, %v2694, %v2952
      %v3081 = vsel %vm2824, %v2695, %v2953
      %v3082 = vsel %vm2825, %v2696, %v2954
      %v3083 = vsel %vm2826, %v2697, %v2955
      %v3084 = vsel %vm2827, %v2698, %v2956
      %v3085 = vsel %vm2828, %v2699, %v2957
      %v3086 = vsel %vm2829, %v2700, %v2958
      %v3087 = vsel %vm2830, %v2701, %v2959
      %3088 = vst.msk [vmem:[%s326] sm:$0xff] %vm1788, %v2960
      %3089 = vst.msk [vmem:[%s326 + $0x8] sm:$0xff] %vm1788, %v2961
      %3090 = vst.msk [vmem:[%s326 + $0x10] sm:$0xff] %vm1788, %v2962
      %3091 = vst.msk [vmem:[%s326 + $0x18] sm:$0xff] %vm1788, %v2963
      %3092 = vst.msk [vmem:[%s326 + $0x20] sm:$0xff] %vm1788, %v2964
      %3093 = vst.msk [vmem:[%s326 + $0x28] sm:$0xff] %vm1788, %v2965
      %3094 = vst.msk [vmem:[%s326 + $0x30] sm:$0xff] %vm1788, %v2966
      %3095 = vst.msk [vmem:[%s326 + $0x38] sm:$0xff] %vm1788, %v2967
      %3096 = vst.msk [vmem:[%s326 + $0x40] sm:$0xff] %vm1788, %v2968
      %3097 = vst.msk [vmem:[%s326 + $0x48] sm:$0xff] %vm1788, %v2969
      %3098 = vst.msk [vmem:[%s326 + $0x50] sm:$0xff] %vm1788, %v2970
      %3099 = vst.msk [vmem:[%s326 + $0x58] sm:$0xff] %vm1788, %v2971
      %3100 = vst.msk [vmem:[%s326 + $0x60] sm:$0xff] %vm1788, %v2972
      %3101 = vst.msk [vmem:[%s326 + $0x68] sm:$0xff] %vm1788, %v2973
      %3102 = vst.msk [vmem:[%s326 + $0x70] sm:$0xff] %vm1788, %v2974
      %3103 = vst.msk [vmem:[%s326 + $0x78] sm:$0xff] %vm1788, %v2975
      %3104 = vst.msk [vmem:[%s326 + $0x80] sm:$0xff] %vm1788, %v2976
      %3105 = vst.msk [vmem:[%s326 + $0x88] sm:$0xff] %vm1788, %v2977
      %3106 = vst.msk [vmem:[%s326 + $0x90] sm:$0xff] %vm1788, %v2978
      %3107 = vst.msk [vmem:[%s326 + $0x98] sm:$0xff] %vm1788, %v2979
      %3108 = vst.msk [vmem:[%s326 + $0xa0] sm:$0xff] %vm1788, %v2980
      %3109 = vst.msk [vmem:[%s326 + $0xa8] sm:$0xff] %vm1788, %v2981
      %3110 = vst.msk [vmem:[%s326 + $0xb0] sm:$0xff] %vm1788, %v2982
      %3111 = vst.msk [vmem:[%s326 + $0xb8] sm:$0xff] %vm1788, %v2983
      %3112 = vst.msk [vmem:[%s326 + $0xc0] sm:$0xff] %vm1788, %v2984
      %3113 = vst.msk [vmem:[%s326 + $0xc8] sm:$0xff] %vm1788, %v2985
      %3114 = vst.msk [vmem:[%s326 + $0xd0] sm:$0xff] %vm1788, %v2986
      %3115 = vst.msk [vmem:[%s326 + $0xd8] sm:$0xff] %vm1788, %v2987
      %3116 = vst.msk [vmem:[%s326 + $0xe0] sm:$0xff] %vm1788, %v2988
      %3117 = vst.msk [vmem:[%s326 + $0xe8] sm:$0xff] %vm1788, %v2989
      %3118 = vst.msk [vmem:[%s326 + $0xf0] sm:$0xff] %vm1788, %v2990
      %3119 = vst.msk [vmem:[%s326 + $0xf8] sm:$0xff] %vm1788, %v2991
      %3120 = vst.msk [vmem:[%s326 + $0x100] sm:$0xff] %vm1788, %v2992
      %3121 = vst.msk [vmem:[%s326 + $0x108] sm:$0xff] %vm1788, %v2993
      %3122 = vst.msk [vmem:[%s326 + $0x110] sm:$0xff] %vm1788, %v2994
      %3123 = vst.msk [vmem:[%s326 + $0x118] sm:$0xff] %vm1788, %v2995
      %3124 = vst.msk [vmem:[%s326 + $0x120] sm:$0xff] %vm1788, %v2996
      %3125 = vst.msk [vmem:[%s326 + $0x128] sm:$0xff] %vm1788, %v2997
      %3126 = vst.msk [vmem:[%s326 + $0x130] sm:$0xff] %vm1788, %v2998
      %3127 = vst.msk [vmem:[%s326 + $0x138] sm:$0xff] %vm1788, %v2999
      %3128 = vst.msk [vmem:[%s326 + $0x140] sm:$0xff] %vm1788, %v3000
      %3129 = vst.msk [vmem:[%s326 + $0x148] sm:$0xff] %vm1788, %v3001
      %3130 = vst.msk [vmem:[%s326 + $0x150] sm:$0xff] %vm1788, %v3002
      %3131 = vst.msk [vmem:[%s326 + $0x158] sm:$0xff] %vm1788, %v3003
      %3132 = vst.msk [vmem:[%s326 + $0x160] sm:$0xff] %vm1788, %v3004
      %3133 = vst.msk [vmem:[%s326 + $0x168] sm:$0xff] %vm1788, %v3005
      %3134 = vst.msk [vmem:[%s326 + $0x170] sm:$0xff] %vm1788, %v3006
      %3135 = vst.msk [vmem:[%s326 + $0x178] sm:$0xff] %vm1788, %v3007
      %3136 = vst.msk [vmem:[%s326 + $0x180] sm:$0xff] %vm1788, %v3008
      %3137 = vst.msk [vmem:[%s326 + $0x188] sm:$0xff] %vm1788, %v3009
      %3138 = vst.msk [vmem:[%s326 + $0x190] sm:$0xff] %vm1788, %v3010
      %3139 = vst.msk [vmem:[%s326 + $0x198] sm:$0xff] %vm1788, %v3011
      %3140 = vst.msk [vmem:[%s326 + $0x1a0] sm:$0xff] %vm1788, %v3012
      %3141 = vst.msk [vmem:[%s326 + $0x1a8] sm:$0xff] %vm1788, %v3013
      %3142 = vst.msk [vmem:[%s326 + $0x1b0] sm:$0xff] %vm1788, %v3014
      %3143 = vst.msk [vmem:[%s326 + $0x1b8] sm:$0xff] %vm1788, %v3015
      %3144 = vst.msk [vmem:[%s326 + $0x1c0] sm:$0xff] %vm1788, %v3016
      %3145 = vst.msk [vmem:[%s326 + $0x1c8] sm:$0xff] %vm1788, %v3017
      %3146 = vst.msk [vmem:[%s326 + $0x1d0] sm:$0xff] %vm1788, %v3018
      %3147 = vst.msk [vmem:[%s326 + $0x1d8] sm:$0xff] %vm1788, %v3019
      %3148 = vst.msk [vmem:[%s326 + $0x1e0] sm:$0xff] %vm1788, %v3020
      %3149 = vst.msk [vmem:[%s326 + $0x1e8] sm:$0xff] %vm1788, %v3021
      %3150 = vst.msk [vmem:[%s326 + $0x1f0] sm:$0xff] %vm1788, %v3022
      %3151 = vst.msk [vmem:[%s326 + $0x1f8] sm:$0xff] %vm1788, %v3023
      %3152 = vst.msk [vmem:[%s326 + $0x200] sm:$0xff] %vm1788, %v3024
      %3153 = vst.msk [vmem:[%s326 + $0x208] sm:$0xff] %vm1788, %v3025
      %3154 = vst.msk [vmem:[%s326 + $0x210] sm:$0xff] %vm1788, %v3026
      %3155 = vst.msk [vmem:[%s326 + $0x218] sm:$0xff] %vm1788, %v3027
      %3156 = vst.msk [vmem:[%s326 + $0x220] sm:$0xff] %vm1788, %v3028
      %3157 = vst.msk [vmem:[%s326 + $0x228] sm:$0xff] %vm1788, %v3029
      %3158 = vst.msk [vmem:[%s326 + $0x230] sm:$0xff] %vm1788, %v3030
      %3159 = vst.msk [vmem:[%s326 + $0x238] sm:$0xff] %vm1788, %v3031
      %3160 = vst.msk [vmem:[%s326 + $0x240] sm:$0xff] %vm1788, %v3032
      %3161 = vst.msk [vmem:[%s326 + $0x248] sm:$0xff] %vm1788, %v3033
      %3162 = vst.msk [vmem:[%s326 + $0x250] sm:$0xff] %vm1788, %v3034
      %3163 = vst.msk [vmem:[%s326 + $0x258] sm:$0xff] %vm1788, %v3035
      %3164 = vst.msk [vmem:[%s326 + $0x260] sm:$0xff] %vm1788, %v3036
      %3165 = vst.msk [vmem:[%s326 + $0x268] sm:$0xff] %vm1788, %v3037
      %3166 = vst.msk [vmem:[%s326 + $0x270] sm:$0xff] %vm1788, %v3038
      %3167 = vst.msk [vmem:[%s326 + $0x278] sm:$0xff] %vm1788, %v3039
      %3168 = vst.msk [vmem:[%s326 + $0x280] sm:$0xff] %vm1788, %v3040
      %3169 = vst.msk [vmem:[%s326 + $0x288] sm:$0xff] %vm1788, %v3041
      %3170 = vst.msk [vmem:[%s326 + $0x290] sm:$0xff] %vm1788, %v3042
      %3171 = vst.msk [vmem:[%s326 + $0x298] sm:$0xff] %vm1788, %v3043
      %3172 = vst.msk [vmem:[%s326 + $0x2a0] sm:$0xff] %vm1788, %v3044
      %3173 = vst.msk [vmem:[%s326 + $0x2a8] sm:$0xff] %vm1788, %v3045
      %3174 = vst.msk [vmem:[%s326 + $0x2b0] sm:$0xff] %vm1788, %v3046
      %3175 = vst.msk [vmem:[%s326 + $0x2b8] sm:$0xff] %vm1788, %v3047
      %3176 = vst.msk [vmem:[%s326 + $0x2c0] sm:$0xff] %vm1788, %v3048
      %3177 = vst.msk [vmem:[%s326 + $0x2c8] sm:$0xff] %vm1788, %v3049
      %3178 = vst.msk [vmem:[%s326 + $0x2d0] sm:$0xff] %vm1788, %v3050
      %3179 = vst.msk [vmem:[%s326 + $0x2d8] sm:$0xff] %vm1788, %v3051
      %3180 = vst.msk [vmem:[%s326 + $0x2e0] sm:$0xff] %vm1788, %v3052
      %3181 = vst.msk [vmem:[%s326 + $0x2e8] sm:$0xff] %vm1788, %v3053
      %3182 = vst.msk [vmem:[%s326 + $0x2f0] sm:$0xff] %vm1788, %v3054
      %3183 = vst.msk [vmem:[%s326 + $0x2f8] sm:$0xff] %vm1788, %v3055
      %3184 = vst.msk [vmem:[%s326 + $0x300] sm:$0xff] %vm1788, %v3056
      %3185 = vst.msk [vmem:[%s326 + $0x308] sm:$0xff] %vm1788, %v3057
      %3186 = vst.msk [vmem:[%s326 + $0x310] sm:$0xff] %vm1788, %v3058
      %3187 = vst.msk [vmem:[%s326 + $0x318] sm:$0xff] %vm1788, %v3059
      %3188 = vst.msk [vmem:[%s326 + $0x320] sm:$0xff] %vm1788, %v3060
      %3189 = vst.msk [vmem:[%s326 + $0x328] sm:$0xff] %vm1788, %v3061
      %3190 = vst.msk [vmem:[%s326 + $0x330] sm:$0xff] %vm1788, %v3062
      %3191 = vst.msk [vmem:[%s326 + $0x338] sm:$0xff] %vm1788, %v3063
      %3192 = vst.msk [vmem:[%s326 + $0x340] sm:$0xff] %vm1788, %v3064
      %3193 = vst.msk [vmem:[%s326 + $0x348] sm:$0xff] %vm1788, %v3065
      %3194 = vst.msk [vmem:[%s326 + $0x350] sm:$0xff] %vm1788, %v3066
      %3195 = vst.msk [vmem:[%s326 + $0x358] sm:$0xff] %vm1788, %v3067
      %3196 = vst.msk [vmem:[%s326 + $0x360] sm:$0xff] %vm1788, %v3068
      %3197 = vst.msk [vmem:[%s326 + $0x368] sm:$0xff] %vm1788, %v3069
      %3198 = vst.msk [vmem:[%s326 + $0x370] sm:$0xff] %vm1788, %v3070
      %3199 = vst.msk [vmem:[%s326 + $0x378] sm:$0xff] %vm1788, %v3071
      %3200 = vst.msk [vmem:[%s326 + $0x380] sm:$0xff] %vm1788, %v3072
      %3201 = vst.msk [vmem:[%s326 + $0x388] sm:$0xff] %vm1788, %v3073
      %3202 = vst.msk [vmem:[%s326 + $0x390] sm:$0xff] %vm1788, %v3074
      %3203 = vst.msk [vmem:[%s326 + $0x398] sm:$0xff] %vm1788, %v3075
      %3204 = vst.msk [vmem:[%s326 + $0x3a0] sm:$0xff] %vm1788, %v3076
      %3205 = vst.msk [vmem:[%s326 + $0x3a8] sm:$0xff] %vm1788, %v3077
      %3206 = vst.msk [vmem:[%s326 + $0x3b0] sm:$0xff] %vm1788, %v3078
      %3207 = vst.msk [vmem:[%s326 + $0x3b8] sm:$0xff] %vm1788, %v3079
      %3208 = vst.msk [vmem:[%s326 + $0x3c0] sm:$0xff] %vm1788, %v3080
      %3209 = vst.msk [vmem:[%s326 + $0x3c8] sm:$0xff] %vm1788, %v3081
      %3210 = vst.msk [vmem:[%s326 + $0x3d0] sm:$0xff] %vm1788, %v3082
      %3211 = vst.msk [vmem:[%s326 + $0x3d8] sm:$0xff] %vm1788, %v3083
      %3212 = vst.msk [vmem:[%s326 + $0x3e0] sm:$0xff] %vm1788, %v3084
      %3213 = vst.msk [vmem:[%s326 + $0x3e8] sm:$0xff] %vm1788, %v3085
      %3214 = vst.msk [vmem:[%s326 + $0x3f0] sm:$0xff] %vm1788, %v3086
      %3215 = vst.msk [vmem:[%s326 + $0x3f8] sm:$0xff] %vm1788, %v3087
      %p3216 = scmp.lt.s32.totalorder %s20, 1
      %s3217 = scalar_select %p3216, %s20, 1
      %s3218 = smul.addr %s3217, 128
      %s3219 = smul.addr %s3218, 8
      %s3220 = scalar_lea.vmem %s8, %s3219
      // Predicated region
      $region53: #{norm_upsample.1} parent=51 // pred_check
        %p3221 = pneg %p216
      $region54: #{norm_upsample.1} parent=51 // pred_check_branch
        %3223 = sbr.rel (%p3221) target = $region56
      $region55: #{norm_upsample.1} parent=51 // pred_region
        _
      $region56: #{norm_upsample.1} parent=51 // pred_fallthru
        _
    $region52: #{norm_upsample.1} parent=5 // pred_fallthru
      _
    %p3224 = scmp.le.s32.totalorder 2, %s15
    // Predicated region
    $region57: #{norm_upsample.1} parent=5 // pred_check
      %p3225 = pneg %p3224
    $region58: #{norm_upsample.1} parent=5 // pred_check_branch
      %3227 = sbr.rel (%p3225) target = $region60
    $region59: #{norm_upsample.1} parent=5 // pred_region
      %s3228 = ssub.s32 %s15, 2
      // Predicated region
      $region61: #{norm_upsample.1} parent=59 // pred_check
        %p3229 = pneg %p222
      $region62: #{norm_upsample.1} parent=59 // pred_check_branch
        %3231 = sbr.rel (%p3229) target = $region64
      $region63: #{norm_upsample.1} parent=59 // pred_region
        %p3232 = scmp.lt.s32.totalorder %s21, 1
        %s3233 = scalar_select %p3232, %s21, 1
        %s3234 = smul.addr %s3233, 128
        %s3235 = smul.addr %s3234, 8
        %s3236 = scalar_lea.vmem %s8, %s3235
      $region64: #{norm_upsample.1} parent=59 // pred_fallthru
        _
    $region60: #{norm_upsample.1} parent=5 // pred_fallthru
      _
  $region6: #{norm_upsample.1} parent=0 // loop_footer
    %s19 = sadd.s32 1, %s15
  $region7: #{norm_upsample.1} parent=0 // loop_footer_branch
    %14 = sbr.rel target = $region3
  $region8: #{norm_upsample.1} parent=0 // loop_exit
    _

</llo_original>
